<compile_context>
chip_gen: v6e
topology: v6e:2x2x1
jax: 0.10.0
libtpu: 0.0.40
codegen_flags: <defaults>
</compile_context>

<pallas_src>
import functools

import jax
import jax.numpy as jnp
import numpy as np
from jax.experimental import pallas as pl
from jax.experimental.pallas import tpu as pltpu


def _largest_divisor_not_above(n, cap):
    cap = max(1, min(n, cap))
    while n % cap:
        cap -= 1
    return cap


def encoder_layer_kernel(x_ref, mask_ref,
                         ln1_g, ln1_b, wqkv, bqkv, wo, bo,
                         ln2_g, ln2_b, w1, b1, w2, b2,
                         out_ref, ctx_scratch,
                         *, heads, q_block, ff_block):
    f32 = jnp.float32
    bf16 = jnp.bfloat16

    x = x_ref[0].astype(f32)                 # (S, D)
    m = mask_ref[0]                          # (1, S); 1.0 = padded key position
    S, D = x.shape
    dph = D // heads
    eps = f32(1e-6)

    def layer_norm(z, g, b):                 # f32 math, biased variance (torch.nn.LayerNorm)
        mu = jnp.mean(z, axis=-1, keepdims=True)
        var = jnp.mean((z - mu) ** 2, axis=-1, keepdims=True)
        return (z - mu) * jax.lax.rsqrt(var + eps) * g[...] + b[...]

    def mm(a, b):                            # bf16 operands -> MXU, f32 accumulate
        return jnp.dot(a, b, preferred_element_type=f32)

    def mm_nt(a, b):                         # (m,k),(n,k) -> (m,n): contract last dims (q @ k^T)
        return jax.lax.dot_general(a, b, (((1,), (1,)), ((), ())),
                                   preferred_element_type=f32)

    # ---- LayerNorm 1 (f32) -> fused QKV projection (one (S,D)@(D,3D) bf16 matmul) ----
    xn = layer_norm(x, ln1_g, ln1_b)
    qkv = mm(xn.astype(bf16), wqkv[...]) + bqkv[...]            # (S, 3D) f32
    q = qkv[:, :D]
    k = qkv[:, D:2 * D]
    v = qkv[:, 2 * D:]

    scale = f32(1.0) / jnp.sqrt(f32(dph))
    neg = f32(-1e18)

    # ---- per-head attention, query-tiled; heads re-assembled in a VMEM scratch ----
    # TODO(synk): for very long sequences a KV-tiled (flash/online-softmax) grid axis with
    # precomputed K/V would be needed; here K/V stay fully resident per batch row.
    for h in range(heads):
        hs = slice(h * dph, (h + 1) * dph)
        qh = (q[:, hs] * scale).astype(bf16)                    # scale in f32, cast for MXU
        kh = k[:, hs].astype(bf16)
        vh = v[:, hs].astype(bf16)
        for qb in range(S // q_block):
            qs = slice(qb * q_block, (qb + 1) * q_block)
            s = mm_nt(qh[qs], kh)                               # (TQ, S) scores, f32
            s = jnp.where(m > 0.5, neg, s)                      # masked_fill(mask, -1e18), f32
            s = s - jnp.max(s, axis=-1, keepdims=True)
            p = jnp.exp(s)
            denom = jnp.sum(p, axis=-1, keepdims=True)
            attn = p * pl.reciprocal(denom, approx=True)        # EUP reciprocal (free slot)
            # attention dropout omitted (eval mode => identity)
            ctx_scratch[qs, hs] = mm(attn.astype(bf16), vh)     # (TQ, dph) -> static column slice

    ctx = ctx_scratch[...].astype(bf16)                         # (S, D), no concat relayout
    attn_out = mm(ctx, wo[...]) + bo[...]
    out1 = attn_out + x                                         # residual (dropout identity)

    # ---- PositionwiseFeedForward: pre-LN -> W1 -> ReLU -> W2 (d_ff tiled) -> residual ----
    yn = layer_norm(out1, ln2_g, ln2_b).astype(bf16)
    d_ff = w1.shape[1]
    ffn = jnp.zeros((S, D), f32)
    for j in range(d_ff // ff_block):
        fs = slice(j * ff_block, (j + 1) * ff_block)
        inter = jnp.maximum(mm(yn, w1[:, fs]) + b1[:, fs], 0.0)  # (S, TFF), f32
        ffn = ffn + mm(inter.astype(bf16), w2[fs, :])
    ffn = ffn + b2[...]

    out_ref[0] = (ffn + out1).astype(out_ref.dtype)


PACKED_ORDER = ["ln1_g", "ln1_b", "wqkv", "bqkv", "wo", "bo",
                "ln2_g", "ln2_b", "w1", "b1", "w2", "b2"]


def _pack_params(p):
    """Pack/cast PyTorch-layout params: fused QKV weight, bf16 matmul weights, f32 biases/LN."""
    bf16, f32 = jnp.bfloat16, jnp.float32
    return {
        "ln1_g": p["ln1_g"].astype(f32), "ln1_b": p["ln1_b"].astype(f32),
        "wqkv": jnp.concatenate([p["wq"], p["wk"], p["wv"]], axis=1).astype(bf16),
        "bqkv": jnp.concatenate([p["bq"], p["bk"], p["bv"]], axis=1).astype(f32),
        "wo": p["wo"].astype(bf16), "bo": p["bo"].astype(f32),
        "ln2_g": p["ln2_g"].astype(f32), "ln2_b": p["ln2_b"].astype(f32),
        "w1": p["w1"].astype(bf16), "b1": p["b1"].astype(f32),
        "w2": p["w2"].astype(bf16), "b2": p["b2"].astype(f32),
    }


def _weight_spec(shape, weight_buffers):
    index_map = lambda b: (0,) * len(shape)
    if weight_buffers is None:
        return pl.BlockSpec(shape, index_map)
    # Grid-invariant weights: single-buffer them (no point double-buffering constant blocks).
    return pl.BlockSpec(shape, index_map, pipeline_mode=pl.Buffered(weight_buffers))


def _encoder_layer_call(x, mask, packed, *, heads, q_block, ff_block, weight_buffers):
    B, S, D = x.shape
    assert D % heads == 0
    d_ff = packed["w1"].shape[1]
    tq = _largest_divisor_not_above(S, q_block)
    tff = _largest_divisor_not_above(d_ff, ff_block)

    param_arrays = [packed[k] for k in PACKED_ORDER]
    param_specs = [_weight_spec(tuple(p.shape), weight_buffers) for p in param_arrays]

    grid_spec = pltpu.PrefetchScalarGridSpec(
        num_scalar_prefetch=0,
        grid=(B,),
        in_specs=[pl.BlockSpec((1, S, D), lambda b: (b, 0, 0)),   # x: one batch row per step
                  pl.BlockSpec((1, 1, S), lambda b: (b, 0, 0))]   # key-padding mask
                 + param_specs,
        out_specs=pl.BlockSpec((1, S, D), lambda b: (b, 0, 0)),
        scratch_shapes=[pltpu.VMEM((S, D), jnp.float32)],          # per-row attention context
    )

    kernel = functools.partial(encoder_layer_kernel, heads=heads,
                               q_block=tq, ff_block=tff)
    return pl.pallas_call(
        kernel,
        out_shape=jax.ShapeDtypeStruct((B, S, D), jnp.float32),
        grid_spec=grid_spec,
        compiler_params=pltpu.CompilerParams(
            dimension_semantics=("parallel",),          # batch rows independent -> megacore on v7x
            vmem_limit_bytes=48 * 1024 * 1024),         # above 32 MiB default, headroom under v7x 64 MiB
    )(x, mask.astype(jnp.float32), *param_arrays)


def transformer_encoder_layer(x, mask, params, *, heads, q_block=256, ff_block=512):
    packed = _pack_params(params)
    try:
        return _encoder_layer_call(x, mask, packed, heads=heads, q_block=q_block,
                                   ff_block=ff_block, weight_buffers=1)
    except Exception:
        # Fallback for jax versions where BlockSpec(pipeline_mode=pl.Buffered(1)) is unsupported.
        return _encoder_layer_call(x, mask, packed, heads=heads, q_block=q_block,
                                   ff_block=ff_block, weight_buffers=None)


def reference_forward(x, mask, p, *, heads):
    """Pure-JAX f32 reference mirroring the PyTorch module (eval mode)."""
    def ln(z, g, b):
        mu = jnp.mean(z, -1, keepdims=True)
        var = jnp.mean((z - mu) ** 2, -1, keepdims=True)
        return (z - mu) / jnp.sqrt(var + 1e-6) * g + b

    B, S, D = x.shape
    dph = D // heads
    xn = ln(x, p["ln1_g"], p["ln1_b"])
    q = xn @ p["wq"] + p["bq"]
    k = xn @ p["wk"] + p["bk"]
    v = xn @ p["wv"] + p["bv"]

    def split(t):
        return t.reshape(B, S, heads, dph).transpose(0, 2, 1, 3)   # (B, H, S, dph)

    qh = split(q) / jnp.sqrt(jnp.float32(dph))
    kh, vh = split(k), split(v)
    scores = qh @ kh.transpose(0, 1, 3, 2)                          # (B, H, S, S)
    scores = jnp.where(mask[:, :, None, :] > 0.5, -1e18, scores)
    attn = jax.nn.softmax(scores, axis=-1)
    ctx = (attn @ vh).transpose(0, 2, 1, 3).reshape(B, S, D)
    attn_out = ctx @ p["wo"] + p["bo"]
    out1 = attn_out + x
    yn = ln(out1, p["ln2_g"], p["ln2_b"])
    inter = jax.nn.relu(yn @ p["w1"] + p["b1"])
    return inter @ p["w2"] + p["b2"] + out1


def make_params(key, d_model, d_ff):
    keys = jax.random.split(key, 16)
    n = lambda k, shape, s=0.1: (s * jax.random.normal(k, shape)).astype(jnp.float32)
    return {
        "ln1_g": 1.0 + n(keys[0], (1, d_model)),
        "ln1_b": n(keys[1], (1, d_model)),
        "wq": n(keys[2], (d_model, d_model)), "bq": n(keys[3], (1, d_model)),
        "wk": n(keys[4], (d_model, d_model)), "bk": n(keys[5], (1, d_model)),
        "wv": n(keys[6], (d_model, d_model)), "bv": n(keys[7], (1, d_model)),
        "wo": n(keys[8], (d_model, d_model)), "bo": n(keys[9], (1, d_model)),
        "ln2_g": 1.0 + n(keys[10], (1, d_model)),
        "ln2_b": n(keys[11], (1, d_model)),
        "w1": n(keys[12], (d_model, d_ff)), "b1": n(keys[13], (1, d_ff)),
        "w2": n(keys[14], (d_ff, d_model)), "b2": n(keys[15], (1, d_model)),
    }


if __name__ == "__main__":
    B, S, D, H, D_FF = 2, 8, 32, 4, 64

    key = jax.random.PRNGKey(0)
    k_x, k_p = jax.random.split(key)
    x = jax.random.normal(k_x, (B, S, D), dtype=jnp.float32)

    # Padding mask: batch 0 has full length 8, batch 1 has length 5 (last 3 positions padded).
    lengths = np.array([8, 5])
    mask_np = (np.arange(S)[None, :] >= lengths[:, None]).astype(np.float32)  # (B, S)
    mask = jnp.asarray(mask_np)[:, None, :]                                   # (B, 1, S)

    params = make_params(k_p, D, D_FF)

    out = transformer_encoder_layer(x, mask, params, heads=H)
    out = jax.block_until_ready(out)

    ref = reference_forward(x, mask, params, heads=H)
    # Tolerance sized for bf16 MXU operands (f32 accumulation) vs. the pure-f32 reference.
    np.testing.assert_allclose(np.asarray(out), np.asarray(ref), rtol=5e-2, atol=5e-2)

    print("KERNEL_OK")
</pallas_src>

<mosaic_0001>
module attributes {stable_mosaic.version = 11 : i64} {
  func.func @encoder_layer_kernel(%arg0: i32, %arg1: memref<1x8x32xf32, #tpu.memory_space<vmem>>, %arg2: memref<1x1x8xf32, #tpu.memory_space<vmem>>, %arg3: memref<1x32xf32, #tpu.memory_space<vmem>>, %arg4: memref<1x32xf32, #tpu.memory_space<vmem>>, %arg5: memref<32x96xbf16, #tpu.memory_space<vmem>>, %arg6: memref<1x96xf32, #tpu.memory_space<vmem>>, %arg7: memref<32x32xbf16, #tpu.memory_space<vmem>>, %arg8: memref<1x32xf32, #tpu.memory_space<vmem>>, %arg9: memref<1x32xf32, #tpu.memory_space<vmem>>, %arg10: memref<1x32xf32, #tpu.memory_space<vmem>>, %arg11: memref<32x64xbf16, #tpu.memory_space<vmem>>, %arg12: memref<1x64xf32, #tpu.memory_space<vmem>>, %arg13: memref<64x32xbf16, #tpu.memory_space<vmem>>, %arg14: memref<1x32xf32, #tpu.memory_space<vmem>>, %arg15: memref<1x8x32xf32, #tpu.memory_space<vmem>>, %arg16: memref<8x32xf32, #tpu.memory_space<vmem>>) attributes {dimension_semantics = [#tpu.dimension_semantics<parallel>], iteration_bounds = array<i64: 2>, scalar_prefetch = 0 : i64, scratch_operands = 1 : i64, tpu.core_type = #tpu.core_type<tc>, window_params = [{transform_indices = @transform_0, window_bounds = array<i64: 1, 8, 32>}, {transform_indices = @transform_1, window_bounds = array<i64: 1, 1, 8>}, {pipeline_mode = #tpu.pipeline_mode<synchronous>, transform_indices = @transform_2, window_bounds = array<i64: 1, 32>}, {pipeline_mode = #tpu.pipeline_mode<synchronous>, transform_indices = @transform_3, window_bounds = array<i64: 1, 32>}, {pipeline_mode = #tpu.pipeline_mode<synchronous>, transform_indices = @transform_4, window_bounds = array<i64: 32, 96>}, {pipeline_mode = #tpu.pipeline_mode<synchronous>, transform_indices = @transform_5, window_bounds = array<i64: 1, 96>}, {pipeline_mode = #tpu.pipeline_mode<synchronous>, transform_indices = @transform_6, window_bounds = array<i64: 32, 32>}, {pipeline_mode = #tpu.pipeline_mode<synchronous>, transform_indices = @transform_7, window_bounds = array<i64: 1, 32>}, {pipeline_mode = #tpu.pipeline_mode<synchronous>, transform_indices = @transform_8, window_bounds = array<i64: 1, 32>}, {pipeline_mode = #tpu.pipeline_mode<synchronous>, transform_indices = @transform_9, window_bounds = array<i64: 1, 32>}, {pipeline_mode = #tpu.pipeline_mode<synchronous>, transform_indices = @transform_10, window_bounds = array<i64: 32, 64>}, {pipeline_mode = #tpu.pipeline_mode<synchronous>, transform_indices = @transform_11, window_bounds = array<i64: 1, 64>}, {pipeline_mode = #tpu.pipeline_mode<synchronous>, transform_indices = @transform_12, window_bounds = array<i64: 64, 32>}, {pipeline_mode = #tpu.pipeline_mode<synchronous>, transform_indices = @transform_13, window_bounds = array<i64: 1, 32>}, {transform_indices = @transform_14, window_bounds = array<i64: 1, 8, 32>}]} {
    %c0 = arith.constant 0 : index
    %c0_0 = arith.constant 0 : index
    %c0_1 = arith.constant 0 : index
    %0 = vector.load %arg1[%c0, %c0_0, %c0_1] : memref<1x8x32xf32, #tpu.memory_space<vmem>>, vector<1x8x32xf32>
    %1 = vector.shape_cast %0 : vector<1x8x32xf32> to vector<8x32xf32>
    %c0_2 = arith.constant 0 : index
    %c0_3 = arith.constant 0 : index
    %c0_4 = arith.constant 0 : index
    %2 = vector.load %arg2[%c0_2, %c0_3, %c0_4] : memref<1x1x8xf32, #tpu.memory_space<vmem>>, vector<1x1x8xf32>
    %3 = vector.shape_cast %2 : vector<1x1x8xf32> to vector<1x8xf32>
    %cst = arith.constant dense<0.000000e+00> : vector<8xf32>
    %4 = vector.multi_reduction <add>, %1, %cst [1] : vector<8x32xf32> to vector<8xf32>
    %5 = vector.shape_cast %4 : vector<8xf32> to vector<8x1xf32>
    %cst_5 = arith.constant 3.200000e+01 : f32
    %6 = vector.broadcast %cst_5 : f32 to vector<8x1xf32>
    %7 = arith.divf %5, %6 : vector<8x1xf32>
    %8 = vector.broadcast %7 : vector<8x1xf32> to vector<8x32xf32>
    %9 = arith.subf %1, %8 : vector<8x32xf32>
    %10 = arith.mulf %9, %9 : vector<8x32xf32>
    %cst_6 = arith.constant dense<0.000000e+00> : vector<8xf32>
    %11 = vector.multi_reduction <add>, %10, %cst_6 [1] : vector<8x32xf32> to vector<8xf32>
    %12 = vector.shape_cast %11 : vector<8xf32> to vector<8x1xf32>
    %cst_7 = arith.constant 3.200000e+01 : f32
    %13 = vector.broadcast %cst_7 : f32 to vector<8x1xf32>
    %14 = arith.divf %12, %13 : vector<8x1xf32>
    %15 = vector.broadcast %7 : vector<8x1xf32> to vector<8x32xf32>
    %16 = arith.subf %1, %15 : vector<8x32xf32>
    %cst_8 = arith.constant 9.99999997E-7 : f32
    %17 = vector.broadcast %cst_8 : f32 to vector<8x1xf32>
    %18 = arith.addf %14, %17 : vector<8x1xf32>
    %19 = math.rsqrt %18 : vector<8x1xf32>
    %20 = vector.broadcast %19 : vector<8x1xf32> to vector<8x32xf32>
    %21 = arith.mulf %16, %20 : vector<8x32xf32>
    %c0_9 = arith.constant 0 : index
    %c0_10 = arith.constant 0 : index
    %22 = vector.load %arg3[%c0_9, %c0_10] : memref<1x32xf32, #tpu.memory_space<vmem>>, vector<1x32xf32>
    %23 = vector.broadcast %22 : vector<1x32xf32> to vector<8x32xf32>
    %24 = arith.mulf %21, %23 : vector<8x32xf32>
    %c0_11 = arith.constant 0 : index
    %c0_12 = arith.constant 0 : index
    %25 = vector.load %arg4[%c0_11, %c0_12] : memref<1x32xf32, #tpu.memory_space<vmem>>, vector<1x32xf32>
    %26 = vector.broadcast %25 : vector<1x32xf32> to vector<8x32xf32>
    %27 = arith.addf %24, %26 : vector<8x32xf32>
    %28 = arith.truncf %27 : vector<8x32xf32> to vector<8x32xbf16>
    %c0_13 = arith.constant 0 : index
    %c0_14 = arith.constant 0 : index
    %29 = vector.load %arg5[%c0_13, %c0_14] : memref<32x96xbf16, #tpu.memory_space<vmem>>, vector<32x96xbf16>
    %cst_15 = arith.constant dense<0.000000e+00> : vector<8x96xf32>
    %30 = tpu.matmul %28, %29, %cst_15 {dimension_numbers = #tpu.dot_dimension_numbers<[1], [0], [0], [1], [0, 0, 1, 1], [], []>} : vector<8x32xbf16>, vector<32x96xbf16>, vector<8x96xf32> -> vector<8x96xf32>
    %c0_16 = arith.constant 0 : index
    %c0_17 = arith.constant 0 : index
    %31 = vector.load %arg6[%c0_16, %c0_17] : memref<1x96xf32, #tpu.memory_space<vmem>>, vector<1x96xf32>
    %32 = vector.broadcast %31 : vector<1x96xf32> to vector<8x96xf32>
    %33 = arith.addf %30, %32 : vector<8x96xf32>
    %34 = vector.extract_strided_slice %33 {offsets = [0, 0], sizes = [8, 32], strides = [1, 1]} : vector<8x96xf32> to vector<8x32xf32>
    %35 = vector.extract_strided_slice %33 {offsets = [0, 32], sizes = [8, 32], strides = [1, 1]} : vector<8x96xf32> to vector<8x32xf32>
    %36 = vector.extract_strided_slice %33 {offsets = [0, 64], sizes = [8, 32], strides = [1, 1]} : vector<8x96xf32> to vector<8x32xf32>
    %cst_18 = arith.constant 8.000000e+00 : f32
    %37 = math.sqrt %cst_18 : f32
    %cst_19 = arith.constant 1.000000e+00 : f32
    %38 = arith.divf %cst_19, %37 : f32
    %39 = vector.extract_strided_slice %34 {offsets = [0, 0], sizes = [8, 8], strides = [1, 1]} : vector<8x32xf32> to vector<8x8xf32>
    %40 = vector.broadcast %38 : f32 to vector<8x8xf32>
    %41 = arith.mulf %39, %40 : vector<8x8xf32>
    %42 = arith.truncf %41 : vector<8x8xf32> to vector<8x8xbf16>
    %43 = vector.extract_strided_slice %35 {offsets = [0, 0], sizes = [8, 8], strides = [1, 1]} : vector<8x32xf32> to vector<8x8xf32>
    %44 = arith.truncf %43 : vector<8x8xf32> to vector<8x8xbf16>
    %45 = vector.extract_strided_slice %36 {offsets = [0, 0], sizes = [8, 8], strides = [1, 1]} : vector<8x32xf32> to vector<8x8xf32>
    %46 = arith.truncf %45 : vector<8x8xf32> to vector<8x8xbf16>
    %cst_20 = arith.constant dense<0.000000e+00> : vector<8x8xf32>
    %47 = tpu.matmul %42, %44, %cst_20 {dimension_numbers = #tpu.dot_dimension_numbers<[1], [1], [0], [0], [0, 0, 1, 0], [], []>} : vector<8x8xbf16>, vector<8x8xbf16>, vector<8x8xf32> -> vector<8x8xf32>
    %cst_21 = arith.constant 5.000000e-01 : f32
    %48 = vector.broadcast %cst_21 : f32 to vector<1x8xf32>
    %49 = arith.cmpf ogt, %3, %48 : vector<1x8xf32>
    %cst_22 = arith.constant -9.99999984E+17 : f32
    %50 = vector.shape_cast %49 : vector<1x8xi1> to vector<1x8xi1>
    %51 = vector.broadcast %50 : vector<1x8xi1> to vector<8x8xi1>
    %52 = vector.broadcast %cst_22 : f32 to vector<8x8xf32>
    %53 = arith.select %51, %52, %47 : vector<8x8xi1>, vector<8x8xf32>
    %cst_23 = arith.constant dense<0xFF800000> : vector<8xf32>
    %54 = vector.multi_reduction <maximumf>, %53, %cst_23 [1] : vector<8x8xf32> to vector<8xf32>
    %55 = vector.shape_cast %54 : vector<8xf32> to vector<8x1xf32>
    %56 = vector.broadcast %55 : vector<8x1xf32> to vector<8x8xf32>
    %57 = arith.subf %53, %56 : vector<8x8xf32>
    %58 = math.exp %57 : vector<8x8xf32>
    %cst_24 = arith.constant dense<0.000000e+00> : vector<8xf32>
    %59 = vector.multi_reduction <add>, %58, %cst_24 [1] : vector<8x8xf32> to vector<8xf32>
    %60 = vector.shape_cast %59 : vector<8xf32> to vector<8x1xf32>
    %61 = tpu.reciprocal %60 {approx = true} : vector<8x1xf32> -> vector<8x1xf32>
    %62 = vector.broadcast %61 : vector<8x1xf32> to vector<8x8xf32>
    %63 = arith.mulf %58, %62 : vector<8x8xf32>
    %64 = arith.truncf %63 : vector<8x8xf32> to vector<8x8xbf16>
    %cst_25 = arith.constant dense<0.000000e+00> : vector<8x8xf32>
    %65 = tpu.matmul %64, %46, %cst_25 {dimension_numbers = #tpu.dot_dimension_numbers<[1], [0], [0], [1], [0, 0, 1, 1], [], []>} : vector<8x8xbf16>, vector<8x8xbf16>, vector<8x8xf32> -> vector<8x8xf32>
    %c0_26 = arith.constant 0 : index
    %c0_27 = arith.constant 0 : index
    %66 = vector.load %arg16[%c0_26, %c0_27] : memref<8x32xf32, #tpu.memory_space<vmem>>, vector<8x8xf32>
    tpu.vector_store %arg16[%c0_26, %c0_27], %65 {strides = array<i32>} : memref<8x32xf32, #tpu.memory_space<vmem>>, vector<8x8xf32>,
    %67 = vector.extract_strided_slice %34 {offsets = [0, 8], sizes = [8, 8], strides = [1, 1]} : vector<8x32xf32> to vector<8x8xf32>
    %68 = vector.broadcast %38 : f32 to vector<8x8xf32>
    %69 = arith.mulf %67, %68 : vector<8x8xf32>
    %70 = arith.truncf %69 : vector<8x8xf32> to vector<8x8xbf16>
    %71 = vector.extract_strided_slice %35 {offsets = [0, 8], sizes = [8, 8], strides = [1, 1]} : vector<8x32xf32> to vector<8x8xf32>
    %72 = arith.truncf %71 : vector<8x8xf32> to vector<8x8xbf16>
    %73 = vector.extract_strided_slice %36 {offsets = [0, 8], sizes = [8, 8], strides = [1, 1]} : vector<8x32xf32> to vector<8x8xf32>
    %74 = arith.truncf %73 : vector<8x8xf32> to vector<8x8xbf16>
    %cst_28 = arith.constant dense<0.000000e+00> : vector<8x8xf32>
    %75 = tpu.matmul %70, %72, %cst_28 {dimension_numbers = #tpu.dot_dimension_numbers<[1], [1], [0], [0], [0, 0, 1, 0], [], []>} : vector<8x8xbf16>, vector<8x8xbf16>, vector<8x8xf32> -> vector<8x8xf32>
    %cst_29 = arith.constant 5.000000e-01 : f32
    %76 = vector.broadcast %cst_29 : f32 to vector<1x8xf32>
    %77 = arith.cmpf ogt, %3, %76 : vector<1x8xf32>
    %cst_30 = arith.constant -9.99999984E+17 : f32
    %78 = vector.shape_cast %77 : vector<1x8xi1> to vector<1x8xi1>
    %79 = vector.broadcast %78 : vector<1x8xi1> to vector<8x8xi1>
    %80 = vector.broadcast %cst_30 : f32 to vector<8x8xf32>
    %81 = arith.select %79, %80, %75 : vector<8x8xi1>, vector<8x8xf32>
    %cst_31 = arith.constant dense<0xFF800000> : vector<8xf32>
    %82 = vector.multi_reduction <maximumf>, %81, %cst_31 [1] : vector<8x8xf32> to vector<8xf32>
    %83 = vector.shape_cast %82 : vector<8xf32> to vector<8x1xf32>
    %84 = vector.broadcast %83 : vector<8x1xf32> to vector<8x8xf32>
    %85 = arith.subf %81, %84 : vector<8x8xf32>
    %86 = math.exp %85 : vector<8x8xf32>
    %cst_32 = arith.constant dense<0.000000e+00> : vector<8xf32>
    %87 = vector.multi_reduction <add>, %86, %cst_32 [1] : vector<8x8xf32> to vector<8xf32>
    %88 = vector.shape_cast %87 : vector<8xf32> to vector<8x1xf32>
    %89 = tpu.reciprocal %88 {approx = true} : vector<8x1xf32> -> vector<8x1xf32>
    %90 = vector.broadcast %89 : vector<8x1xf32> to vector<8x8xf32>
    %91 = arith.mulf %86, %90 : vector<8x8xf32>
    %92 = arith.truncf %91 : vector<8x8xf32> to vector<8x8xbf16>
    %cst_33 = arith.constant dense<0.000000e+00> : vector<8x8xf32>
    %93 = tpu.matmul %92, %74, %cst_33 {dimension_numbers = #tpu.dot_dimension_numbers<[1], [0], [0], [1], [0, 0, 1, 1], [], []>} : vector<8x8xbf16>, vector<8x8xbf16>, vector<8x8xf32> -> vector<8x8xf32>
    %c0_34 = arith.constant 0 : index
    %c8 = arith.constant 8 : index
    %94 = vector.load %arg16[%c0_34, %c8] : memref<8x32xf32, #tpu.memory_space<vmem>>, vector<8x8xf32>
    tpu.vector_store %arg16[%c0_34, %c8], %93 {strides = array<i32>} : memref<8x32xf32, #tpu.memory_space<vmem>>, vector<8x8xf32>,
    %95 = vector.extract_strided_slice %34 {offsets = [0, 16], sizes = [8, 8], strides = [1, 1]} : vector<8x32xf32> to vector<8x8xf32>
    %96 = vector.broadcast %38 : f32 to vector<8x8xf32>
    %97 = arith.mulf %95, %96 : vector<8x8xf32>
    %98 = arith.truncf %97 : vector<8x8xf32> to vector<8x8xbf16>
    %99 = vector.extract_strided_slice %35 {offsets = [0, 16], sizes = [8, 8], strides = [1, 1]} : vector<8x32xf32> to vector<8x8xf32>
    %100 = arith.truncf %99 : vector<8x8xf32> to vector<8x8xbf16>
    %101 = vector.extract_strided_slice %36 {offsets = [0, 16], sizes = [8, 8], strides = [1, 1]} : vector<8x32xf32> to vector<8x8xf32>
    %102 = arith.truncf %101 : vector<8x8xf32> to vector<8x8xbf16>
    %cst_35 = arith.constant dense<0.000000e+00> : vector<8x8xf32>
    %103 = tpu.matmul %98, %100, %cst_35 {dimension_numbers = #tpu.dot_dimension_numbers<[1], [1], [0], [0], [0, 0, 1, 0], [], []>} : vector<8x8xbf16>, vector<8x8xbf16>, vector<8x8xf32> -> vector<8x8xf32>
    %cst_36 = arith.constant 5.000000e-01 : f32
    %104 = vector.broadcast %cst_36 : f32 to vector<1x8xf32>
    %105 = arith.cmpf ogt, %3, %104 : vector<1x8xf32>
    %cst_37 = arith.constant -9.99999984E+17 : f32
    %106 = vector.shape_cast %105 : vector<1x8xi1> to vector<1x8xi1>
    %107 = vector.broadcast %106 : vector<1x8xi1> to vector<8x8xi1>
    %108 = vector.broadcast %cst_37 : f32 to vector<8x8xf32>
    %109 = arith.select %107, %108, %103 : vector<8x8xi1>, vector<8x8xf32>
    %cst_38 = arith.constant dense<0xFF800000> : vector<8xf32>
    %110 = vector.multi_reduction <maximumf>, %109, %cst_38 [1] : vector<8x8xf32> to vector<8xf32>
    %111 = vector.shape_cast %110 : vector<8xf32> to vector<8x1xf32>
    %112 = vector.broadcast %111 : vector<8x1xf32> to vector<8x8xf32>
    %113 = arith.subf %109, %112 : vector<8x8xf32>
    %114 = math.exp %113 : vector<8x8xf32>
    %cst_39 = arith.constant dense<0.000000e+00> : vector<8xf32>
    %115 = vector.multi_reduction <add>, %114, %cst_39 [1] : vector<8x8xf32> to vector<8xf32>
    %116 = vector.shape_cast %115 : vector<8xf32> to vector<8x1xf32>
    %117 = tpu.reciprocal %116 {approx = true} : vector<8x1xf32> -> vector<8x1xf32>
    %118 = vector.broadcast %117 : vector<8x1xf32> to vector<8x8xf32>
    %119 = arith.mulf %114, %118 : vector<8x8xf32>
    %120 = arith.truncf %119 : vector<8x8xf32> to vector<8x8xbf16>
    %cst_40 = arith.constant dense<0.000000e+00> : vector<8x8xf32>
    %121 = tpu.matmul %120, %102, %cst_40 {dimension_numbers = #tpu.dot_dimension_numbers<[1], [0], [0], [1], [0, 0, 1, 1], [], []>} : vector<8x8xbf16>, vector<8x8xbf16>, vector<8x8xf32> -> vector<8x8xf32>
    %c0_41 = arith.constant 0 : index
    %c16 = arith.constant 16 : index
    %122 = vector.load %arg16[%c0_41, %c16] : memref<8x32xf32, #tpu.memory_space<vmem>>, vector<8x8xf32>
    tpu.vector_store %arg16[%c0_41, %c16], %121 {strides = array<i32>} : memref<8x32xf32, #tpu.memory_space<vmem>>, vector<8x8xf32>,
    %123 = vector.extract_strided_slice %34 {offsets = [0, 24], sizes = [8, 8], strides = [1, 1]} : vector<8x32xf32> to vector<8x8xf32>
    %124 = vector.broadcast %38 : f32 to vector<8x8xf32>
    %125 = arith.mulf %123, %124 : vector<8x8xf32>
    %126 = arith.truncf %125 : vector<8x8xf32> to vector<8x8xbf16>
    %127 = vector.extract_strided_slice %35 {offsets = [0, 24], sizes = [8, 8], strides = [1, 1]} : vector<8x32xf32> to vector<8x8xf32>
    %128 = arith.truncf %127 : vector<8x8xf32> to vector<8x8xbf16>
    %129 = vector.extract_strided_slice %36 {offsets = [0, 24], sizes = [8, 8], strides = [1, 1]} : vector<8x32xf32> to vector<8x8xf32>
    %130 = arith.truncf %129 : vector<8x8xf32> to vector<8x8xbf16>
    %cst_42 = arith.constant dense<0.000000e+00> : vector<8x8xf32>
    %131 = tpu.matmul %126, %128, %cst_42 {dimension_numbers = #tpu.dot_dimension_numbers<[1], [1], [0], [0], [0, 0, 1, 0], [], []>} : vector<8x8xbf16>, vector<8x8xbf16>, vector<8x8xf32> -> vector<8x8xf32>
    %cst_43 = arith.constant 5.000000e-01 : f32
    %132 = vector.broadcast %cst_43 : f32 to vector<1x8xf32>
    %133 = arith.cmpf ogt, %3, %132 : vector<1x8xf32>
    %cst_44 = arith.constant -9.99999984E+17 : f32
    %134 = vector.shape_cast %133 : vector<1x8xi1> to vector<1x8xi1>
    %135 = vector.broadcast %134 : vector<1x8xi1> to vector<8x8xi1>
    %136 = vector.broadcast %cst_44 : f32 to vector<8x8xf32>
    %137 = arith.select %135, %136, %131 : vector<8x8xi1>, vector<8x8xf32>
    %cst_45 = arith.constant dense<0xFF800000> : vector<8xf32>
    %138 = vector.multi_reduction <maximumf>, %137, %cst_45 [1] : vector<8x8xf32> to vector<8xf32>
    %139 = vector.shape_cast %138 : vector<8xf32> to vector<8x1xf32>
    %140 = vector.broadcast %139 : vector<8x1xf32> to vector<8x8xf32>
    %141 = arith.subf %137, %140 : vector<8x8xf32>
    %142 = math.exp %141 : vector<8x8xf32>
    %cst_46 = arith.constant dense<0.000000e+00> : vector<8xf32>
    %143 = vector.multi_reduction <add>, %142, %cst_46 [1] : vector<8x8xf32> to vector<8xf32>
    %144 = vector.shape_cast %143 : vector<8xf32> to vector<8x1xf32>
    %145 = tpu.reciprocal %144 {approx = true} : vector<8x1xf32> -> vector<8x1xf32>
    %146 = vector.broadcast %145 : vector<8x1xf32> to vector<8x8xf32>
    %147 = arith.mulf %142, %146 : vector<8x8xf32>
    %148 = arith.truncf %147 : vector<8x8xf32> to vector<8x8xbf16>
    %cst_47 = arith.constant dense<0.000000e+00> : vector<8x8xf32>
    %149 = tpu.matmul %148, %130, %cst_47 {dimension_numbers = #tpu.dot_dimension_numbers<[1], [0], [0], [1], [0, 0, 1, 1], [], []>} : vector<8x8xbf16>, vector<8x8xbf16>, vector<8x8xf32> -> vector<8x8xf32>
    %c0_48 = arith.constant 0 : index
    %c24 = arith.constant 24 : index
    %150 = vector.load %arg16[%c0_48, %c24] : memref<8x32xf32, #tpu.memory_space<vmem>>, vector<8x8xf32>
    tpu.vector_store %arg16[%c0_48, %c24], %149 {strides = array<i32>} : memref<8x32xf32, #tpu.memory_space<vmem>>, vector<8x8xf32>,
    %c0_49 = arith.constant 0 : index
    %c0_50 = arith.constant 0 : index
    %151 = vector.load %arg16[%c0_49, %c0_50] : memref<8x32xf32, #tpu.memory_space<vmem>>, vector<8x32xf32>
    %152 = arith.truncf %151 : vector<8x32xf32> to vector<8x32xbf16>
    %c0_51 = arith.constant 0 : index
    %c0_52 = arith.constant 0 : index
    %153 = vector.load %arg7[%c0_51, %c0_52] : memref<32x32xbf16, #tpu.memory_space<vmem>>, vector<32x32xbf16>
    %cst_53 = arith.constant dense<0.000000e+00> : vector<8x32xf32>
    %154 = tpu.matmul %152, %153, %cst_53 {dimension_numbers = #tpu.dot_dimension_numbers<[1], [0], [0], [1], [0, 0, 1, 1], [], []>} : vector<8x32xbf16>, vector<32x32xbf16>, vector<8x32xf32> -> vector<8x32xf32>
    %c0_54 = arith.constant 0 : index
    %c0_55 = arith.constant 0 : index
    %155 = vector.load %arg8[%c0_54, %c0_55] : memref<1x32xf32, #tpu.memory_space<vmem>>, vector<1x32xf32>
    %156 = vector.broadcast %155 : vector<1x32xf32> to vector<8x32xf32>
    %157 = arith.addf %154, %156 : vector<8x32xf32>
    %158 = arith.addf %157, %1 : vector<8x32xf32>
    %cst_56 = arith.constant dense<0.000000e+00> : vector<8xf32>
    %159 = vector.multi_reduction <add>, %158, %cst_56 [1] : vector<8x32xf32> to vector<8xf32>
    %160 = vector.shape_cast %159 : vector<8xf32> to vector<8x1xf32>
    %cst_57 = arith.constant 3.200000e+01 : f32
    %161 = vector.broadcast %cst_57 : f32 to vector<8x1xf32>
    %162 = arith.divf %160, %161 : vector<8x1xf32>
    %163 = vector.broadcast %162 : vector<8x1xf32> to vector<8x32xf32>
    %164 = arith.subf %158, %163 : vector<8x32xf32>
    %165 = arith.mulf %164, %164 : vector<8x32xf32>
    %cst_58 = arith.constant dense<0.000000e+00> : vector<8xf32>
    %166 = vector.multi_reduction <add>, %165, %cst_58 [1] : vector<8x32xf32> to vector<8xf32>
    %167 = vector.shape_cast %166 : vector<8xf32> to vector<8x1xf32>
    %cst_59 = arith.constant 3.200000e+01 : f32
    %168 = vector.broadcast %cst_59 : f32 to vector<8x1xf32>
    %169 = arith.divf %167, %168 : vector<8x1xf32>
    %170 = vector.broadcast %162 : vector<8x1xf32> to vector<8x32xf32>
    %171 = arith.subf %158, %170 : vector<8x32xf32>
    %cst_60 = arith.constant 9.99999997E-7 : f32
    %172 = vector.broadcast %cst_60 : f32 to vector<8x1xf32>
    %173 = arith.addf %169, %172 : vector<8x1xf32>
    %174 = math.rsqrt %173 : vector<8x1xf32>
    %175 = vector.broadcast %174 : vector<8x1xf32> to vector<8x32xf32>
    %176 = arith.mulf %171, %175 : vector<8x32xf32>
    %c0_61 = arith.constant 0 : index
    %c0_62 = arith.constant 0 : index
    %177 = vector.load %arg9[%c0_61, %c0_62] : memref<1x32xf32, #tpu.memory_space<vmem>>, vector<1x32xf32>
    %178 = vector.broadcast %177 : vector<1x32xf32> to vector<8x32xf32>
    %179 = arith.mulf %176, %178 : vector<8x32xf32>
    %c0_63 = arith.constant 0 : index
    %c0_64 = arith.constant 0 : index
    %180 = vector.load %arg10[%c0_63, %c0_64] : memref<1x32xf32, #tpu.memory_space<vmem>>, vector<1x32xf32>
    %181 = vector.broadcast %180 : vector<1x32xf32> to vector<8x32xf32>
    %182 = arith.addf %179, %181 : vector<8x32xf32>
    %183 = arith.truncf %182 : vector<8x32xf32> to vector<8x32xbf16>
    %cst_65 = arith.constant 0.000000e+00 : f32
    %184 = vector.broadcast %cst_65 : f32 to vector<8x32xf32>
    %c0_66 = arith.constant 0 : index
    %c0_67 = arith.constant 0 : index
    %185 = vector.load %arg11[%c0_66, %c0_67] : memref<32x64xbf16, #tpu.memory_space<vmem>>, vector<32x64xbf16>
    %cst_68 = arith.constant dense<0.000000e+00> : vector<8x64xf32>
    %186 = tpu.matmul %183, %185, %cst_68 {dimension_numbers = #tpu.dot_dimension_numbers<[1], [0], [0], [1], [0, 0, 1, 1], [], []>} : vector<8x32xbf16>, vector<32x64xbf16>, vector<8x64xf32> -> vector<8x64xf32>
    %c0_69 = arith.constant 0 : index
    %c0_70 = arith.constant 0 : index
    %187 = vector.load %arg12[%c0_69, %c0_70] : memref<1x64xf32, #tpu.memory_space<vmem>>, vector<1x64xf32>
    %188 = vector.broadcast %187 : vector<1x64xf32> to vector<8x64xf32>
    %189 = arith.addf %186, %188 : vector<8x64xf32>
    %cst_71 = arith.constant 0.000000e+00 : f32
    %190 = vector.broadcast %cst_71 : f32 to vector<8x64xf32>
    %191 = arith.maximumf %189, %190 : vector<8x64xf32>
    %192 = arith.truncf %191 : vector<8x64xf32> to vector<8x64xbf16>
    %c0_72 = arith.constant 0 : index
    %c0_73 = arith.constant 0 : index
    %193 = vector.load %arg13[%c0_72, %c0_73] : memref<64x32xbf16, #tpu.memory_space<vmem>>, vector<64x32xbf16>
    %cst_74 = arith.constant dense<0.000000e+00> : vector<8x32xf32>
    %194 = tpu.matmul %192, %193, %cst_74 {dimension_numbers = #tpu.dot_dimension_numbers<[1], [0], [0], [1], [0, 0, 1, 1], [], []>} : vector<8x64xbf16>, vector<64x32xbf16>, vector<8x32xf32> -> vector<8x32xf32>
    %195 = arith.addf %184, %194 : vector<8x32xf32>
    %c0_75 = arith.constant 0 : index
    %c0_76 = arith.constant 0 : index
    %196 = vector.load %arg14[%c0_75, %c0_76] : memref<1x32xf32, #tpu.memory_space<vmem>>, vector<1x32xf32>
    %197 = vector.broadcast %196 : vector<1x32xf32> to vector<8x32xf32>
    %198 = arith.addf %195, %197 : vector<8x32xf32>
    %199 = arith.addf %198, %158 : vector<8x32xf32>
    %c0_77 = arith.constant 0 : index
    %c0_78 = arith.constant 0 : index
    %c0_79 = arith.constant 0 : index
    %200 = vector.load %arg15[%c0_77, %c0_78, %c0_79] : memref<1x8x32xf32, #tpu.memory_space<vmem>>, vector<1x8x32xf32>
    %201 = vector.shape_cast %200 : vector<1x8x32xf32> to vector<8x32xf32>
    %202 = vector.shape_cast %199 : vector<8x32xf32> to vector<1x8x32xf32>
    tpu.vector_store %arg15[%c0_77, %c0_78, %c0_79], %202 {strides = array<i32>} : memref<1x8x32xf32, #tpu.memory_space<vmem>>, vector<1x8x32xf32>,
    return
  }
  func.func @transform_0(%arg0: i32) -> (i32, i32, i32) {
    %c0_i32 = arith.constant 0 : i32
    %c0_i32_0 = arith.constant 0 : i32
    %c0_i32_1 = arith.constant 0 : i32
    return %arg0, %c0_i32, %c0_i32_0 : i32, i32, i32
  }
  func.func @transform_1(%arg0: i32) -> (i32, i32, i32) {
    %c0_i32 = arith.constant 0 : i32
    %c0_i32_0 = arith.constant 0 : i32
    %c0_i32_1 = arith.constant 0 : i32
    return %arg0, %c0_i32, %c0_i32_0 : i32, i32, i32
  }
  func.func @transform_2(%arg0: i32) -> (i32, i32) {
    %c0_i32 = arith.constant 0 : i32
    %c0_i32_0 = arith.constant 0 : i32
    %c0_i32_1 = arith.constant 0 : i32
    return %c0_i32, %c0_i32_0 : i32, i32
  }
  func.func @transform_3(%arg0: i32) -> (i32, i32) {
    %c0_i32 = arith.constant 0 : i32
    %c0_i32_0 = arith.constant 0 : i32
    %c0_i32_1 = arith.constant 0 : i32
    return %c0_i32, %c0_i32_0 : i32, i32
  }
  func.func @transform_4(%arg0: i32) -> (i32, i32) {
    %c0_i32 = arith.constant 0 : i32
    %c0_i32_0 = arith.constant 0 : i32
    %c0_i32_1 = arith.constant 0 : i32
    return %c0_i32, %c0_i32_0 : i32, i32
  }
  func.func @transform_5(%arg0: i32) -> (i32, i32) {
    %c0_i32 = arith.constant 0 : i32
    %c0_i32_0 = arith.constant 0 : i32
    %c0_i32_1 = arith.constant 0 : i32
    return %c0_i32, %c0_i32_0 : i32, i32
  }
  func.func @transform_6(%arg0: i32) -> (i32, i32) {
    %c0_i32 = arith.constant 0 : i32
    %c0_i32_0 = arith.constant 0 : i32
    %c0_i32_1 = arith.constant 0 : i32
    return %c0_i32, %c0_i32_0 : i32, i32
  }
  func.func @transform_7(%arg0: i32) -> (i32, i32) {
    %c0_i32 = arith.constant 0 : i32
    %c0_i32_0 = arith.constant 0 : i32
    %c0_i32_1 = arith.constant 0 : i32
    return %c0_i32, %c0_i32_0 : i32, i32
  }
  func.func @transform_8(%arg0: i32) -> (i32, i32) {
    %c0_i32 = arith.constant 0 : i32
    %c0_i32_0 = arith.constant 0 : i32
    %c0_i32_1 = arith.constant 0 : i32
    return %c0_i32, %c0_i32_0 : i32, i32
  }
  func.func @transform_9(%arg0: i32) -> (i32, i32) {
    %c0_i32 = arith.constant 0 : i32
    %c0_i32_0 = arith.constant 0 : i32
    %c0_i32_1 = arith.constant 0 : i32
    return %c0_i32, %c0_i32_0 : i32, i32
  }
  func.func @transform_10(%arg0: i32) -> (i32, i32) {
    %c0_i32 = arith.constant 0 : i32
    %c0_i32_0 = arith.constant 0 : i32
    %c0_i32_1 = arith.constant 0 : i32
    return %c0_i32, %c0_i32_0 : i32, i32
  }
  func.func @transform_11(%arg0: i32) -> (i32, i32) {
    %c0_i32 = arith.constant 0 : i32
    %c0_i32_0 = arith.constant 0 : i32
    %c0_i32_1 = arith.constant 0 : i32
    return %c0_i32, %c0_i32_0 : i32, i32
  }
  func.func @transform_12(%arg0: i32) -> (i32, i32) {
    %c0_i32 = arith.constant 0 : i32
    %c0_i32_0 = arith.constant 0 : i32
    %c0_i32_1 = arith.constant 0 : i32
    return %c0_i32, %c0_i32_0 : i32, i32
  }
  func.func @transform_13(%arg0: i32) -> (i32, i32) {
    %c0_i32 = arith.constant 0 : i32
    %c0_i32_0 = arith.constant 0 : i32
    %c0_i32_1 = arith.constant 0 : i32
    return %c0_i32, %c0_i32_0 : i32, i32
  }
  func.func @transform_14(%arg0: i32) -> (i32, i32, i32) {
    %c0_i32 = arith.constant 0 : i32
    %c0_i32_0 = arith.constant 0 : i32
    %c0_i32_1 = arith.constant 0 : i32
    return %arg0, %c0_i32, %c0_i32_0 : i32, i32, i32
  }
}

module attributes {stable_mosaic.version = 11 : i64} {
  func.func @encoder_layer_kernel(%arg0: i32, %arg1: memref<1x8x32xf32, #tpu.memory_space<vmem>>, %arg2: memref<1x1x8xf32, #tpu.memory_space<vmem>>, %arg3: memref<1x32xf32, #tpu.memory_space<vmem>>, %arg4: memref<1x32xf32, #tpu.memory_space<vmem>>, %arg5: memref<32x96xbf16, #tpu.memory_space<vmem>>, %arg6: memref<1x96xf32, #tpu.memory_space<vmem>>, %arg7: memref<32x32xbf16, #tpu.memory_space<vmem>>, %arg8: memref<1x32xf32, #tpu.memory_space<vmem>>, %arg9: memref<1x32xf32, #tpu.memory_space<vmem>>, %arg10: memref<1x32xf32, #tpu.memory_space<vmem>>, %arg11: memref<32x64xbf16, #tpu.memory_space<vmem>>, %arg12: memref<1x64xf32, #tpu.memory_space<vmem>>, %arg13: memref<64x32xbf16, #tpu.memory_space<vmem>>, %arg14: memref<1x32xf32, #tpu.memory_space<vmem>>, %arg15: memref<1x8x32xf32, #tpu.memory_space<vmem>>, %arg16: memref<8x32xf32, #tpu.memory_space<vmem>>) attributes {dimension_semantics = [#tpu.dimension_semantics<parallel>], iteration_bounds = array<i64: 2>, scalar_prefetch = 0 : i64, scratch_operands = 1 : i64, tpu.core_type = #tpu.core_type<tc>, window_params = [{transform_indices = @transform_0, window_bounds = array<i64: 1, 8, 32>}, {transform_indices = @transform_1, window_bounds = array<i64: 1, 1, 8>}, {pipeline_mode = #tpu.pipeline_mode<synchronous>, transform_indices = @transform_2, window_bounds = array<i64: 1, 32>}, {pipeline_mode = #tpu.pipeline_mode<synchronous>, transform_indices = @transform_3, window_bounds = array<i64: 1, 32>}, {pipeline_mode = #tpu.pipeline_mode<synchronous>, transform_indices = @transform_4, window_bounds = array<i64: 32, 96>}, {pipeline_mode = #tpu.pipeline_mode<synchronous>, transform_indices = @transform_5, window_bounds = array<i64: 1, 96>}, {pipeline_mode = #tpu.pipeline_mode<synchronous>, transform_indices = @transform_6, window_bounds = array<i64: 32, 32>}, {pipeline_mode = #tpu.pipeline_mode<synchronous>, transform_indices = @transform_7, window_bounds = array<i64: 1, 32>}, {pipeline_mode = #tpu.pipeline_mode<synchronous>, transform_indices = @transform_8, window_bounds = array<i64: 1, 32>}, {pipeline_mode = #tpu.pipeline_mode<synchronous>, transform_indices = @transform_9, window_bounds = array<i64: 1, 32>}, {pipeline_mode = #tpu.pipeline_mode<synchronous>, transform_indices = @transform_10, window_bounds = array<i64: 32, 64>}, {pipeline_mode = #tpu.pipeline_mode<synchronous>, transform_indices = @transform_11, window_bounds = array<i64: 1, 64>}, {pipeline_mode = #tpu.pipeline_mode<synchronous>, transform_indices = @transform_12, window_bounds = array<i64: 64, 32>}, {pipeline_mode = #tpu.pipeline_mode<synchronous>, transform_indices = @transform_13, window_bounds = array<i64: 1, 32>}, {transform_indices = @transform_14, window_bounds = array<i64: 1, 8, 32>}]} {
    %c0 = arith.constant 0 : index
    %c0_0 = arith.constant 0 : index
    %c0_1 = arith.constant 0 : index
    %0 = vector.load %arg1[%c0, %c0_0, %c0_1] : memref<1x8x32xf32, #tpu.memory_space<vmem>>, vector<1x8x32xf32>
    %1 = vector.shape_cast %0 : vector<1x8x32xf32> to vector<8x32xf32>
    %c0_2 = arith.constant 0 : index
    %c0_3 = arith.constant 0 : index
    %c0_4 = arith.constant 0 : index
    %2 = vector.load %arg2[%c0_2, %c0_3, %c0_4] : memref<1x1x8xf32, #tpu.memory_space<vmem>>, vector<1x1x8xf32>
    %3 = vector.shape_cast %2 : vector<1x1x8xf32> to vector<1x8xf32>
    %cst = arith.constant dense<0.000000e+00> : vector<8xf32>
    %4 = vector.multi_reduction <add>, %1, %cst [1] : vector<8x32xf32> to vector<8xf32>
    %5 = vector.shape_cast %4 : vector<8xf32> to vector<8x1xf32>
    %cst_5 = arith.constant 3.200000e+01 : f32
    %6 = vector.broadcast %cst_5 : f32 to vector<8x1xf32>
    %7 = arith.divf %5, %6 : vector<8x1xf32>
    %8 = vector.broadcast %7 : vector<8x1xf32> to vector<8x32xf32>
    %9 = arith.subf %1, %8 : vector<8x32xf32>
    %10 = arith.mulf %9, %9 : vector<8x32xf32>
    %cst_6 = arith.constant dense<0.000000e+00> : vector<8xf32>
    %11 = vector.multi_reduction <add>, %10, %cst_6 [1] : vector<8x32xf32> to vector<8xf32>
    %12 = vector.shape_cast %11 : vector<8xf32> to vector<8x1xf32>
    %cst_7 = arith.constant 3.200000e+01 : f32
    %13 = vector.broadcast %cst_7 : f32 to vector<8x1xf32>
    %14 = arith.divf %12, %13 : vector<8x1xf32>
    %15 = vector.broadcast %7 : vector<8x1xf32> to vector<8x32xf32>
    %16 = arith.subf %1, %15 : vector<8x32xf32>
    %cst_8 = arith.constant 9.99999997E-7 : f32
    %17 = vector.broadcast %cst_8 : f32 to vector<8x1xf32>
    %18 = arith.addf %14, %17 : vector<8x1xf32>
    %19 = math.rsqrt %18 : vector<8x1xf32>
    %20 = vector.broadcast %19 : vector<8x1xf32> to vector<8x32xf32>
    %21 = arith.mulf %16, %20 : vector<8x32xf32>
    %c0_9 = arith.constant 0 : index
    %c0_10 = arith.constant 0 : index
    %22 = vector.load %arg3[%c0_9, %c0_10] : memref<1x32xf32, #tpu.memory_space<vmem>>, vector<1x32xf32>
    %23 = vector.broadcast %22 : vector<1x32xf32> to vector<8x32xf32>
    %24 = arith.mulf %21, %23 : vector<8x32xf32>
    %c0_11 = arith.constant 0 : index
    %c0_12 = arith.constant 0 : index
    %25 = vector.load %arg4[%c0_11, %c0_12] : memref<1x32xf32, #tpu.memory_space<vmem>>, vector<1x32xf32>
    %26 = vector.broadcast %25 : vector<1x32xf32> to vector<8x32xf32>
    %27 = arith.addf %24, %26 : vector<8x32xf32>
    %28 = arith.truncf %27 : vector<8x32xf32> to vector<8x32xbf16>
    %c0_13 = arith.constant 0 : index
    %c0_14 = arith.constant 0 : index
    %29 = vector.load %arg5[%c0_13, %c0_14] : memref<32x96xbf16, #tpu.memory_space<vmem>>, vector<32x96xbf16>
    %cst_15 = arith.constant dense<0.000000e+00> : vector<8x96xf32>
    %30 = tpu.matmul %28, %29, %cst_15 {dimension_numbers = #tpu.dot_dimension_numbers<[1], [0], [0], [1], [0, 0, 1, 1], [], []>} : vector<8x32xbf16>, vector<32x96xbf16>, vector<8x96xf32> -> vector<8x96xf32>
    %c0_16 = arith.constant 0 : index
    %c0_17 = arith.constant 0 : index
    %31 = vector.load %arg6[%c0_16, %c0_17] : memref<1x96xf32, #tpu.memory_space<vmem>>, vector<1x96xf32>
    %32 = vector.broadcast %31 : vector<1x96xf32> to vector<8x96xf32>
    %33 = arith.addf %30, %32 : vector<8x96xf32>
    %34 = vector.extract_strided_slice %33 {offsets = [0, 0], sizes = [8, 32], strides = [1, 1]} : vector<8x96xf32> to vector<8x32xf32>
    %35 = vector.extract_strided_slice %33 {offsets = [0, 32], sizes = [8, 32], strides = [1, 1]} : vector<8x96xf32> to vector<8x32xf32>
    %36 = vector.extract_strided_slice %33 {offsets = [0, 64], sizes = [8, 32], strides = [1, 1]} : vector<8x96xf32> to vector<8x32xf32>
    %cst_18 = arith.constant 8.000000e+00 : f32
    %37 = math.sqrt %cst_18 : f32
    %cst_19 = arith.constant 1.000000e+00 : f32
    %38 = arith.divf %cst_19, %37 : f32
    %39 = vector.extract_strided_slice %34 {offsets = [0, 0], sizes = [8, 8], strides = [1, 1]} : vector<8x32xf32> to vector<8x8xf32>
    %40 = vector.broadcast %38 : f32 to vector<8x8xf32>
    %41 = arith.mulf %39, %40 : vector<8x8xf32>
    %42 = arith.truncf %41 : vector<8x8xf32> to vector<8x8xbf16>
    %43 = vector.extract_strided_slice %35 {offsets = [0, 0], sizes = [8, 8], strides = [1, 1]} : vector<8x32xf32> to vector<8x8xf32>
    %44 = arith.truncf %43 : vector<8x8xf32> to vector<8x8xbf16>
    %45 = vector.extract_strided_slice %36 {offsets = [0, 0], sizes = [8, 8], strides = [1, 1]} : vector<8x32xf32> to vector<8x8xf32>
    %46 = arith.truncf %45 : vector<8x8xf32> to vector<8x8xbf16>
    %cst_20 = arith.constant dense<0.000000e+00> : vector<8x8xf32>
    %47 = tpu.matmul %42, %44, %cst_20 {dimension_numbers = #tpu.dot_dimension_numbers<[1], [1], [0], [0], [0, 0, 1, 0], [], []>} : vector<8x8xbf16>, vector<8x8xbf16>, vector<8x8xf32> -> vector<8x8xf32>
    %cst_21 = arith.constant 5.000000e-01 : f32
    %48 = vector.broadcast %cst_21 : f32 to vector<1x8xf32>
    %49 = arith.cmpf ogt, %3, %48 : vector<1x8xf32>
    %cst_22 = arith.constant -9.99999984E+17 : f32
    %50 = vector.shape_cast %49 : vector<1x8xi1> to vector<1x8xi1>
    %51 = vector.broadcast %50 : vector<1x8xi1> to vector<8x8xi1>
    %52 = vector.broadcast %cst_22 : f32 to vector<8x8xf32>
    %53 = arith.select %51, %52, %47 : vector<8x8xi1>, vector<8x8xf32>
    %cst_23 = arith.constant dense<0xFF800000> : vector<8xf32>
    %54 = vector.multi_reduction <maximumf>, %53, %cst_23 [1] : vector<8x8xf32> to vector<8xf32>
    %55 = vector.shape_cast %54 : vector<8xf32> to vector<8x1xf32>
    %56 = vector.broadcast %55 : vector<8x1xf32> to vector<8x8xf32>
    %57 = arith.subf %53, %56 : vector<8x8xf32>
    %58 = math.exp %57 : vector<8x8xf32>
    %cst_24 = arith.constant dense<0.000000e+00> : vector<8xf32>
    %59 = vector.multi_reduction <add>, %58, %cst_24 [1] : vector<8x8xf32> to vector<8xf32>
    %60 = vector.shape_cast %59 : vector<8xf32> to vector<8x1xf32>
    %61 = tpu.reciprocal %60 {approx = true} : vector<8x1xf32> -> vector<8x1xf32>
    %62 = vector.broadcast %61 : vector<8x1xf32> to vector<8x8xf32>
    %63 = arith.mulf %58, %62 : vector<8x8xf32>
    %64 = arith.truncf %63 : vector<8x8xf32> to vector<8x8xbf16>
    %cst_25 = arith.constant dense<0.000000e+00> : vector<8x8xf32>
    %65 = tpu.matmul %64, %46, %cst_25 {dimension_numbers = #tpu.dot_dimension_numbers<[1], [0], [0], [1], [0, 0, 1, 1], [], []>} : vector<8x8xbf16>, vector<8x8xbf16>, vector<8x8xf32> -> vector<8x8xf32>
    %c0_26 = arith.constant 0 : index
    %c0_27 = arith.constant 0 : index
    %66 = vector.load %arg16[%c0_26, %c0_27] : memref<8x32xf32, #tpu.memory_space<vmem>>, vector<8x8xf32>
    tpu.vector_store %arg16[%c0_26, %c0_27], %65 {strides = array<i32>} : memref<8x32xf32, #tpu.memory_space<vmem>>, vector<8x8xf32>,
    %67 = vector.extract_strided_slice %34 {offsets = [0, 8], sizes = [8, 8], strides = [1, 1]} : vector<8x32xf32> to vector<8x8xf32>
    %68 = vector.broadcast %38 : f32 to vector<8x8xf32>
    %69 = arith.mulf %67, %68 : vector<8x8xf32>
    %70 = arith.truncf %69 : vector<8x8xf32> to vector<8x8xbf16>
    %71 = vector.extract_strided_slice %35 {offsets = [0, 8], sizes = [8, 8], strides = [1, 1]} : vector<8x32xf32> to vector<8x8xf32>
    %72 = arith.truncf %71 : vector<8x8xf32> to vector<8x8xbf16>
    %73 = vector.extract_strided_slice %36 {offsets = [0, 8], sizes = [8, 8], strides = [1, 1]} : vector<8x32xf32> to vector<8x8xf32>
    %74 = arith.truncf %73 : vector<8x8xf32> to vector<8x8xbf16>
    %cst_28 = arith.constant dense<0.000000e+00> : vector<8x8xf32>
    %75 = tpu.matmul %70, %72, %cst_28 {dimension_numbers = #tpu.dot_dimension_numbers<[1], [1], [0], [0], [0, 0, 1, 0], [], []>} : vector<8x8xbf16>, vector<8x8xbf16>, vector<8x8xf32> -> vector<8x8xf32>
    %cst_29 = arith.constant 5.000000e-01 : f32
    %76 = vector.broadcast %cst_29 : f32 to vector<1x8xf32>
    %77 = arith.cmpf ogt, %3, %76 : vector<1x8xf32>
    %cst_30 = arith.constant -9.99999984E+17 : f32
    %78 = vector.shape_cast %77 : vector<1x8xi1> to vector<1x8xi1>
    %79 = vector.broadcast %78 : vector<1x8xi1> to vector<8x8xi1>
    %80 = vector.broadcast %cst_30 : f32 to vector<8x8xf32>
    %81 = arith.select %79, %80, %75 : vector<8x8xi1>, vector<8x8xf32>
    %cst_31 = arith.constant dense<0xFF800000> : vector<8xf32>
    %82 = vector.multi_reduction <maximumf>, %81, %cst_31 [1] : vector<8x8xf32> to vector<8xf32>
    %83 = vector.shape_cast %82 : vector<8xf32> to vector<8x1xf32>
    %84 = vector.broadcast %83 : vector<8x1xf32> to vector<8x8xf32>
    %85 = arith.subf %81, %84 : vector<8x8xf32>
    %86 = math.exp %85 : vector<8x8xf32>
    %cst_32 = arith.constant dense<0.000000e+00> : vector<8xf32>
    %87 = vector.multi_reduction <add>, %86, %cst_32 [1] : vector<8x8xf32> to vector<8xf32>
    %88 = vector.shape_cast %87 : vector<8xf32> to vector<8x1xf32>
    %89 = tpu.reciprocal %88 {approx = true} : vector<8x1xf32> -> vector<8x1xf32>
    %90 = vector.broadcast %89 : vector<8x1xf32> to vector<8x8xf32>
    %91 = arith.mulf %86, %90 : vector<8x8xf32>
    %92 = arith.truncf %91 : vector<8x8xf32> to vector<8x8xbf16>
    %cst_33 = arith.constant dense<0.000000e+00> : vector<8x8xf32>
    %93 = tpu.matmul %92, %74, %cst_33 {dimension_numbers = #tpu.dot_dimension_numbers<[1], [0], [0], [1], [0, 0, 1, 1], [], []>} : vector<8x8xbf16>, vector<8x8xbf16>, vector<8x8xf32> -> vector<8x8xf32>
    %c0_34 = arith.constant 0 : index
    %c8 = arith.constant 8 : index
    %94 = vector.load %arg16[%c0_34, %c8] : memref<8x32xf32, #tpu.memory_space<vmem>>, vector<8x8xf32>
    tpu.vector_store %arg16[%c0_34, %c8], %93 {strides = array<i32>} : memref<8x32xf32, #tpu.memory_space<vmem>>, vector<8x8xf32>,
    %95 = vector.extract_strided_slice %34 {offsets = [0, 16], sizes = [8, 8], strides = [1, 1]} : vector<8x32xf32> to vector<8x8xf32>
    %96 = vector.broadcast %38 : f32 to vector<8x8xf32>
    %97 = arith.mulf %95, %96 : vector<8x8xf32>
    %98 = arith.truncf %97 : vector<8x8xf32> to vector<8x8xbf16>
    %99 = vector.extract_strided_slice %35 {offsets = [0, 16], sizes = [8, 8], strides = [1, 1]} : vector<8x32xf32> to vector<8x8xf32>
    %100 = arith.truncf %99 : vector<8x8xf32> to vector<8x8xbf16>
    %101 = vector.extract_strided_slice %36 {offsets = [0, 16], sizes = [8, 8], strides = [1, 1]} : vector<8x32xf32> to vector<8x8xf32>
    %102 = arith.truncf %101 : vector<8x8xf32> to vector<8x8xbf16>
    %cst_35 = arith.constant dense<0.000000e+00> : vector<8x8xf32>
    %103 = tpu.matmul %98, %100, %cst_35 {dimension_numbers = #tpu.dot_dimension_numbers<[1], [1], [0], [0], [0, 0, 1, 0], [], []>} : vector<8x8xbf16>, vector<8x8xbf16>, vector<8x8xf32> -> vector<8x8xf32>
    %cst_36 = arith.constant 5.000000e-01 : f32
    %104 = vector.broadcast %cst_36 : f32 to vector<1x8xf32>
    %105 = arith.cmpf ogt, %3, %104 : vector<1x8xf32>
    %cst_37 = arith.constant -9.99999984E+17 : f32
    %106 = vector.shape_cast %105 : vector<1x8xi1> to vector<1x8xi1>
    %107 = vector.broadcast %106 : vector<1x8xi1> to vector<8x8xi1>
    %108 = vector.broadcast %cst_37 : f32 to vector<8x8xf32>
    %109 = arith.select %107, %108, %103 : vector<8x8xi1>, vector<8x8xf32>
    %cst_38 = arith.constant dense<0xFF800000> : vector<8xf32>
    %110 = vector.multi_reduction <maximumf>, %109, %cst_38 [1] : vector<8x8xf32> to vector<8xf32>
    %111 = vector.shape_cast %110 : vector<8xf32> to vector<8x1xf32>
    %112 = vector.broadcast %111 : vector<8x1xf32> to vector<8x8xf32>
    %113 = arith.subf %109, %112 : vector<8x8xf32>
    %114 = math.exp %113 : vector<8x8xf32>
    %cst_39 = arith.constant dense<0.000000e+00> : vector<8xf32>
    %115 = vector.multi_reduction <add>, %114, %cst_39 [1] : vector<8x8xf32> to vector<8xf32>
    %116 = vector.shape_cast %115 : vector<8xf32> to vector<8x1xf32>
    %117 = tpu.reciprocal %116 {approx = true} : vector<8x1xf32> -> vector<8x1xf32>
    %118 = vector.broadcast %117 : vector<8x1xf32> to vector<8x8xf32>
    %119 = arith.mulf %114, %118 : vector<8x8xf32>
    %120 = arith.truncf %119 : vector<8x8xf32> to vector<8x8xbf16>
    %cst_40 = arith.constant dense<0.000000e+00> : vector<8x8xf32>
    %121 = tpu.matmul %120, %102, %cst_40 {dimension_numbers = #tpu.dot_dimension_numbers<[1], [0], [0], [1], [0, 0, 1, 1], [], []>} : vector<8x8xbf16>, vector<8x8xbf16>, vector<8x8xf32> -> vector<8x8xf32>
    %c0_41 = arith.constant 0 : index
    %c16 = arith.constant 16 : index
    %122 = vector.load %arg16[%c0_41, %c16] : memref<8x32xf32, #tpu.memory_space<vmem>>, vector<8x8xf32>
    tpu.vector_store %arg16[%c0_41, %c16], %121 {strides = array<i32>} : memref<8x32xf32, #tpu.memory_space<vmem>>, vector<8x8xf32>,
    %123 = vector.extract_strided_slice %34 {offsets = [0, 24], sizes = [8, 8], strides = [1, 1]} : vector<8x32xf32> to vector<8x8xf32>
    %124 = vector.broadcast %38 : f32 to vector<8x8xf32>
    %125 = arith.mulf %123, %124 : vector<8x8xf32>
    %126 = arith.truncf %125 : vector<8x8xf32> to vector<8x8xbf16>
    %127 = vector.extract_strided_slice %35 {offsets = [0, 24], sizes = [8, 8], strides = [1, 1]} : vector<8x32xf32> to vector<8x8xf32>
    %128 = arith.truncf %127 : vector<8x8xf32> to vector<8x8xbf16>
    %129 = vector.extract_strided_slice %36 {offsets = [0, 24], sizes = [8, 8], strides = [1, 1]} : vector<8x32xf32> to vector<8x8xf32>
    %130 = arith.truncf %129 : vector<8x8xf32> to vector<8x8xbf16>
    %cst_42 = arith.constant dense<0.000000e+00> : vector<8x8xf32>
    %131 = tpu.matmul %126, %128, %cst_42 {dimension_numbers = #tpu.dot_dimension_numbers<[1], [1], [0], [0], [0, 0, 1, 0], [], []>} : vector<8x8xbf16>, vector<8x8xbf16>, vector<8x8xf32> -> vector<8x8xf32>
    %cst_43 = arith.constant 5.000000e-01 : f32
    %132 = vector.broadcast %cst_43 : f32 to vector<1x8xf32>
    %133 = arith.cmpf ogt, %3, %132 : vector<1x8xf32>
    %cst_44 = arith.constant -9.99999984E+17 : f32
    %134 = vector.shape_cast %133 : vector<1x8xi1> to vector<1x8xi1>
    %135 = vector.broadcast %134 : vector<1x8xi1> to vector<8x8xi1>
    %136 = vector.broadcast %cst_44 : f32 to vector<8x8xf32>
    %137 = arith.select %135, %136, %131 : vector<8x8xi1>, vector<8x8xf32>
    %cst_45 = arith.constant dense<0xFF800000> : vector<8xf32>
    %138 = vector.multi_reduction <maximumf>, %137, %cst_45 [1] : vector<8x8xf32> to vector<8xf32>
    %139 = vector.shape_cast %138 : vector<8xf32> to vector<8x1xf32>
    %140 = vector.broadcast %139 : vector<8x1xf32> to vector<8x8xf32>
    %141 = arith.subf %137, %140 : vector<8x8xf32>
    %142 = math.exp %141 : vector<8x8xf32>
    %cst_46 = arith.constant dense<0.000000e+00> : vector<8xf32>
    %143 = vector.multi_reduction <add>, %142, %cst_46 [1] : vector<8x8xf32> to vector<8xf32>
    %144 = vector.shape_cast %143 : vector<8xf32> to vector<8x1xf32>
    %145 = tpu.reciprocal %144 {approx = true} : vector<8x1xf32> -> vector<8x1xf32>
    %146 = vector.broadcast %145 : vector<8x1xf32> to vector<8x8xf32>
    %147 = arith.mulf %142, %146 : vector<8x8xf32>
    %148 = arith.truncf %147 : vector<8x8xf32> to vector<8x8xbf16>
    %cst_47 = arith.constant dense<0.000000e+00> : vector<8x8xf32>
    %149 = tpu.matmul %148, %130, %cst_47 {dimension_numbers = #tpu.dot_dimension_numbers<[1], [0], [0], [1], [0, 0, 1, 1], [], []>} : vector<8x8xbf16>, vector<8x8xbf16>, vector<8x8xf32> -> vector<8x8xf32>
    %c0_48 = arith.constant 0 : index
    %c24 = arith.constant 24 : index
    %150 = vector.load %arg16[%c0_48, %c24] : memref<8x32xf32, #tpu.memory_space<vmem>>, vector<8x8xf32>
    tpu.vector_store %arg16[%c0_48, %c24], %149 {strides = array<i32>} : memref<8x32xf32, #tpu.memory_space<vmem>>, vector<8x8xf32>,
    %c0_49 = arith.constant 0 : index
    %c0_50 = arith.constant 0 : index
    %151 = vector.load %arg16[%c0_49, %c0_50] : memref<8x32xf32, #tpu.memory_space<vmem>>, vector<8x32xf32>
    %152 = arith.truncf %151 : vector<8x32xf32> to vector<8x32xbf16>
    %c0_51 = arith.constant 0 : index
    %c0_52 = arith.constant 0 : index
    %153 = vector.load %arg7[%c0_51, %c0_52] : memref<32x32xbf16, #tpu.memory_space<vmem>>, vector<32x32xbf16>
    %cst_53 = arith.constant dense<0.000000e+00> : vector<8x32xf32>
    %154 = tpu.matmul %152, %153, %cst_53 {dimension_numbers = #tpu.dot_dimension_numbers<[1], [0], [0], [1], [0, 0, 1, 1], [], []>} : vector<8x32xbf16>, vector<32x32xbf16>, vector<8x32xf32> -> vector<8x32xf32>
    %c0_54 = arith.constant 0 : index
    %c0_55 = arith.constant 0 : index
    %155 = vector.load %arg8[%c0_54, %c0_55] : memref<1x32xf32, #tpu.memory_space<vmem>>, vector<1x32xf32>
    %156 = vector.broadcast %155 : vector<1x32xf32> to vector<8x32xf32>
    %157 = arith.addf %154, %156 : vector<8x32xf32>
    %158 = arith.addf %157, %1 : vector<8x32xf32>
    %cst_56 = arith.constant dense<0.000000e+00> : vector<8xf32>
    %159 = vector.multi_reduction <add>, %158, %cst_56 [1] : vector<8x32xf32> to vector<8xf32>
    %160 = vector.shape_cast %159 : vector<8xf32> to vector<8x1xf32>
    %cst_57 = arith.constant 3.200000e+01 : f32
    %161 = vector.broadcast %cst_57 : f32 to vector<8x1xf32>
    %162 = arith.divf %160, %161 : vector<8x1xf32>
    %163 = vector.broadcast %162 : vector<8x1xf32> to vector<8x32xf32>
    %164 = arith.subf %158, %163 : vector<8x32xf32>
    %165 = arith.mulf %164, %164 : vector<8x32xf32>
    %cst_58 = arith.constant dense<0.000000e+00> : vector<8xf32>
    %166 = vector.multi_reduction <add>, %165, %cst_58 [1] : vector<8x32xf32> to vector<8xf32>
    %167 = vector.shape_cast %166 : vector<8xf32> to vector<8x1xf32>
    %cst_59 = arith.constant 3.200000e+01 : f32
    %168 = vector.broadcast %cst_59 : f32 to vector<8x1xf32>
    %169 = arith.divf %167, %168 : vector<8x1xf32>
    %170 = vector.broadcast %162 : vector<8x1xf32> to vector<8x32xf32>
    %171 = arith.subf %158, %170 : vector<8x32xf32>
    %cst_60 = arith.constant 9.99999997E-7 : f32
    %172 = vector.broadcast %cst_60 : f32 to vector<8x1xf32>
    %173 = arith.addf %169, %172 : vector<8x1xf32>
    %174 = math.rsqrt %173 : vector<8x1xf32>
    %175 = vector.broadcast %174 : vector<8x1xf32> to vector<8x32xf32>
    %176 = arith.mulf %171, %175 : vector<8x32xf32>
    %c0_61 = arith.constant 0 : index
    %c0_62 = arith.constant 0 : index
    %177 = vector.load %arg9[%c0_61, %c0_62] : memref<1x32xf32, #tpu.memory_space<vmem>>, vector<1x32xf32>
    %178 = vector.broadcast %177 : vector<1x32xf32> to vector<8x32xf32>
    %179 = arith.mulf %176, %178 : vector<8x32xf32>
    %c0_63 = arith.constant 0 : index
    %c0_64 = arith.constant 0 : index
    %180 = vector.load %arg10[%c0_63, %c0_64] : memref<1x32xf32, #tpu.memory_space<vmem>>, vector<1x32xf32>
    %181 = vector.broadcast %180 : vector<1x32xf32> to vector<8x32xf32>
    %182 = arith.addf %179, %181 : vector<8x32xf32>
    %183 = arith.truncf %182 : vector<8x32xf32> to vector<8x32xbf16>
    %cst_65 = arith.constant 0.000000e+00 : f32
    %184 = vector.broadcast %cst_65 : f32 to vector<8x32xf32>
    %c0_66 = arith.constant 0 : index
    %c0_67 = arith.constant 0 : index
    %185 = vector.load %arg11[%c0_66, %c0_67] : memref<32x64xbf16, #tpu.memory_space<vmem>>, vector<32x64xbf16>
    %cst_68 = arith.constant dense<0.000000e+00> : vector<8x64xf32>
    %186 = tpu.matmul %183, %185, %cst_68 {dimension_numbers = #tpu.dot_dimension_numbers<[1], [0], [0], [1], [0, 0, 1, 1], [], []>} : vector<8x32xbf16>, vector<32x64xbf16>, vector<8x64xf32> -> vector<8x64xf32>
    %c0_69 = arith.constant 0 : index
    %c0_70 = arith.constant 0 : index
    %187 = vector.load %arg12[%c0_69, %c0_70] : memref<1x64xf32, #tpu.memory_space<vmem>>, vector<1x64xf32>
    %188 = vector.broadcast %187 : vector<1x64xf32> to vector<8x64xf32>
    %189 = arith.addf %186, %188 : vector<8x64xf32>
    %cst_71 = arith.constant 0.000000e+00 : f32
    %190 = vector.broadcast %cst_71 : f32 to vector<8x64xf32>
    %191 = arith.maximumf %189, %190 : vector<8x64xf32>
    %192 = arith.truncf %191 : vector<8x64xf32> to vector<8x64xbf16>
    %c0_72 = arith.constant 0 : index
    %c0_73 = arith.constant 0 : index
    %193 = vector.load %arg13[%c0_72, %c0_73] : memref<64x32xbf16, #tpu.memory_space<vmem>>, vector<64x32xbf16>
    %cst_74 = arith.constant dense<0.000000e+00> : vector<8x32xf32>
    %194 = tpu.matmul %192, %193, %cst_74 {dimension_numbers = #tpu.dot_dimension_numbers<[1], [0], [0], [1], [0, 0, 1, 1], [], []>} : vector<8x64xbf16>, vector<64x32xbf16>, vector<8x32xf32> -> vector<8x32xf32>
    %195 = arith.addf %184, %194 : vector<8x32xf32>
    %c0_75 = arith.constant 0 : index
    %c0_76 = arith.constant 0 : index
    %196 = vector.load %arg14[%c0_75, %c0_76] : memref<1x32xf32, #tpu.memory_space<vmem>>, vector<1x32xf32>
    %197 = vector.broadcast %196 : vector<1x32xf32> to vector<8x32xf32>
    %198 = arith.addf %195, %197 : vector<8x32xf32>
    %199 = arith.addf %198, %158 : vector<8x32xf32>
    %c0_77 = arith.constant 0 : index
    %c0_78 = arith.constant 0 : index
    %c0_79 = arith.constant 0 : index
    %200 = vector.load %arg15[%c0_77, %c0_78, %c0_79] : memref<1x8x32xf32, #tpu.memory_space<vmem>>, vector<1x8x32xf32>
    %201 = vector.shape_cast %200 : vector<1x8x32xf32> to vector<8x32xf32>
    %202 = vector.shape_cast %199 : vector<8x32xf32> to vector<1x8x32xf32>
    tpu.vector_store %arg15[%c0_77, %c0_78, %c0_79], %202 {strides = array<i32>} : memref<1x8x32xf32, #tpu.memory_space<vmem>>, vector<1x8x32xf32>,
    return
  }
  func.func @transform_0(%arg0: i32) -> (i32, i32, i32) {
    %c0_i32 = arith.constant 0 : i32
    %c0_i32_0 = arith.constant 0 : i32
    %c0_i32_1 = arith.constant 0 : i32
    return %arg0, %c0_i32, %c0_i32_0 : i32, i32, i32
  }
  func.func @transform_1(%arg0: i32) -> (i32, i32, i32) {
    %c0_i32 = arith.constant 0 : i32
    %c0_i32_0 = arith.constant 0 : i32
    %c0_i32_1 = arith.constant 0 : i32
    return %arg0, %c0_i32, %c0_i32_0 : i32, i32, i32
  }
  func.func @transform_2(%arg0: i32) -> (i32, i32) {
    %c0_i32 = arith.constant 0 : i32
    %c0_i32_0 = arith.constant 0 : i32
    %c0_i32_1 = arith.constant 0 : i32
    return %c0_i32, %c0_i32_0 : i32, i32
  }
  func.func @transform_3(%arg0: i32) -> (i32, i32) {
    %c0_i32 = arith.constant 0 : i32
    %c0_i32_0 = arith.constant 0 : i32
    %c0_i32_1 = arith.constant 0 : i32
    return %c0_i32, %c0_i32_0 : i32, i32
  }
  func.func @transform_4(%arg0: i32) -> (i32, i32) {
    %c0_i32 = arith.constant 0 : i32
    %c0_i32_0 = arith.constant 0 : i32
    %c0_i32_1 = arith.constant 0 : i32
    return %c0_i32, %c0_i32_0 : i32, i32
  }
  func.func @transform_5(%arg0: i32) -> (i32, i32) {
    %c0_i32 = arith.constant 0 : i32
    %c0_i32_0 = arith.constant 0 : i32
    %c0_i32_1 = arith.constant 0 : i32
    return %c0_i32, %c0_i32_0 : i32, i32
  }
  func.func @transform_6(%arg0: i32) -> (i32, i32) {
    %c0_i32 = arith.constant 0 : i32
    %c0_i32_0 = arith.constant 0 : i32
    %c0_i32_1 = arith.constant 0 : i32
    return %c0_i32, %c0_i32_0 : i32, i32
  }
  func.func @transform_7(%arg0: i32) -> (i32, i32) {
    %c0_i32 = arith.constant 0 : i32
    %c0_i32_0 = arith.constant 0 : i32
    %c0_i32_1 = arith.constant 0 : i32
    return %c0_i32, %c0_i32_0 : i32, i32
  }
  func.func @transform_8(%arg0: i32) -> (i32, i32) {
    %c0_i32 = arith.constant 0 : i32
    %c0_i32_0 = arith.constant 0 : i32
    %c0_i32_1 = arith.constant 0 : i32
    return %c0_i32, %c0_i32_0 : i32, i32
  }
  func.func @transform_9(%arg0: i32) -> (i32, i32) {
    %c0_i32 = arith.constant 0 : i32
    %c0_i32_0 = arith.constant 0 : i32
    %c0_i32_1 = arith.constant 0 : i32
    return %c0_i32, %c0_i32_0 : i32, i32
  }
  func.func @transform_10(%arg0: i32) -> (i32, i32) {
    %c0_i32 = arith.constant 0 : i32
    %c0_i32_0 = arith.constant 0 : i32
    %c0_i32_1 = arith.constant 0 : i32
    return %c0_i32, %c0_i32_0 : i32, i32
  }
  func.func @transform_11(%arg0: i32) -> (i32, i32) {
    %c0_i32 = arith.constant 0 : i32
    %c0_i32_0 = arith.constant 0 : i32
    %c0_i32_1 = arith.constant 0 : i32
    return %c0_i32, %c0_i32_0 : i32, i32
  }
  func.func @transform_12(%arg0: i32) -> (i32, i32) {
    %c0_i32 = arith.constant 0 : i32
    %c0_i32_0 = arith.constant 0 : i32
    %c0_i32_1 = arith.constant 0 : i32
    return %c0_i32, %c0_i32_0 : i32, i32
  }
  func.func @transform_13(%arg0: i32) -> (i32, i32) {
    %c0_i32 = arith.constant 0 : i32
    %c0_i32_0 = arith.constant 0 : i32
    %c0_i32_1 = arith.constant 0 : i32
    return %c0_i32, %c0_i32_0 : i32, i32
  }
  func.func @transform_14(%arg0: i32) -> (i32, i32, i32) {
    %c0_i32 = arith.constant 0 : i32
    %c0_i32_0 = arith.constant 0 : i32
    %c0_i32_1 = arith.constant 0 : i32
    return %arg0, %c0_i32, %c0_i32_0 : i32, i32, i32
  }
}

</mosaic_0001>

<llo_original>
// kernel: tpu_custom_call.1
$region0: #{tpu_custom_call.1}
  #allocation0 [shape = 'u32[]', space=smem, size = 0x4, offset = 0x4, fixed_abs, tag = 'smem constant byte address 0x4 - core index']
  #allocation1 [shape = 'u32[144,128]{1,0:T(1,128)}', space=vmem, size = 0x12000, scoped, tag = 'internal scratch']
  #allocation2 [shape = 'f32[8,32]{1,0:T(8,128)}', space=vmem, size = 0x1000, scoped, tag = 'scratch operand']
  %s0 = inlined_call_operand.vmem [shape: f32[2,8,32], index: 0, kind: input, shape index: {}]
  %s1 = inlined_call_operand.hbm [shape: f32[2,1,8], index: 1, kind: input, shape index: {}]
  %s2 = inlined_call_operand.hbm [shape: f32[1,32], index: 2, kind: input, shape index: {}]
  %s3 = inlined_call_operand.hbm [shape: f32[1,32], index: 3, kind: input, shape index: {}]
  %s4 = inlined_call_operand.vmem [shape: bf16[32,96], index: 4, kind: input, shape index: {}]
  %s5 = inlined_call_operand.hbm [shape: f32[1,96], index: 5, kind: input, shape index: {}]
  %s6 = inlined_call_operand.vmem [shape: bf16[32,32], index: 6, kind: input, shape index: {}]
  %s7 = inlined_call_operand.hbm [shape: f32[1,32], index: 7, kind: input, shape index: {}]
  %s8 = inlined_call_operand.hbm [shape: f32[1,32], index: 8, kind: input, shape index: {}]
  %s9 = inlined_call_operand.hbm [shape: f32[1,32], index: 9, kind: input, shape index: {}]
  %s10 = inlined_call_operand.vmem [shape: bf16[32,64], index: 10, kind: input, shape index: {}]
  %s11 = inlined_call_operand.vmem [shape: f32[1,64], index: 11, kind: input, shape index: {}]
  %s12 = inlined_call_operand.vmem [shape: bf16[64,32], index: 12, kind: input, shape index: {}]
  %s13 = inlined_call_operand.vmem [shape: f32[1,32], index: 13, kind: input, shape index: {}]
  %s14 = inlined_call_operand.hbm [shape: f32[2,8,32], index: 14, kind: output, shape index: {}]
  %s15 = sld [smem:[#allocation0]]
  $region117: #{tpu_custom_call.1} parent=0
    _
  %s17 = ssub.s32 1, %s15
  %s18 = scalar_select 0, %s17, %s15
  $region1: #{tpu_custom_call.1} parent=0
    #allocation3 [shape = 'u8[1024]{0}', space=vmem, size = 0x400, scoped, tag = 'input window, operand 1']
    #allocation4 [shape = 's32[2]{0}', space=sflag, size = 0x8, scoped, tag = 'scoped memory for tpu_custom_call.1']
    #allocation5 [shape = 's32[2]{0}', space=sflag, size = 0x8, scoped, tag = 'scoped memory for tpu_custom_call.1']
    #allocation6 [shape = 'u8[512]{0}', space=vmem, size = 0x400, scoped, tag = 'input window, operand 2, single buffered']
    #allocation7 [shape = 's32[1]{0}', space=sflag, size = 0x4, scoped, tag = 'scoped memory for tpu_custom_call.1']
    #allocation8 [shape = 'u8[512]{0}', space=vmem, size = 0x400, scoped, tag = 'input window, operand 3, single buffered']
    #allocation9 [shape = 'u8[512]{0}', space=vmem, size = 0x400, scoped, tag = 'input window, operand 5, single buffered']
    #allocation10 [shape = 's32[1]{0}', space=sflag, size = 0x4, scoped, tag = 'scoped memory for tpu_custom_call.1']
    #allocation11 [shape = 'u8[512]{0}', space=vmem, size = 0x400, scoped, tag = 'input window, operand 7, single buffered']
    #allocation12 [shape = 'u8[512]{0}', space=vmem, size = 0x400, scoped, tag = 'input window, operand 8, single buffered']
    #allocation13 [shape = 's32[1]{0}', space=sflag, size = 0x4, scoped, tag = 'scoped memory for tpu_custom_call.1']
    #allocation14 [shape = 'u8[512]{0}', space=vmem, size = 0x400, scoped, tag = 'input window, operand 9, single buffered']
    #allocation15 [shape = 'u8[8192]{0}', space=vmem, size = 0x2000, scoped, tag = 'output window, operand 0']
    %19 = vsyncpa [#allocation4], 0
    %s20 = scalar_lea.sflag [#allocation4], 1
    %21 = vsyncpa %s20, 0
    %22 = vsyncpa [#allocation7], 0
    %23 = vsyncpa [#allocation10], 0
    %24 = vsyncpa [#allocation13], 0
    %25 = vsyncpa [#allocation5], 0
    %s26 = scalar_lea.sflag [#allocation5], 1
    %27 = vsyncpa %s26, 0
    loop: start=0, step=1, limit=4
    $region2: #{tpu_custom_call.1} parent=1 // loop_pre_header
      _
    $region3: #{tpu_custom_call.1} parent=1 // loop_header
      %s29 = sphi 0, %s33
      %p30 = scmp.ge.s32.totalorder %s29, 4
      %s39 = sphi 0, %s41
      %s42 = sphi 0, %s39
      %s43 = sphi 0, %s42
      %s59 = sphi 0, %s43
      %s65 = sphi 0, %s67
      %s68 = sphi 0, %s65
      %s69 = sphi 0, %s68
      %s85 = sphi 0, %s69
      %s89 = sphi 0, %s89
      %s91 = sphi 0, %s89
      %s92 = sphi 0, %s91
      %s106 = sphi 0, %s92
      %s110 = sphi 0, %s110
      %s112 = sphi 0, %s110
      %s113 = sphi 0, %s112
      %s127 = sphi 0, %s113
      %s131 = sphi 0, %s131
      %s133 = sphi 0, %s131
      %s134 = sphi 0, %s133
      %s148 = sphi 0, %s134
      %s152 = sphi 0, %s152
      %s154 = sphi 0, %s152
      %s155 = sphi 0, %s154
      %s169 = sphi 0, %s155
      %s173 = sphi 0, %s173
      %s175 = sphi 0, %s173
      %s176 = sphi 0, %s175
      %s190 = sphi 0, %s176
      %s194 = sphi 0, %s194
      %s196 = sphi 0, %s194
      %s197 = sphi 0, %s196
      %s211 = sphi 0, %s197
      %s215 = sphi 0, %s215
      %s217 = sphi 0, %s215
      %s218 = sphi 0, %s217
      %s232 = sphi 0, %s218
      %s236 = sphi 0, %s236
      %s238 = sphi 0, %s236
      %s239 = sphi 0, %s238
      %s253 = sphi 0, %s239
      %s257 = sphi 0, %s257
      %s259 = sphi 0, %s257
      %s260 = sphi 0, %s259
      %s274 = sphi 0, %s260
      %s278 = sphi 0, %s278
      %s280 = sphi 0, %s278
      %s281 = sphi 0, %s280
      %s295 = sphi 0, %s281
      %s299 = sphi 0, %s299
      %s301 = sphi 0, %s299
      %s302 = sphi 0, %s301
      %s316 = sphi 0, %s302
      %s320 = sphi 0, %s320
      %s322 = sphi 0, %s320
      %s323 = sphi 0, %s322
      %s337 = sphi 0, %s323
      %s343 = sphi 0, %s345
      %s346 = sphi 0, %s343
      %s347 = sphi 0, %s346
      %s363 = sphi 0, %s347
    $region4: #{tpu_custom_call.1} parent=1 // loop_header_branch
      %32 = sbr.rel (%p30) target = $region8
    $region5: #{tpu_custom_call.1} parent=1 // loop_body
      %s34 = ssub.s32 %s29, 1
      %s35 = ssub.s32 %s29, 2
      %s36 = sadd.s32 %s29, 1
      %s37 = ssub.s32 %s29, %s36
      %p38 = scmp.eq.s32.totalorder %s37, 0
      %s40 = sadd.s32 %s39, 1
      %s41 = scalar_select %p38, %s39, %s40
      %p44 = pneg %p38
      %p45 = scmp.eq.s32.totalorder %s29, 1
      %p46 = por %p44, %p45
      %p47 = scmp.ne.s32.totalorder %s39, %s42
      %p48 = scmp.eq.s32.totalorder %s29, 0
      %p49 = por %p47, %p48
      %p50 = scmp.ne.s32.totalorder %s39, %s42
      %p51 = scmp.eq.s32.totalorder %s34, 1
      %p52 = por %p50, %p51
      %p53 = scmp.ne.s32.totalorder %s42, %s43
      %p54 = scmp.eq.s32.totalorder %s34, 0
      %p55 = por %p53, %p54
      %p56 = scmp.ne.s32.totalorder %s42, %s43
      %p57 = scmp.eq.s32.totalorder %s35, 1
      %p58 = por %p56, %p57
      %p60 = scmp.ne.s32.totalorder %s43, %s59
      %p61 = scmp.eq.s32.totalorder %s35, 0
      %p62 = por %p60, %p61
      %s63 = ssub.s32 %s29, %s36
      %p64 = scmp.eq.s32.totalorder %s63, 0
      %s66 = sadd.s32 %s65, 1
      %s67 = scalar_select %p64, %s65, %s66
      %p70 = pneg %p64
      %p71 = scmp.eq.s32.totalorder %s29, 1
      %p72 = por %p70, %p71
      %p73 = scmp.ne.s32.totalorder %s65, %s68
      %p74 = scmp.eq.s32.totalorder %s29, 0
      %p75 = por %p73, %p74
      %p76 = scmp.ne.s32.totalorder %s65, %s68
      %p77 = scmp.eq.s32.totalorder %s34, 1
      %p78 = por %p76, %p77
      %p79 = scmp.ne.s32.totalorder %s68, %s69
      %p80 = scmp.eq.s32.totalorder %s34, 0
      %p81 = por %p79, %p80
      %p82 = scmp.ne.s32.totalorder %s68, %s69
      %p83 = scmp.eq.s32.totalorder %s35, 1
      %p84 = por %p82, %p83
      %p86 = scmp.ne.s32.totalorder %s69, %s85
      %p87 = scmp.eq.s32.totalorder %s35, 0
      %p88 = por %p86, %p87
      %s90 = sadd.s32 %s89, 1
      %p93 = scmp.eq.s32.totalorder %s29, 1
      %p94 = scmp.ne.s32.totalorder %s89, %s91
      %p95 = scmp.eq.s32.totalorder %s29, 0
      %p96 = por %p94, %p95
      %p97 = scmp.ne.s32.totalorder %s89, %s91
      %p98 = scmp.eq.s32.totalorder %s34, 1
      %p99 = por %p97, %p98
      %p100 = scmp.ne.s32.totalorder %s91, %s92
      %p101 = scmp.eq.s32.totalorder %s34, 0
      %p102 = por %p100, %p101
      %p103 = scmp.ne.s32.totalorder %s91, %s92
      %p104 = scmp.eq.s32.totalorder %s35, 1
      %p105 = por %p103, %p104
      %p107 = scmp.ne.s32.totalorder %s92, %s106
      %p108 = scmp.eq.s32.totalorder %s35, 0
      %p109 = por %p107, %p108
      %s111 = sadd.s32 %s110, 1
      %p114 = scmp.eq.s32.totalorder %s29, 1
      %p115 = scmp.ne.s32.totalorder %s110, %s112
      %p116 = scmp.eq.s32.totalorder %s29, 0
      %p117 = por %p115, %p116
      %p118 = scmp.ne.s32.totalorder %s110, %s112
      %p119 = scmp.eq.s32.totalorder %s34, 1
      %p120 = por %p118, %p119
      %p121 = scmp.ne.s32.totalorder %s112, %s113
      %p122 = scmp.eq.s32.totalorder %s34, 0
      %p123 = por %p121, %p122
      %p124 = scmp.ne.s32.totalorder %s112, %s113
      %p125 = scmp.eq.s32.totalorder %s35, 1
      %p126 = por %p124, %p125
      %p128 = scmp.ne.s32.totalorder %s113, %s127
      %p129 = scmp.eq.s32.totalorder %s35, 0
      %p130 = por %p128, %p129
      %s132 = sadd.s32 %s131, 1
      %p135 = scmp.eq.s32.totalorder %s29, 1
      %p136 = scmp.ne.s32.totalorder %s131, %s133
      %p137 = scmp.eq.s32.totalorder %s29, 0
      %p138 = por %p136, %p137
      %p139 = scmp.ne.s32.totalorder %s131, %s133
      %p140 = scmp.eq.s32.totalorder %s34, 1
      %p141 = por %p139, %p140
      %p142 = scmp.ne.s32.totalorder %s133, %s134
      %p143 = scmp.eq.s32.totalorder %s34, 0
      %p144 = por %p142, %p143
      %p145 = scmp.ne.s32.totalorder %s133, %s134
      %p146 = scmp.eq.s32.totalorder %s35, 1
      %p147 = por %p145, %p146
      %p149 = scmp.ne.s32.totalorder %s134, %s148
      %p150 = scmp.eq.s32.totalorder %s35, 0
      %p151 = por %p149, %p150
      %s153 = sadd.s32 %s152, 1
      %p156 = scmp.eq.s32.totalorder %s29, 1
      %p157 = scmp.ne.s32.totalorder %s152, %s154
      %p158 = scmp.eq.s32.totalorder %s29, 0
      %p159 = por %p157, %p158
      %p160 = scmp.ne.s32.totalorder %s152, %s154
      %p161 = scmp.eq.s32.totalorder %s34, 1
      %p162 = por %p160, %p161
      %p163 = scmp.ne.s32.totalorder %s154, %s155
      %p164 = scmp.eq.s32.totalorder %s34, 0
      %p165 = por %p163, %p164
      %p166 = scmp.ne.s32.totalorder %s154, %s155
      %p167 = scmp.eq.s32.totalorder %s35, 1
      %p168 = por %p166, %p167
      %p170 = scmp.ne.s32.totalorder %s155, %s169
      %p171 = scmp.eq.s32.totalorder %s35, 0
      %p172 = por %p170, %p171
      %s174 = sadd.s32 %s173, 1
      %p177 = scmp.eq.s32.totalorder %s29, 1
      %p178 = scmp.ne.s32.totalorder %s173, %s175
      %p179 = scmp.eq.s32.totalorder %s29, 0
      %p180 = por %p178, %p179
      %p181 = scmp.ne.s32.totalorder %s173, %s175
      %p182 = scmp.eq.s32.totalorder %s34, 1
      %p183 = por %p181, %p182
      %p184 = scmp.ne.s32.totalorder %s175, %s176
      %p185 = scmp.eq.s32.totalorder %s34, 0
      %p186 = por %p184, %p185
      %p187 = scmp.ne.s32.totalorder %s175, %s176
      %p188 = scmp.eq.s32.totalorder %s35, 1
      %p189 = por %p187, %p188
      %p191 = scmp.ne.s32.totalorder %s176, %s190
      %p192 = scmp.eq.s32.totalorder %s35, 0
      %p193 = por %p191, %p192
      %s195 = sadd.s32 %s194, 1
      %p198 = scmp.eq.s32.totalorder %s29, 1
      %p199 = scmp.ne.s32.totalorder %s194, %s196
      %p200 = scmp.eq.s32.totalorder %s29, 0
      %p201 = por %p199, %p200
      %p202 = scmp.ne.s32.totalorder %s194, %s196
      %p203 = scmp.eq.s32.totalorder %s34, 1
      %p204 = por %p202, %p203
      %p205 = scmp.ne.s32.totalorder %s196, %s197
      %p206 = scmp.eq.s32.totalorder %s34, 0
      %p207 = por %p205, %p206
      %p208 = scmp.ne.s32.totalorder %s196, %s197
      %p209 = scmp.eq.s32.totalorder %s35, 1
      %p210 = por %p208, %p209
      %p212 = scmp.ne.s32.totalorder %s197, %s211
      %p213 = scmp.eq.s32.totalorder %s35, 0
      %p214 = por %p212, %p213
      %s216 = sadd.s32 %s215, 1
      %p219 = scmp.eq.s32.totalorder %s29, 1
      %p220 = scmp.ne.s32.totalorder %s215, %s217
      %p221 = scmp.eq.s32.totalorder %s29, 0
      %p222 = por %p220, %p221
      %p223 = scmp.ne.s32.totalorder %s215, %s217
      %p224 = scmp.eq.s32.totalorder %s34, 1
      %p225 = por %p223, %p224
      %p226 = scmp.ne.s32.totalorder %s217, %s218
      %p227 = scmp.eq.s32.totalorder %s34, 0
      %p228 = por %p226, %p227
      %p229 = scmp.ne.s32.totalorder %s217, %s218
      %p230 = scmp.eq.s32.totalorder %s35, 1
      %p231 = por %p229, %p230
      %p233 = scmp.ne.s32.totalorder %s218, %s232
      %p234 = scmp.eq.s32.totalorder %s35, 0
      %p235 = por %p233, %p234
      %s237 = sadd.s32 %s236, 1
      %p240 = scmp.eq.s32.totalorder %s29, 1
      %p241 = scmp.ne.s32.totalorder %s236, %s238
      %p242 = scmp.eq.s32.totalorder %s29, 0
      %p243 = por %p241, %p242
      %p244 = scmp.ne.s32.totalorder %s236, %s238
      %p245 = scmp.eq.s32.totalorder %s34, 1
      %p246 = por %p244, %p245
      %p247 = scmp.ne.s32.totalorder %s238, %s239
      %p248 = scmp.eq.s32.totalorder %s34, 0
      %p249 = por %p247, %p248
      %p250 = scmp.ne.s32.totalorder %s238, %s239
      %p251 = scmp.eq.s32.totalorder %s35, 1
      %p252 = por %p250, %p251
      %p254 = scmp.ne.s32.totalorder %s239, %s253
      %p255 = scmp.eq.s32.totalorder %s35, 0
      %p256 = por %p254, %p255
      %s258 = sadd.s32 %s257, 1
      %p261 = scmp.eq.s32.totalorder %s29, 1
      %p262 = scmp.ne.s32.totalorder %s257, %s259
      %p263 = scmp.eq.s32.totalorder %s29, 0
      %p264 = por %p262, %p263
      %p265 = scmp.ne.s32.totalorder %s257, %s259
      %p266 = scmp.eq.s32.totalorder %s34, 1
      %p267 = por %p265, %p266
      %p268 = scmp.ne.s32.totalorder %s259, %s260
      %p269 = scmp.eq.s32.totalorder %s34, 0
      %p270 = por %p268, %p269
      %p271 = scmp.ne.s32.totalorder %s259, %s260
      %p272 = scmp.eq.s32.totalorder %s35, 1
      %p273 = por %p271, %p272
      %p275 = scmp.ne.s32.totalorder %s260, %s274
      %p276 = scmp.eq.s32.totalorder %s35, 0
      %p277 = por %p275, %p276
      %s279 = sadd.s32 %s278, 1
      %p282 = scmp.eq.s32.totalorder %s29, 1
      %p283 = scmp.ne.s32.totalorder %s278, %s280
      %p284 = scmp.eq.s32.totalorder %s29, 0
      %p285 = por %p283, %p284
      %p286 = scmp.ne.s32.totalorder %s278, %s280
      %p287 = scmp.eq.s32.totalorder %s34, 1
      %p288 = por %p286, %p287
      %p289 = scmp.ne.s32.totalorder %s280, %s281
      %p290 = scmp.eq.s32.totalorder %s34, 0
      %p291 = por %p289, %p290
      %p292 = scmp.ne.s32.totalorder %s280, %s281
      %p293 = scmp.eq.s32.totalorder %s35, 1
      %p294 = por %p292, %p293
      %p296 = scmp.ne.s32.totalorder %s281, %s295
      %p297 = scmp.eq.s32.totalorder %s35, 0
      %p298 = por %p296, %p297
      %s300 = sadd.s32 %s299, 1
      %p303 = scmp.eq.s32.totalorder %s29, 1
      %p304 = scmp.ne.s32.totalorder %s299, %s301
      %p305 = scmp.eq.s32.totalorder %s29, 0
      %p306 = por %p304, %p305
      %p307 = scmp.ne.s32.totalorder %s299, %s301
      %p308 = scmp.eq.s32.totalorder %s34, 1
      %p309 = por %p307, %p308
      %p310 = scmp.ne.s32.totalorder %s301, %s302
      %p311 = scmp.eq.s32.totalorder %s34, 0
      %p312 = por %p310, %p311
      %p313 = scmp.ne.s32.totalorder %s301, %s302
      %p314 = scmp.eq.s32.totalorder %s35, 1
      %p315 = por %p313, %p314
      %p317 = scmp.ne.s32.totalorder %s302, %s316
      %p318 = scmp.eq.s32.totalorder %s35, 0
      %p319 = por %p317, %p318
      %s321 = sadd.s32 %s320, 1
      %p324 = scmp.eq.s32.totalorder %s29, 1
      %p325 = scmp.ne.s32.totalorder %s320, %s322
      %p326 = scmp.eq.s32.totalorder %s29, 0
      %p327 = por %p325, %p326
      %p328 = scmp.ne.s32.totalorder %s320, %s322
      %p329 = scmp.eq.s32.totalorder %s34, 1
      %p330 = por %p328, %p329
      %p331 = scmp.ne.s32.totalorder %s322, %s323
      %p332 = scmp.eq.s32.totalorder %s34, 0
      %p333 = por %p331, %p332
      %p334 = scmp.ne.s32.totalorder %s322, %s323
      %p335 = scmp.eq.s32.totalorder %s35, 1
      %p336 = por %p334, %p335
      %p338 = scmp.ne.s32.totalorder %s323, %s337
      %p339 = scmp.eq.s32.totalorder %s35, 0
      %p340 = por %p338, %p339
      %s341 = ssub.s32 %s29, %s36
      %p342 = scmp.eq.s32.totalorder %s341, 0
      %s344 = sadd.s32 %s343, 1
      %s345 = scalar_select %p342, %s343, %s344
      %p348 = pneg %p342
      %p349 = scmp.eq.s32.totalorder %s29, 1
      %p350 = por %p348, %p349
      %p351 = scmp.ne.s32.totalorder %s343, %s346
      %p352 = scmp.eq.s32.totalorder %s29, 0
      %p353 = por %p351, %p352
      %p354 = scmp.ne.s32.totalorder %s343, %s346
      %p355 = scmp.eq.s32.totalorder %s34, 1
      %p356 = por %p354, %p355
      %p357 = scmp.ne.s32.totalorder %s346, %s347
      %p358 = scmp.eq.s32.totalorder %s34, 0
      %p359 = por %p357, %p358
      %p360 = scmp.ne.s32.totalorder %s346, %s347
      %p361 = scmp.eq.s32.totalorder %s35, 1
      %p362 = por %p360, %p361
      %p364 = scmp.ne.s32.totalorder %s347, %s363
      %p365 = scmp.eq.s32.totalorder %s35, 0
      %p366 = por %p364, %p365
      %p367 = scmp.le.s32.totalorder 1, %s29
      %p368 = scmp.lt.s32.totalorder %s29, 3
      %p369 = pnand %p367, %p368
      %p370 = pneg %p369
      // Predicated region
      $region9: #{tpu_custom_call.1} parent=5 // pred_check
        _
      $region10: #{tpu_custom_call.1} parent=5 // pred_check_branch
        %372 = sbr.rel (%p369) target = $region12
      $region11: #{tpu_custom_call.1} parent=5 // pred_region
        %s373 = ssub.s32 %s29, 1
        // Predicated region
        $region13: #{tpu_custom_call.1} parent=11 // pred_check
          %p374 = pneg %p102
        $region14: #{tpu_custom_call.1} parent=11 // pred_check_branch
          %376 = sbr.rel (%p374) target = $region16
        $region15: #{tpu_custom_call.1} parent=11 // pred_region
          %s378 = ssub.s32 16, 16
          %379 = vsyncadd [#allocation7], %s378
          %s381 = sshll.u32 [#allocation6], 4
          %s382 = int_to_ptr.vmem [resolvable:$true] %s381
          %384 = dma.hbm_to_vmem [thread:$0]  %s2, 16, %s382, [#allocation7]
        $region16: #{tpu_custom_call.1} parent=11 // pred_fallthru
          _
        // Predicated region
        $region17: #{tpu_custom_call.1} parent=11 // pred_check
          %p385 = pneg %p123
        $region18: #{tpu_custom_call.1} parent=11 // pred_check_branch
          %387 = sbr.rel (%p385) target = $region20
        $region19: #{tpu_custom_call.1} parent=11 // pred_region
          %s389 = ssub.s32 16, 16
          %390 = vsyncadd [#allocation7], %s389
          %s392 = sshll.u32 [#allocation8], 4
          %s393 = int_to_ptr.vmem [resolvable:$true] %s392
          %395 = dma.hbm_to_vmem [thread:$0]  %s3, 16, %s393, [#allocation7]
        $region20: #{tpu_custom_call.1} parent=11 // pred_fallthru
          _
        // Predicated region
        $region21: #{tpu_custom_call.1} parent=11 // pred_check
          %p396 = pneg %p144
        $region22: #{tpu_custom_call.1} parent=11 // pred_check_branch
          %398 = sbr.rel (%p396) target = $region24
        $region23: #{tpu_custom_call.1} parent=11 // pred_region
          _
        $region24: #{tpu_custom_call.1} parent=11 // pred_fallthru
          _
        // Predicated region
        $region25: #{tpu_custom_call.1} parent=11 // pred_check
          %p399 = pneg %p165
        $region26: #{tpu_custom_call.1} parent=11 // pred_check_branch
          %401 = sbr.rel (%p399) target = $region28
        $region27: #{tpu_custom_call.1} parent=11 // pred_region
          %s403 = ssub.s32 16, 16
          %404 = vsyncadd [#allocation10], %s403
          %s406 = sshll.u32 [#allocation9], 4
          %s407 = int_to_ptr.vmem [resolvable:$true] %s406
          %409 = dma.hbm_to_vmem [thread:$0]  %s5, 16, %s407, [#allocation10]
        $region28: #{tpu_custom_call.1} parent=11 // pred_fallthru
          _
        // Predicated region
        $region29: #{tpu_custom_call.1} parent=11 // pred_check
          %p410 = pneg %p186
        $region30: #{tpu_custom_call.1} parent=11 // pred_check_branch
          %412 = sbr.rel (%p410) target = $region32
        $region31: #{tpu_custom_call.1} parent=11 // pred_region
          _
        $region32: #{tpu_custom_call.1} parent=11 // pred_fallthru
          _
        // Predicated region
        $region33: #{tpu_custom_call.1} parent=11 // pred_check
          %p413 = pneg %p207
        $region34: #{tpu_custom_call.1} parent=11 // pred_check_branch
          %415 = sbr.rel (%p413) target = $region36
        $region35: #{tpu_custom_call.1} parent=11 // pred_region
          %s417 = ssub.s32 16, 16
          %418 = vsyncadd [#allocation10], %s417
          %s420 = sshll.u32 [#allocation11], 4
          %s421 = int_to_ptr.vmem [resolvable:$true] %s420
          %423 = dma.hbm_to_vmem [thread:$0]  %s7, 16, %s421, [#allocation10]
        $region36: #{tpu_custom_call.1} parent=11 // pred_fallthru
          _
        // Predicated region
        $region37: #{tpu_custom_call.1} parent=11 // pred_check
          %p424 = pneg %p228
        $region38: #{tpu_custom_call.1} parent=11 // pred_check_branch
          %426 = sbr.rel (%p424) target = $region40
        $region39: #{tpu_custom_call.1} parent=11 // pred_region
          %s428 = ssub.s32 16, 16
          %429 = vsyncadd [#allocation13], %s428
          %s431 = sshll.u32 [#allocation12], 4
          %s432 = int_to_ptr.vmem [resolvable:$true] %s431
          %434 = dma.hbm_to_vmem [thread:$0]  %s8, 16, %s432, [#allocation13]
        $region40: #{tpu_custom_call.1} parent=11 // pred_fallthru
          _
        // Predicated region
        $region41: #{tpu_custom_call.1} parent=11 // pred_check
          %p435 = pneg %p249
        $region42: #{tpu_custom_call.1} parent=11 // pred_check_branch
          %437 = sbr.rel (%p435) target = $region44
        $region43: #{tpu_custom_call.1} parent=11 // pred_region
          %s439 = ssub.s32 16, 16
          %440 = vsyncadd [#allocation13], %s439
          %s442 = sshll.u32 [#allocation14], 4
          %s443 = int_to_ptr.vmem [resolvable:$true] %s442
          %445 = dma.hbm_to_vmem [thread:$0]  %s9, 16, %s443, [#allocation13]
        $region44: #{tpu_custom_call.1} parent=11 // pred_fallthru
          _
        // Predicated region
        $region45: #{tpu_custom_call.1} parent=11 // pred_check
          %p446 = pneg %p270
        $region46: #{tpu_custom_call.1} parent=11 // pred_check_branch
          %448 = sbr.rel (%p446) target = $region48
        $region47: #{tpu_custom_call.1} parent=11 // pred_region
          _
        $region48: #{tpu_custom_call.1} parent=11 // pred_fallthru
          _
        // Predicated region
        $region49: #{tpu_custom_call.1} parent=11 // pred_check
          %p449 = pneg %p291
        $region50: #{tpu_custom_call.1} parent=11 // pred_check_branch
          %451 = sbr.rel (%p449) target = $region52
        $region51: #{tpu_custom_call.1} parent=11 // pred_region
          _
        $region52: #{tpu_custom_call.1} parent=11 // pred_fallthru
          _
        // Predicated region
        $region53: #{tpu_custom_call.1} parent=11 // pred_check
          %p452 = pneg %p312
        $region54: #{tpu_custom_call.1} parent=11 // pred_check_branch
          %454 = sbr.rel (%p452) target = $region56
        $region55: #{tpu_custom_call.1} parent=11 // pred_region
          _
        $region56: #{tpu_custom_call.1} parent=11 // pred_fallthru
          _
        // Predicated region
        $region57: #{tpu_custom_call.1} parent=11 // pred_check
          %p455 = pneg %p333
        $region58: #{tpu_custom_call.1} parent=11 // pred_check_branch
          %457 = sbr.rel (%p455) target = $region60
        $region59: #{tpu_custom_call.1} parent=11 // pred_region
          _
        $region60: #{tpu_custom_call.1} parent=11 // pred_fallthru
          _
      $region12: #{tpu_custom_call.1} parent=5 // pred_fallthru
        _
      %p458 = scmp.lt.s32.totalorder %s29, 2
      // Predicated region
      $region61: #{tpu_custom_call.1} parent=5 // pred_check
        %p459 = pneg %p458
      $region62: #{tpu_custom_call.1} parent=5 // pred_check_branch
        %461 = sbr.rel (%p459) target = $region64
      $region63: #{tpu_custom_call.1} parent=5 // pred_region
        // Predicated region
        $region65: #{tpu_custom_call.1} parent=63 // pred_check
          %p462 = pneg %p49
        $region66: #{tpu_custom_call.1} parent=63 // pred_check_branch
          %464 = sbr.rel (%p462) target = $region68
        $region67: #{tpu_custom_call.1} parent=63 // pred_region
          %p465 = scmp.lt.s32.totalorder %s29, 1
          %s466 = scalar_select %p465, %s29, 1
          %s467 = smul.addr %s466, 8
          %s468 = scalar_lea.vmem %s0, %s467
        $region68: #{tpu_custom_call.1} parent=63 // pred_fallthru
          _
        // Predicated region
        $region69: #{tpu_custom_call.1} parent=63 // pred_check
          %p469 = pneg %p75
        $region70: #{tpu_custom_call.1} parent=63 // pred_check_branch
          %471 = sbr.rel (%p469) target = $region72
        $region71: #{tpu_custom_call.1} parent=63 // pred_region
          %s472 = sand.u32 %s65, 1
          %s473 = scalar_lea.sflag [#allocation4], %s472
          %s474 = sand.u32 %s65, 1
          %s475 = scalar_lea.vmem [#allocation3], %s474
          %s477 = ssub.s32 16, 16
          %478 = vsyncadd %s473, %s477
          %s479 = smul.addr %s29, 16
          %s480 = scalar_lea.hbm %s1, %s479
          %s482 = sshll.u32 %s475, 4
          %s483 = int_to_ptr.vmem [resolvable:$true] %s482
          %485 = dma.hbm_to_vmem [thread:$0]  %s480, 16, %s483, %s473
        $region72: #{tpu_custom_call.1} parent=63 // pred_fallthru
          _
      $region64: #{tpu_custom_call.1} parent=5 // pred_fallthru
        _
      %p486 = scmp.le.s32.totalorder 1, %s29
      %p487 = scmp.lt.s32.totalorder %s29, 3
      %p488 = pnand %p486, %p487
      %p489 = pneg %p488
      // Predicated region
      $region73: #{tpu_custom_call.1} parent=5 // pred_check
        _
      $region74: #{tpu_custom_call.1} parent=5 // pred_check_branch
        %491 = sbr.rel (%p488) target = $region76
      $region75: #{tpu_custom_call.1} parent=5 // pred_region
        %s492 = ssub.s32 %s29, 1
        %s493 = sand.u32 %s68, 1
        %s494 = scalar_lea.sflag [#allocation4], %s493
        %s495 = sand.u32 %s68, 1
        %s496 = scalar_lea.vmem [#allocation3], %s495
        // Predicated region
        $region77: #{tpu_custom_call.1} parent=75 // pred_check
          %p497 = pneg %p81
        $region78: #{tpu_custom_call.1} parent=75 // pred_check_branch
          %499 = sbr.rel (%p497) target = $region80
        $region79: #{tpu_custom_call.1} parent=75 // pred_region
          %500 = dma.done %s494, 16
        $region80: #{tpu_custom_call.1} parent=75 // pred_fallthru
          _
        // Predicated region
        $region81: #{tpu_custom_call.1} parent=75 // pred_check
          %p501 = pneg %p102
        $region82: #{tpu_custom_call.1} parent=75 // pred_check_branch
          %503 = sbr.rel (%p501) target = $region84
        $region83: #{tpu_custom_call.1} parent=75 // pred_region
          %504 = dma.done [#allocation7], 16
        $region84: #{tpu_custom_call.1} parent=75 // pred_fallthru
          _
        // Predicated region
        $region85: #{tpu_custom_call.1} parent=75 // pred_check
          %p505 = pneg %p123
        $region86: #{tpu_custom_call.1} parent=75 // pred_check_branch
          %507 = sbr.rel (%p505) target = $region88
        $region87: #{tpu_custom_call.1} parent=75 // pred_region
          %508 = dma.done [#allocation7], 16
        $region88: #{tpu_custom_call.1} parent=75 // pred_fallthru
          _
        // Predicated region
        $region89: #{tpu_custom_call.1} parent=75 // pred_check
          %p509 = pneg %p165
        $region90: #{tpu_custom_call.1} parent=75 // pred_check_branch
          %511 = sbr.rel (%p509) target = $region92
        $region91: #{tpu_custom_call.1} parent=75 // pred_region
          %512 = dma.done [#allocation10], 16
        $region92: #{tpu_custom_call.1} parent=75 // pred_fallthru
          _
        // Predicated region
        $region93: #{tpu_custom_call.1} parent=75 // pred_check
          %p513 = pneg %p207
        $region94: #{tpu_custom_call.1} parent=75 // pred_check_branch
          %515 = sbr.rel (%p513) target = $region96
        $region95: #{tpu_custom_call.1} parent=75 // pred_region
          %516 = dma.done [#allocation10], 16
        $region96: #{tpu_custom_call.1} parent=75 // pred_fallthru
          _
        // Predicated region
        $region97: #{tpu_custom_call.1} parent=75 // pred_check
          %p517 = pneg %p228
        $region98: #{tpu_custom_call.1} parent=75 // pred_check_branch
          %519 = sbr.rel (%p517) target = $region100
        $region99: #{tpu_custom_call.1} parent=75 // pred_region
          %520 = dma.done [#allocation13], 16
        $region100: #{tpu_custom_call.1} parent=75 // pred_fallthru
          _
        // Predicated region
        $region101: #{tpu_custom_call.1} parent=75 // pred_check
          %p521 = pneg %p249
        $region102: #{tpu_custom_call.1} parent=75 // pred_check_branch
          %523 = sbr.rel (%p521) target = $region104
        $region103: #{tpu_custom_call.1} parent=75 // pred_region
          %524 = dma.done [#allocation13], 16
        $region104: #{tpu_custom_call.1} parent=75 // pred_fallthru
          _
        %p525 = scmp.lt.s32.totalorder %s34, 1
        %s526 = scalar_select %p525, %s34, 1
        %s527 = smul.addr %s526, 8
        %s528 = scalar_lea.vmem %s0, %s527
        %p529 = pneg %p55
        %p530 = pneg %p52
        %s531 = sand.u32 %s68, 1
        %s532 = scalar_lea.sflag [#allocation4], %s531
        %s533 = sand.u32 %s68, 1
        %s534 = scalar_lea.vmem [#allocation3], %s533
        %p535 = pneg %p81
        %p536 = pneg %p78
        %p537 = pneg %p102
        %p538 = pneg %p99
        %p539 = pneg %p123
        %p540 = pneg %p120
        %p541 = pneg %p144
        %p542 = pneg %p141
        %p543 = pneg %p165
        %p544 = pneg %p162
        %p545 = pneg %p186
        %p546 = pneg %p183
        %p547 = pneg %p207
        %p548 = pneg %p204
        %p549 = pneg %p228
        %p550 = pneg %p225
        %p551 = pneg %p249
        %p552 = pneg %p246
        %p553 = pneg %p270
        %p554 = pneg %p267
        %p555 = pneg %p291
        %p556 = pneg %p288
        %p557 = pneg %p312
        %p558 = pneg %p309
        %p559 = pneg %p333
        %p560 = pneg %p330
        %p561 = pneg %p359
        %p562 = pneg %p356
        %s563 = sand.u32 %s346, 1
        %s564 = scalar_lea.sflag [#allocation5], %s563
        %s565 = sand.u32 %s346, 1
        %s566 = smul.addr %s565, 8
        %s567 = scalar_lea.vmem [#allocation15], %s566
        %p568 = scmp.lt.s32.totalorder %s34, 1
        %s569 = scalar_select %p568, %s34, 1
        %s570 = smul.addr %s569, 8
        %s571 = scalar_lea.vmem %s0, %s570
        %v573 = vld [vmem:[%s571] sm:$0xff]
        %v574 = vld [vmem:[%s496] sm:$0x1]
        %vm575 = vcmask 261120
        %v576 = vsel %vm575, %v573, 0.0
        %577 = vadd.xlane.f32.xlu0 %v576
        %v578 = vpop.xlane.xlu0 %577
        %v579 = vrcp.pop 32.0
        %v580 = vmul.f32 %v578, %v579
        %v581 = vsub.f32 %v573, %v580
        %v582 = vmul.f32 %v581, %v581
        %v583 = vsel %vm575, %v582, 0.0
        %584 = vadd.xlane.f32.xlu0 %v583
        %v585 = vpop.xlane.xlu0 %584
        %v586 = vmul.f32 %v585, %v579
        %v587 = vadd.f32 %v586, 1e-06
        %v588 = vrsqrt.pop %v587
        %v589 = vmul.f32 %v581, %v588
        %v590 = vld [vmem:[#allocation6] sm:$0x1]
        %v592 = vlaneseq
        %v593 = vshrl.u32 %v592, 7
        %v594 = vsub.s32 0, %v593
        %v595 = vrot.slane %v590, %v594
        %v597 = vmul.f32 %v589, %v595
        %v598 = vld [vmem:[#allocation8] sm:$0x1]
        %v600 = vlaneseq
        %v601 = vshrl.u32 %v600, 7
        %v602 = vsub.s32 0, %v601
        %v603 = vrot.slane %v598, %v602
        %v605 = vadd.f32 %v597, %v603
        %v606 = vpack.c.bf16 %v605, %v605
        %v607 = vld [vmem:[%s4] sm:$0xf]
        %v608 = vld [vmem:[%s4 + $0x4] sm:$0xf]
        %v609 = vld [vmem:[%s4 + $0x8] sm:$0xf]
        %v610 = vld [vmem:[%s4 + $0xc] sm:$0xf]
        %v611 = vld [vmem:[#allocation9] sm:$0x1]
        %v613 = vlaneseq
        %v614 = vshrl.u32 %v613, 7
        %v615 = vsub.s32 0, %v614
        %v616 = vrot.slane %v611, %v615
        %v622 = vunpack.c.l.b16 %v607
        %v623 = vunpack.c.l.b16 %v608
        %v624 = vunpack.c.l.b16 %v609
        %v625 = vunpack.c.l.b16 %v610
        %v626 = vpack.c.b16 %v623, %v622
        %v627 = vpack.c.b16 %v625, %v624
        %v631 = vsel %vm575, %v606, 0
        %633 = vmatprep.subr.bf16.mxu0 0
        %634 = vmatpush1.bf16.msra.mxu0 0
        %635 = vmatprep.subr.bf16.mxu0 0
        %636 = vmatpush1.bf16.msra.mxu0 0
        %637 = vmatprep.subr.bf16.mxu0 0
        %638 = vmatpush1.bf16.msra.mxu0 0
        %639 = vmatprep.subr.bf16.mxu0 0
        %640 = vmatpush1.bf16.msra.mxu0 0
        %641 = vmatprep.subr.bf16.mxu0 0
        %642 = vmatpush1.bf16.msra.mxu0 0
        %643 = vmatprep.subr.bf16.mxu0 0
        %644 = vmatpush1.bf16.msra.mxu0 0
        %645 = vmatprep.subr.bf16.mxu0 0
        %646 = vmatpush1.bf16.msra.mxu0 %v627
        %647 = vmatprep.subr.bf16.mxu0 0
        %648 = vmatpush1.bf16.msra.mxu0 %v626
        %649 = vmatprep.subr.bf16.mxu0 0
        %650 = vmatpush2.bf16.msra.mxu0 0
        %651 = vmatprep.subr.bf16.mxu0 0
        %652 = vmatpush2.bf16.msra.mxu0 0
        %653 = vmatprep.subr.bf16.mxu0 0
        %654 = vmatpush2.bf16.msra.mxu0 0
        %655 = vmatprep.subr.bf16.mxu0 0
        %656 = vmatpush2.bf16.msra.mxu0 0
        %657 = vmatprep.subr.bf16.mxu0 0
        %658 = vmatpush2.bf16.msra.mxu0 0
        %659 = vmatprep.subr.bf16.mxu0 0
        %660 = vmatpush2.bf16.msra.mxu0 0
        %661 = vmatprep.subr.bf16.mxu0 0
        %662 = vmatpush2.bf16.msra.mxu0 0
        %663 = vmatprep.subr.bf16.mxu0 0
        %664 = vmatpush2.bf16.msra.mxu0 0
        %665 = vmatprep.mubr.bf16.mxu0 0
        %666 = vmatmul.mubr.bf16.gmra.mxu0 %v631
        %v667 = vpop.f32.mrf.mxu0
        %v668 = vadd.f32 %v616, %v667
        %v669 = vpop.f32.mrf.mxu0
        %v670 = vpop.f32.mrf.mxu0
        %v671 = vpop.f32.mrf.mxu0
        %672 = vdwg.mxu0
        %v673 = vmul.f32 %v668, 0.35355338
        %v674 = vpack.c.bf16 %v673, %v673
        %v675 = vpack.c.bf16 %v668, %v668
        %677 = vrot.lane.b32.xlu0 %v675, 96
        %v678 = vpop.permute.xlu0 %677
        %vm679 = vcmask 64512
        %v681 = vsel %vm679, %v674, 0
        %v684 = vsel %vm679, %v678, 0
        %686 = vmatprep.subr.bf16.mxu0 0
        %687 = vmatpush1.bf16.xpose.msra.mxu0 0
        %688 = vmatprep.subr.bf16.mxu0 0
        %689 = vmatpush1.bf16.xpose.msra.mxu0 0
        %690 = vmatprep.subr.bf16.mxu0 0
        %691 = vmatpush1.bf16.xpose.msra.mxu0 0
        %692 = vmatprep.subr.bf16.mxu0 0
        %693 = vmatpush1.bf16.xpose.msra.mxu0 0
        %694 = vmatprep.subr.bf16.mxu0 0
        %695 = vmatpush1.bf16.xpose.msra.mxu0 0
        %696 = vmatprep.subr.bf16.mxu0 0
        %697 = vmatpush1.bf16.xpose.msra.mxu0 0
        %698 = vmatprep.subr.bf16.mxu0 0
        %699 = vmatpush1.bf16.xpose.msra.mxu0 0
        %700 = vmatprep.subr.bf16.mxu0 0
        %701 = vmatpush1.bf16.xpose.msra.mxu0 %v684
        %702 = vmatprep.subr.bf16.mxu0 0
        %703 = vmatpush2.bf16.xpose.msra.mxu0 0
        %704 = vmatprep.subr.bf16.mxu0 0
        %705 = vmatpush2.bf16.xpose.msra.mxu0 0
        %706 = vmatprep.subr.bf16.mxu0 0
        %707 = vmatpush2.bf16.xpose.msra.mxu0 0
        %708 = vmatprep.subr.bf16.mxu0 0
        %709 = vmatpush2.bf16.xpose.msra.mxu0 0
        %710 = vmatprep.subr.bf16.mxu0 0
        %711 = vmatpush2.bf16.xpose.msra.mxu0 0
        %712 = vmatprep.subr.bf16.mxu0 0
        %713 = vmatpush2.bf16.xpose.msra.mxu0 0
        %714 = vmatprep.subr.bf16.mxu0 0
        %715 = vmatpush2.bf16.xpose.msra.mxu0 0
        %716 = vmatprep.subr.bf16.mxu0 0
        %717 = vmatpush2.bf16.xpose.msra.mxu0 0
        %718 = vmatprep.mubr.bf16.mxu0 0
        %719 = vmatmul.mubr.bf16.gmra.mxu0 %v681
        %v720 = vpop.f32.mrf.mxu0
        %v721 = vadd.f32 0.0, %v720
        %v722 = vpop.f32.mrf.mxu0
        %v723 = vpop.f32.mrf.mxu0
        %v724 = vpop.f32.mrf.mxu0
        %725 = vdwg.mxu0
        %vm726 = vcmp.gt.f32.partialorder %v574, 0.5
        %v727 = vsel %vm726, 1, 0
        %v728 = vlaneseq
        %v729 = vshrl.u32 %v728, 7
        %v730 = vsub.s32 0, %v729
        %v731 = vrot.slane %v727, %v730
        %vm732 = vcmp.eq.s32.totalorder %v731, 1
        %v733 = vsel %vm732, -1e+18, %v721
        %v734 = vsel %vm679, %v733, -inf
        %735 = vmax.xlane.f32.xlu0 %v734
        %v736 = vpop.xlane.xlu0 %735
        %v737 = vsub.f32 %v733, %v736
        %v738 = vmul.f32 %v737, 1.442695
        %v739 = vpow.pop %v738
        %v740 = vsel %vm679, %v739, 0.0
        %741 = vadd.xlane.f32.xlu0 %v740
        %v742 = vpop.xlane.xlu0 %741
        %v743 = vrcp.pop %v742
        %v744 = vmul.f32 %v739, %v743
        %v745 = vpack.c.bf16 %v744, %v744
        %746 = vrot.lane.b32.xlu0 %v675, 64
        %v747 = vpop.permute.xlu0 %746
        %v749 = vsel %vm679, %v745, 0
        %vm751 = vcmask 1043456
        %v753 = vsel %vm751, %v747, 0
        %755 = vmatprep.subr.bf16.mxu0 0
        %756 = vmatpush1.bf16.msra.mxu0 0
        %757 = vmatprep.subr.bf16.mxu0 0
        %758 = vmatpush1.bf16.msra.mxu0 0
        %759 = vmatprep.subr.bf16.mxu0 0
        %760 = vmatpush1.bf16.msra.mxu0 0
        %761 = vmatprep.subr.bf16.mxu0 0
        %762 = vmatpush1.bf16.msra.mxu0 0
        %763 = vmatprep.subr.bf16.mxu0 0
        %764 = vmatpush1.bf16.msra.mxu0 0
        %765 = vmatprep.subr.bf16.mxu0 0
        %766 = vmatpush1.bf16.msra.mxu0 0
        %767 = vmatprep.subr.bf16.mxu0 0
        %768 = vmatpush1.bf16.msra.mxu0 0
        %769 = vmatprep.subr.bf16.mxu0 0
        %770 = vmatpush1.bf16.msra.mxu0 %v753
        %771 = vmatprep.subr.bf16.mxu0 0
        %772 = vmatpush2.bf16.msra.mxu0 0
        %773 = vmatprep.subr.bf16.mxu0 0
        %774 = vmatpush2.bf16.msra.mxu0 0
        %775 = vmatprep.subr.bf16.mxu0 0
        %776 = vmatpush2.bf16.msra.mxu0 0
        %777 = vmatprep.subr.bf16.mxu0 0
        %778 = vmatpush2.bf16.msra.mxu0 0
        %779 = vmatprep.subr.bf16.mxu0 0
        %780 = vmatpush2.bf16.msra.mxu0 0
        %781 = vmatprep.subr.bf16.mxu0 0
        %782 = vmatpush2.bf16.msra.mxu0 0
        %783 = vmatprep.subr.bf16.mxu0 0
        %784 = vmatpush2.bf16.msra.mxu0 0
        %785 = vmatprep.subr.bf16.mxu0 0
        %786 = vmatpush2.bf16.msra.mxu0 0
        %787 = vmatprep.mubr.bf16.mxu0 0
        %788 = vmatmul.mubr.bf16.gmra.mxu0 %v749
        %v789 = vpop.f32.mrf.mxu0
        %v790 = vadd.f32 0.0, %v789
        %v791 = vpop.f32.mrf.mxu0
        %v792 = vpop.f32.mrf.mxu0
        %v793 = vpop.f32.mrf.mxu0
        %794 = vdwg.mxu0
        %795 = vst.msk [vmem:[#allocation2] sm:$0xff] %vm679, %v790
        %797 = vrot.lane.b32.xlu0 %v674, 120
        %v798 = vpop.permute.xlu0 %797
        %799 = vrot.lane.b32.xlu0 %v675, 88
        %v800 = vpop.permute.xlu0 %799
        %v802 = vsel %vm679, %v798, 0
        %v805 = vsel %vm679, %v800, 0
        %807 = vmatprep.subr.bf16.mxu0 0
        %808 = vmatpush1.bf16.xpose.msra.mxu0 0
        %809 = vmatprep.subr.bf16.mxu0 0
        %810 = vmatpush1.bf16.xpose.msra.mxu0 0
        %811 = vmatprep.subr.bf16.mxu0 0
        %812 = vmatpush1.bf16.xpose.msra.mxu0 0
        %813 = vmatprep.subr.bf16.mxu0 0
        %814 = vmatpush1.bf16.xpose.msra.mxu0 0
        %815 = vmatprep.subr.bf16.mxu0 0
        %816 = vmatpush1.bf16.xpose.msra.mxu0 0
        %817 = vmatprep.subr.bf16.mxu0 0
        %818 = vmatpush1.bf16.xpose.msra.mxu0 0
        %819 = vmatprep.subr.bf16.mxu0 0
        %820 = vmatpush1.bf16.xpose.msra.mxu0 0
        %821 = vmatprep.subr.bf16.mxu0 0
        %822 = vmatpush1.bf16.xpose.msra.mxu0 %v805
        %823 = vmatprep.subr.bf16.mxu0 0
        %824 = vmatpush2.bf16.xpose.msra.mxu0 0
        %825 = vmatprep.subr.bf16.mxu0 0
        %826 = vmatpush2.bf16.xpose.msra.mxu0 0
        %827 = vmatprep.subr.bf16.mxu0 0
        %828 = vmatpush2.bf16.xpose.msra.mxu0 0
        %829 = vmatprep.subr.bf16.mxu0 0
        %830 = vmatpush2.bf16.xpose.msra.mxu0 0
        %831 = vmatprep.subr.bf16.mxu0 0
        %832 = vmatpush2.bf16.xpose.msra.mxu0 0
        %833 = vmatprep.subr.bf16.mxu0 0
        %834 = vmatpush2.bf16.xpose.msra.mxu0 0
        %835 = vmatprep.subr.bf16.mxu0 0
        %836 = vmatpush2.bf16.xpose.msra.mxu0 0
        %837 = vmatprep.subr.bf16.mxu0 0
        %838 = vmatpush2.bf16.xpose.msra.mxu0 0
        %839 = vmatprep.mubr.bf16.mxu0 0
        %840 = vmatmul.mubr.bf16.gmra.mxu0 %v802
        %v841 = vpop.f32.mrf.mxu0
        %v842 = vadd.f32 0.0, %v841
        %v843 = vpop.f32.mrf.mxu0
        %v844 = vpop.f32.mrf.mxu0
        %v845 = vpop.f32.mrf.mxu0
        %846 = vdwg.mxu0
        %v847 = vsel %vm732, -1e+18, %v842
        %v848 = vsel %vm679, %v847, -inf
        %849 = vmax.xlane.f32.xlu0 %v848
        %v850 = vpop.xlane.xlu0 %849
        %v851 = vsub.f32 %v847, %v850
        %v852 = vmul.f32 %v851, 1.442695
        %v853 = vpow.pop %v852
        %v854 = vsel %vm679, %v853, 0.0
        %855 = vadd.xlane.f32.xlu0 %v854
        %v856 = vpop.xlane.xlu0 %855
        %v857 = vrcp.pop %v856
        %v858 = vmul.f32 %v853, %v857
        %v859 = vpack.c.bf16 %v858, %v858
        %860 = vrot.lane.b32.xlu0 %v675, 56
        %v861 = vpop.permute.xlu0 %860
        %v863 = vsel %vm679, %v859, 0
        %v866 = vsel %vm751, %v861, 0
        %868 = vmatprep.subr.bf16.mxu0 0
        %869 = vmatpush1.bf16.msra.mxu0 0
        %870 = vmatprep.subr.bf16.mxu0 0
        %871 = vmatpush1.bf16.msra.mxu0 0
        %872 = vmatprep.subr.bf16.mxu0 0
        %873 = vmatpush1.bf16.msra.mxu0 0
        %874 = vmatprep.subr.bf16.mxu0 0
        %875 = vmatpush1.bf16.msra.mxu0 0
        %876 = vmatprep.subr.bf16.mxu0 0
        %877 = vmatpush1.bf16.msra.mxu0 0
        %878 = vmatprep.subr.bf16.mxu0 0
        %879 = vmatpush1.bf16.msra.mxu0 0
        %880 = vmatprep.subr.bf16.mxu0 0
        %881 = vmatpush1.bf16.msra.mxu0 0
        %882 = vmatprep.subr.bf16.mxu0 0
        %883 = vmatpush1.bf16.msra.mxu0 %v866
        %884 = vmatprep.subr.bf16.mxu0 0
        %885 = vmatpush2.bf16.msra.mxu0 0
        %886 = vmatprep.subr.bf16.mxu0 0
        %887 = vmatpush2.bf16.msra.mxu0 0
        %888 = vmatprep.subr.bf16.mxu0 0
        %889 = vmatpush2.bf16.msra.mxu0 0
        %890 = vmatprep.subr.bf16.mxu0 0
        %891 = vmatpush2.bf16.msra.mxu0 0
        %892 = vmatprep.subr.bf16.mxu0 0
        %893 = vmatpush2.bf16.msra.mxu0 0
        %894 = vmatprep.subr.bf16.mxu0 0
        %895 = vmatpush2.bf16.msra.mxu0 0
        %896 = vmatprep.subr.bf16.mxu0 0
        %897 = vmatpush2.bf16.msra.mxu0 0
        %898 = vmatprep.subr.bf16.mxu0 0
        %899 = vmatpush2.bf16.msra.mxu0 0
        %900 = vmatprep.mubr.bf16.mxu0 0
        %901 = vmatmul.mubr.bf16.gmra.mxu0 %v863
        %v902 = vpop.f32.mrf.mxu0
        %v903 = vadd.f32 0.0, %v902
        %v904 = vpop.f32.mrf.mxu0
        %v905 = vpop.f32.mrf.mxu0
        %v906 = vpop.f32.mrf.mxu0
        %907 = vdwg.mxu0
        %909 = vrot.lane.b32.xlu0 %v903, 8
        %v910 = vpop.permute.xlu0 %909
        %vm912 = vcmask 130112
        %913 = vst.msk [vmem:[#allocation2] sm:$0xff] %vm912, %v910
        %914 = vrot.lane.b32.xlu0 %v674, 112
        %v915 = vpop.permute.xlu0 %914
        %916 = vrot.lane.b32.xlu0 %v675, 80
        %v917 = vpop.permute.xlu0 %916
        %v919 = vsel %vm679, %v915, 0
        %v922 = vsel %vm679, %v917, 0
        %924 = vmatprep.subr.bf16.mxu0 0
        %925 = vmatpush1.bf16.xpose.msra.mxu0 0
        %926 = vmatprep.subr.bf16.mxu0 0
        %927 = vmatpush1.bf16.xpose.msra.mxu0 0
        %928 = vmatprep.subr.bf16.mxu0 0
        %929 = vmatpush1.bf16.xpose.msra.mxu0 0
        %930 = vmatprep.subr.bf16.mxu0 0
        %931 = vmatpush1.bf16.xpose.msra.mxu0 0
        %932 = vmatprep.subr.bf16.mxu0 0
        %933 = vmatpush1.bf16.xpose.msra.mxu0 0
        %934 = vmatprep.subr.bf16.mxu0 0
        %935 = vmatpush1.bf16.xpose.msra.mxu0 0
        %936 = vmatprep.subr.bf16.mxu0 0
        %937 = vmatpush1.bf16.xpose.msra.mxu0 0
        %938 = vmatprep.subr.bf16.mxu0 0
        %939 = vmatpush1.bf16.xpose.msra.mxu0 %v922
        %940 = vmatprep.subr.bf16.mxu0 0
        %941 = vmatpush2.bf16.xpose.msra.mxu0 0
        %942 = vmatprep.subr.bf16.mxu0 0
        %943 = vmatpush2.bf16.xpose.msra.mxu0 0
        %944 = vmatprep.subr.bf16.mxu0 0
        %945 = vmatpush2.bf16.xpose.msra.mxu0 0
        %946 = vmatprep.subr.bf16.mxu0 0
        %947 = vmatpush2.bf16.xpose.msra.mxu0 0
        %948 = vmatprep.subr.bf16.mxu0 0
        %949 = vmatpush2.bf16.xpose.msra.mxu0 0
        %950 = vmatprep.subr.bf16.mxu0 0
        %951 = vmatpush2.bf16.xpose.msra.mxu0 0
        %952 = vmatprep.subr.bf16.mxu0 0
        %953 = vmatpush2.bf16.xpose.msra.mxu0 0
        %954 = vmatprep.subr.bf16.mxu0 0
        %955 = vmatpush2.bf16.xpose.msra.mxu0 0
        %956 = vmatprep.mubr.bf16.mxu0 0
        %957 = vmatmul.mubr.bf16.gmra.mxu0 %v919
        %v958 = vpop.f32.mrf.mxu0
        %v959 = vadd.f32 0.0, %v958
        %v960 = vpop.f32.mrf.mxu0
        %v961 = vpop.f32.mrf.mxu0
        %v962 = vpop.f32.mrf.mxu0
        %963 = vdwg.mxu0
        %v964 = vsel %vm732, -1e+18, %v959
        %v965 = vsel %vm679, %v964, -inf
        %966 = vmax.xlane.f32.xlu0 %v965
        %v967 = vpop.xlane.xlu0 %966
        %v968 = vsub.f32 %v964, %v967
        %v969 = vmul.f32 %v968, 1.442695
        %v970 = vpow.pop %v969
        %v971 = vsel %vm679, %v970, 0.0
        %972 = vadd.xlane.f32.xlu0 %v971
        %v973 = vpop.xlane.xlu0 %972
        %v974 = vrcp.pop %v973
        %v975 = vmul.f32 %v970, %v974
        %v976 = vpack.c.bf16 %v975, %v975
        %977 = vrot.lane.b32.xlu0 %v675, 48
        %v978 = vpop.permute.xlu0 %977
        %v980 = vsel %vm679, %v976, 0
        %v983 = vsel %vm751, %v978, 0
        %985 = vmatprep.subr.bf16.mxu0 0
        %986 = vmatpush1.bf16.msra.mxu0 0
        %987 = vmatprep.subr.bf16.mxu0 0
        %988 = vmatpush1.bf16.msra.mxu0 0
        %989 = vmatprep.subr.bf16.mxu0 0
        %990 = vmatpush1.bf16.msra.mxu0 0
        %991 = vmatprep.subr.bf16.mxu0 0
        %992 = vmatpush1.bf16.msra.mxu0 0
        %993 = vmatprep.subr.bf16.mxu0 0
        %994 = vmatpush1.bf16.msra.mxu0 0
        %995 = vmatprep.subr.bf16.mxu0 0
        %996 = vmatpush1.bf16.msra.mxu0 0
        %997 = vmatprep.subr.bf16.mxu0 0
        %998 = vmatpush1.bf16.msra.mxu0 0
        %999 = vmatprep.subr.bf16.mxu0 0
        %1000 = vmatpush1.bf16.msra.mxu0 %v983
        %1001 = vmatprep.subr.bf16.mxu0 0
        %1002 = vmatpush2.bf16.msra.mxu0 0
        %1003 = vmatprep.subr.bf16.mxu0 0
        %1004 = vmatpush2.bf16.msra.mxu0 0
        %1005 = vmatprep.subr.bf16.mxu0 0
        %1006 = vmatpush2.bf16.msra.mxu0 0
        %1007 = vmatprep.subr.bf16.mxu0 0
        %1008 = vmatpush2.bf16.msra.mxu0 0
        %1009 = vmatprep.subr.bf16.mxu0 0
        %1010 = vmatpush2.bf16.msra.mxu0 0
        %1011 = vmatprep.subr.bf16.mxu0 0
        %1012 = vmatpush2.bf16.msra.mxu0 0
        %1013 = vmatprep.subr.bf16.mxu0 0
        %1014 = vmatpush2.bf16.msra.mxu0 0
        %1015 = vmatprep.subr.bf16.mxu0 0
        %1016 = vmatpush2.bf16.msra.mxu0 0
        %1017 = vmatprep.mubr.bf16.mxu0 0
        %1018 = vmatmul.mubr.bf16.gmra.mxu0 %v980
        %v1019 = vpop.f32.mrf.mxu0
        %v1020 = vadd.f32 0.0, %v1019
        %v1021 = vpop.f32.mrf.mxu0
        %v1022 = vpop.f32.mrf.mxu0
        %v1023 = vpop.f32.mrf.mxu0
        %1024 = vdwg.mxu0
        %1026 = vrot.lane.b32.xlu0 %v1020, 16
        %v1027 = vpop.permute.xlu0 %1026
        %vm1029 = vcmask 195712
        %1030 = vst.msk [vmem:[#allocation2] sm:$0xff] %vm1029, %v1027
        %1031 = vrot.lane.b32.xlu0 %v674, 104
        %v1032 = vpop.permute.xlu0 %1031
        %1033 = vrot.lane.b32.xlu0 %v675, 72
        %v1034 = vpop.permute.xlu0 %1033
        %v1036 = vsel %vm679, %v1032, 0
        %v1039 = vsel %vm679, %v1034, 0
        %1041 = vmatprep.subr.bf16.mxu0 0
        %1042 = vmatpush1.bf16.xpose.msra.mxu0 0
        %1043 = vmatprep.subr.bf16.mxu0 0
        %1044 = vmatpush1.bf16.xpose.msra.mxu0 0
        %1045 = vmatprep.subr.bf16.mxu0 0
        %1046 = vmatpush1.bf16.xpose.msra.mxu0 0
        %1047 = vmatprep.subr.bf16.mxu0 0
        %1048 = vmatpush1.bf16.xpose.msra.mxu0 0
        %1049 = vmatprep.subr.bf16.mxu0 0
        %1050 = vmatpush1.bf16.xpose.msra.mxu0 0
        %1051 = vmatprep.subr.bf16.mxu0 0
        %1052 = vmatpush1.bf16.xpose.msra.mxu0 0
        %1053 = vmatprep.subr.bf16.mxu0 0
        %1054 = vmatpush1.bf16.xpose.msra.mxu0 0
        %1055 = vmatprep.subr.bf16.mxu0 0
        %1056 = vmatpush1.bf16.xpose.msra.mxu0 %v1039
        %1057 = vmatprep.subr.bf16.mxu0 0
        %1058 = vmatpush2.bf16.xpose.msra.mxu0 0
        %1059 = vmatprep.subr.bf16.mxu0 0
        %1060 = vmatpush2.bf16.xpose.msra.mxu0 0
        %1061 = vmatprep.subr.bf16.mxu0 0
        %1062 = vmatpush2.bf16.xpose.msra.mxu0 0
        %1063 = vmatprep.subr.bf16.mxu0 0
        %1064 = vmatpush2.bf16.xpose.msra.mxu0 0
        %1065 = vmatprep.subr.bf16.mxu0 0
        %1066 = vmatpush2.bf16.xpose.msra.mxu0 0
        %1067 = vmatprep.subr.bf16.mxu0 0
        %1068 = vmatpush2.bf16.xpose.msra.mxu0 0
        %1069 = vmatprep.subr.bf16.mxu0 0
        %1070 = vmatpush2.bf16.xpose.msra.mxu0 0
        %1071 = vmatprep.subr.bf16.mxu0 0
        %1072 = vmatpush2.bf16.xpose.msra.mxu0 0
        %1073 = vmatprep.mubr.bf16.mxu0 0
        %1074 = vmatmul.mubr.bf16.gmra.mxu0 %v1036
        %v1075 = vpop.f32.mrf.mxu0
        %v1076 = vadd.f32 0.0, %v1075
        %v1077 = vpop.f32.mrf.mxu0
        %v1078 = vpop.f32.mrf.mxu0
        %v1079 = vpop.f32.mrf.mxu0
        %1080 = vdwg.mxu0
        %v1081 = vsel %vm732, -1e+18, %v1076
        %v1082 = vsel %vm679, %v1081, -inf
        %1083 = vmax.xlane.f32.xlu0 %v1082
        %v1084 = vpop.xlane.xlu0 %1083
        %v1085 = vsub.f32 %v1081, %v1084
        %v1086 = vmul.f32 %v1085, 1.442695
        %v1087 = vpow.pop %v1086
        %v1088 = vsel %vm679, %v1087, 0.0
        %1089 = vadd.xlane.f32.xlu0 %v1088
        %v1090 = vpop.xlane.xlu0 %1089
        %v1091 = vrcp.pop %v1090
        %v1092 = vmul.f32 %v1087, %v1091
        %v1093 = vpack.c.bf16 %v1092, %v1092
        %1094 = vrot.lane.b32.xlu0 %v675, 40
        %v1095 = vpop.permute.xlu0 %1094
        %v1097 = vsel %vm679, %v1093, 0
        %v1100 = vsel %vm751, %v1095, 0
        %1102 = vmatprep.subr.bf16.mxu0 0
        %1103 = vmatpush1.bf16.msra.mxu0 0
        %1104 = vmatprep.subr.bf16.mxu0 0
        %1105 = vmatpush1.bf16.msra.mxu0 0
        %1106 = vmatprep.subr.bf16.mxu0 0
        %1107 = vmatpush1.bf16.msra.mxu0 0
        %1108 = vmatprep.subr.bf16.mxu0 0
        %1109 = vmatpush1.bf16.msra.mxu0 0
        %1110 = vmatprep.subr.bf16.mxu0 0
        %1111 = vmatpush1.bf16.msra.mxu0 0
        %1112 = vmatprep.subr.bf16.mxu0 0
        %1113 = vmatpush1.bf16.msra.mxu0 0
        %1114 = vmatprep.subr.bf16.mxu0 0
        %1115 = vmatpush1.bf16.msra.mxu0 0
        %1116 = vmatprep.subr.bf16.mxu0 0
        %1117 = vmatpush1.bf16.msra.mxu0 %v1100
        %1118 = vmatprep.subr.bf16.mxu0 0
        %1119 = vmatpush2.bf16.msra.mxu0 0
        %1120 = vmatprep.subr.bf16.mxu0 0
        %1121 = vmatpush2.bf16.msra.mxu0 0
        %1122 = vmatprep.subr.bf16.mxu0 0
        %1123 = vmatpush2.bf16.msra.mxu0 0
        %1124 = vmatprep.subr.bf16.mxu0 0
        %1125 = vmatpush2.bf16.msra.mxu0 0
        %1126 = vmatprep.subr.bf16.mxu0 0
        %1127 = vmatpush2.bf16.msra.mxu0 0
        %1128 = vmatprep.subr.bf16.mxu0 0
        %1129 = vmatpush2.bf16.msra.mxu0 0
        %1130 = vmatprep.subr.bf16.mxu0 0
        %1131 = vmatpush2.bf16.msra.mxu0 0
        %1132 = vmatprep.subr.bf16.mxu0 0
        %1133 = vmatpush2.bf16.msra.mxu0 0
        %1134 = vmatprep.mubr.bf16.mxu0 0
        %1135 = vmatmul.mubr.bf16.gmra.mxu0 %v1097
        %v1136 = vpop.f32.mrf.mxu0
        %v1137 = vadd.f32 0.0, %v1136
        %v1138 = vpop.f32.mrf.mxu0
        %v1139 = vpop.f32.mrf.mxu0
        %v1140 = vpop.f32.mrf.mxu0
        %1141 = vdwg.mxu0
        %1143 = vrot.lane.b32.xlu0 %v1137, 24
        %v1144 = vpop.permute.xlu0 %1143
        %vm1146 = vcmask 261312
        %1147 = vst.msk [vmem:[#allocation2] sm:$0xff] %vm1146, %v1144
        %v1148 = vld [vmem:[#allocation2] sm:$0xff]
        %v1149 = vpack.c.bf16 %v1148, %v1148
        %v1150 = vld [vmem:[%s6] sm:$0xf]
        %v1151 = vld [vmem:[%s6 + $0x4] sm:$0xf]
        %v1152 = vld [vmem:[%s6 + $0x8] sm:$0xf]
        %v1153 = vld [vmem:[%s6 + $0xc] sm:$0xf]
        %v1154 = vld [vmem:[#allocation11] sm:$0x1]
        %v1156 = vlaneseq
        %v1157 = vshrl.u32 %v1156, 7
        %v1158 = vsub.s32 0, %v1157
        %v1159 = vrot.slane %v1154, %v1158
        %v1165 = vunpack.c.l.b16 %v1150
        %v1166 = vunpack.c.l.b16 %v1151
        %v1167 = vunpack.c.l.b16 %v1152
        %v1168 = vunpack.c.l.b16 %v1153
        %v1169 = vpack.c.b16 %v1166, %v1165
        %v1170 = vpack.c.b16 %v1168, %v1167
        %v1174 = vsel %vm575, %v1149, 0
        %1176 = vmatprep.subr.bf16.mxu0 0
        %1177 = vmatpush1.bf16.msra.mxu0 0
        %1178 = vmatprep.subr.bf16.mxu0 0
        %1179 = vmatpush1.bf16.msra.mxu0 0
        %1180 = vmatprep.subr.bf16.mxu0 0
        %1181 = vmatpush1.bf16.msra.mxu0 0
        %1182 = vmatprep.subr.bf16.mxu0 0
        %1183 = vmatpush1.bf16.msra.mxu0 0
        %1184 = vmatprep.subr.bf16.mxu0 0
        %1185 = vmatpush1.bf16.msra.mxu0 0
        %1186 = vmatprep.subr.bf16.mxu0 0
        %1187 = vmatpush1.bf16.msra.mxu0 0
        %1188 = vmatprep.subr.bf16.mxu0 0
        %1189 = vmatpush1.bf16.msra.mxu0 %v1170
        %1190 = vmatprep.subr.bf16.mxu0 0
        %1191 = vmatpush1.bf16.msra.mxu0 %v1169
        %1192 = vmatprep.subr.bf16.mxu0 0
        %1193 = vmatpush2.bf16.msra.mxu0 0
        %1194 = vmatprep.subr.bf16.mxu0 0
        %1195 = vmatpush2.bf16.msra.mxu0 0
        %1196 = vmatprep.subr.bf16.mxu0 0
        %1197 = vmatpush2.bf16.msra.mxu0 0
        %1198 = vmatprep.subr.bf16.mxu0 0
        %1199 = vmatpush2.bf16.msra.mxu0 0
        %1200 = vmatprep.subr.bf16.mxu0 0
        %1201 = vmatpush2.bf16.msra.mxu0 0
        %1202 = vmatprep.subr.bf16.mxu0 0
        %1203 = vmatpush2.bf16.msra.mxu0 0
        %1204 = vmatprep.subr.bf16.mxu0 0
        %1205 = vmatpush2.bf16.msra.mxu0 0
        %1206 = vmatprep.subr.bf16.mxu0 0
        %1207 = vmatpush2.bf16.msra.mxu0 0
        %1208 = vmatprep.mubr.bf16.mxu0 0
        %1209 = vmatmul.mubr.bf16.gmra.mxu0 %v1174
        %v1210 = vpop.f32.mrf.mxu0
        %v1211 = vadd.f32 %v1159, %v1210
        %v1212 = vpop.f32.mrf.mxu0
        %v1213 = vpop.f32.mrf.mxu0
        %v1214 = vpop.f32.mrf.mxu0
        %1215 = vdwg.mxu0
        %v1216 = vadd.f32 %v1211, %v573
        %v1217 = vsel %vm575, %v1216, 0.0
        %1218 = vadd.xlane.f32.xlu0 %v1217
        %v1219 = vpop.xlane.xlu0 %1218
        %v1220 = vmul.f32 %v1219, %v579
        %v1221 = vsub.f32 %v1216, %v1220
        %v1222 = vmul.f32 %v1221, %v1221
        %v1223 = vsel %vm575, %v1222, 0.0
        %1224 = vadd.xlane.f32.xlu0 %v1223
        %v1225 = vpop.xlane.xlu0 %1224
        %v1226 = vmul.f32 %v1225, %v579
        %v1227 = vadd.f32 %v1226, 1e-06
        %v1228 = vrsqrt.pop %v1227
        %v1229 = vmul.f32 %v1221, %v1228
        %v1230 = vld [vmem:[#allocation12] sm:$0x1]
        %v1232 = vlaneseq
        %v1233 = vshrl.u32 %v1232, 7
        %v1234 = vsub.s32 0, %v1233
        %v1235 = vrot.slane %v1230, %v1234
        %v1237 = vmul.f32 %v1229, %v1235
        %v1238 = vld [vmem:[#allocation14] sm:$0x1]
        %v1240 = vlaneseq
        %v1241 = vshrl.u32 %v1240, 7
        %v1242 = vsub.s32 0, %v1241
        %v1243 = vrot.slane %v1238, %v1242
        %v1245 = vadd.f32 %v1237, %v1243
        %v1246 = vpack.c.bf16 %v1245, %v1245
        %v1247 = vld [vmem:[%s10] sm:$0xf]
        %v1248 = vld [vmem:[%s10 + $0x4] sm:$0xf]
        %v1249 = vld [vmem:[%s10 + $0x8] sm:$0xf]
        %v1250 = vld [vmem:[%s10 + $0xc] sm:$0xf]
        %v1251 = vld [vmem:[%s11] sm:$0x1]
        %v1253 = vlaneseq
        %v1254 = vshrl.u32 %v1253, 7
        %v1255 = vsub.s32 0, %v1254
        %v1256 = vrot.slane %v1251, %v1255
        %v1262 = vunpack.c.l.b16 %v1247
        %v1263 = vunpack.c.l.b16 %v1248
        %v1264 = vunpack.c.l.b16 %v1249
        %v1265 = vunpack.c.l.b16 %v1250
        %v1266 = vpack.c.b16 %v1263, %v1262
        %v1267 = vpack.c.b16 %v1265, %v1264
        %v1271 = vsel %vm575, %v1246, 0
        %1273 = vmatprep.subr.bf16.mxu0 0
        %1274 = vmatpush1.bf16.msra.mxu0 0
        %1275 = vmatprep.subr.bf16.mxu0 0
        %1276 = vmatpush1.bf16.msra.mxu0 0
        %1277 = vmatprep.subr.bf16.mxu0 0
        %1278 = vmatpush1.bf16.msra.mxu0 0
        %1279 = vmatprep.subr.bf16.mxu0 0
        %1280 = vmatpush1.bf16.msra.mxu0 0
        %1281 = vmatprep.subr.bf16.mxu0 0
        %1282 = vmatpush1.bf16.msra.mxu0 0
        %1283 = vmatprep.subr.bf16.mxu0 0
        %1284 = vmatpush1.bf16.msra.mxu0 0
        %1285 = vmatprep.subr.bf16.mxu0 0
        %1286 = vmatpush1.bf16.msra.mxu0 %v1267
        %1287 = vmatprep.subr.bf16.mxu0 0
        %1288 = vmatpush1.bf16.msra.mxu0 %v1266
        %1289 = vmatprep.subr.bf16.mxu0 0
        %1290 = vmatpush2.bf16.msra.mxu0 0
        %1291 = vmatprep.subr.bf16.mxu0 0
        %1292 = vmatpush2.bf16.msra.mxu0 0
        %1293 = vmatprep.subr.bf16.mxu0 0
        %1294 = vmatpush2.bf16.msra.mxu0 0
        %1295 = vmatprep.subr.bf16.mxu0 0
        %1296 = vmatpush2.bf16.msra.mxu0 0
        %1297 = vmatprep.subr.bf16.mxu0 0
        %1298 = vmatpush2.bf16.msra.mxu0 0
        %1299 = vmatprep.subr.bf16.mxu0 0
        %1300 = vmatpush2.bf16.msra.mxu0 0
        %1301 = vmatprep.subr.bf16.mxu0 0
        %1302 = vmatpush2.bf16.msra.mxu0 0
        %1303 = vmatprep.subr.bf16.mxu0 0
        %1304 = vmatpush2.bf16.msra.mxu0 0
        %1305 = vmatprep.mubr.bf16.mxu0 0
        %1306 = vmatmul.mubr.bf16.gmra.mxu0 %v1271
        %v1307 = vpop.f32.mrf.mxu0
        %v1308 = vadd.f32 %v1256, %v1307
        %v1309 = vpop.f32.mrf.mxu0
        %v1310 = vpop.f32.mrf.mxu0
        %v1311 = vpop.f32.mrf.mxu0
        %1312 = vdwg.mxu0
        %v1313 = vmax.f32 %v1308, 0.0
        %v1314 = vpack.c.bf16 %v1313, %v1313
        %v1315 = vld [vmem:[%s12] sm:$0xf]
        %v1316 = vld [vmem:[%s12 + $0x4] sm:$0xf]
        %v1317 = vld [vmem:[%s12 + $0x8] sm:$0xf]
        %v1318 = vld [vmem:[%s12 + $0xc] sm:$0xf]
        %v1319 = vld [vmem:[%s12 + $0x10] sm:$0xf]
        %v1320 = vld [vmem:[%s12 + $0x14] sm:$0xf]
        %v1321 = vld [vmem:[%s12 + $0x18] sm:$0xf]
        %v1322 = vld [vmem:[%s12 + $0x1c] sm:$0xf]
        %v1323 = vld [vmem:[%s13] sm:$0x1]
        %v1325 = vlaneseq
        %v1326 = vshrl.u32 %v1325, 7
        %v1327 = vsub.s32 0, %v1326
        %v1328 = vrot.slane %v1323, %v1327
        %v1338 = vunpack.c.l.b16 %v1315
        %v1339 = vunpack.c.l.b16 %v1316
        %v1340 = vunpack.c.l.b16 %v1317
        %v1341 = vunpack.c.l.b16 %v1318
        %v1342 = vunpack.c.l.b16 %v1319
        %v1343 = vunpack.c.l.b16 %v1320
        %v1344 = vunpack.c.l.b16 %v1321
        %v1345 = vunpack.c.l.b16 %v1322
        %v1346 = vpack.c.b16 %v1339, %v1338
        %v1347 = vpack.c.b16 %v1341, %v1340
        %v1348 = vpack.c.b16 %v1343, %v1342
        %v1349 = vpack.c.b16 %v1345, %v1344
        %vm1354 = vcmask 523264
        %v1356 = vsel %vm1354, %v1314, 0
        %1358 = vmatprep.subr.bf16.mxu0 0
        %1359 = vmatpush1.bf16.msra.mxu0 0
        %1360 = vmatprep.subr.bf16.mxu0 0
        %1361 = vmatpush1.bf16.msra.mxu0 0
        %1362 = vmatprep.subr.bf16.mxu0 0
        %1363 = vmatpush1.bf16.msra.mxu0 0
        %1364 = vmatprep.subr.bf16.mxu0 0
        %1365 = vmatpush1.bf16.msra.mxu0 0
        %1366 = vmatprep.subr.bf16.mxu0 0
        %1367 = vmatpush1.bf16.msra.mxu0 %v1349
        %1368 = vmatprep.subr.bf16.mxu0 0
        %1369 = vmatpush1.bf16.msra.mxu0 %v1348
        %1370 = vmatprep.subr.bf16.mxu0 0
        %1371 = vmatpush1.bf16.msra.mxu0 %v1347
        %1372 = vmatprep.subr.bf16.mxu0 0
        %1373 = vmatpush1.bf16.msra.mxu0 %v1346
        %1374 = vmatprep.subr.bf16.mxu0 0
        %1375 = vmatpush2.bf16.msra.mxu0 0
        %1376 = vmatprep.subr.bf16.mxu0 0
        %1377 = vmatpush2.bf16.msra.mxu0 0
        %1378 = vmatprep.subr.bf16.mxu0 0
        %1379 = vmatpush2.bf16.msra.mxu0 0
        %1380 = vmatprep.subr.bf16.mxu0 0
        %1381 = vmatpush2.bf16.msra.mxu0 0
        %1382 = vmatprep.subr.bf16.mxu0 0
        %1383 = vmatpush2.bf16.msra.mxu0 0
        %1384 = vmatprep.subr.bf16.mxu0 0
        %1385 = vmatpush2.bf16.msra.mxu0 0
        %1386 = vmatprep.subr.bf16.mxu0 0
        %1387 = vmatpush2.bf16.msra.mxu0 0
        %1388 = vmatprep.subr.bf16.mxu0 0
        %1389 = vmatpush2.bf16.msra.mxu0 0
        %1390 = vmatprep.mubr.bf16.mxu0 0
        %1391 = vmatmul.mubr.bf16.gmra.mxu0 %v1356
        %v1392 = vpop.f32.mrf.mxu0
        %v1393 = vadd.f32 %v1328, %v1392
        %v1394 = vpop.f32.mrf.mxu0
        %v1395 = vpop.f32.mrf.mxu0
        %v1396 = vpop.f32.mrf.mxu0
        %1397 = vdwg.mxu0
        %v1398 = vadd.f32 %v1393, %v1216
        %1399 = vst.msk [vmem:[%s567] sm:$0xff] %vm575, %v1398
        %s1400 = sand.u32 %s346, 1
        %s1401 = scalar_lea.sflag [#allocation5], %s1400
        %s1402 = sand.u32 %s346, 1
        %s1403 = smul.addr %s1402, 8
        %s1404 = scalar_lea.vmem [#allocation15], %s1403
        // Predicated region
        $region105: #{tpu_custom_call.1} parent=75 // pred_check
          %p1405 = pneg %p356
        $region106: #{tpu_custom_call.1} parent=75 // pred_check_branch
          %1407 = sbr.rel (%p1405) target = $region108
        $region107: #{tpu_custom_call.1} parent=75 // pred_region
          %s1409 = ssub.s32 128, 128
          %1410 = vsyncadd %s1401, %s1409
          %s1411 = smul.addr %s34, 128
          %s1412 = scalar_lea.hbm %s14, %s1411
          %s1414 = sshll.u32 %s1404, 4
          %s1415 = int_to_ptr.vmem [resolvable:$true] %s1414
          %1417 = dma.vmem_to_hbm [thread:$0]  %s1415, 128, %s1412, %s1401
        $region108: #{tpu_custom_call.1} parent=75 // pred_fallthru
          _
      $region76: #{tpu_custom_call.1} parent=5 // pred_fallthru
        _
      %p1418 = scmp.le.s32.totalorder 2, %s29
      // Predicated region
      $region109: #{tpu_custom_call.1} parent=5 // pred_check
        %p1419 = pneg %p1418
      $region110: #{tpu_custom_call.1} parent=5 // pred_check_branch
        %1421 = sbr.rel (%p1419) target = $region112
      $region111: #{tpu_custom_call.1} parent=5 // pred_region
        %s1422 = ssub.s32 %s29, 2
        // Predicated region
        $region113: #{tpu_custom_call.1} parent=111 // pred_check
          %p1423 = pneg %p362
        $region114: #{tpu_custom_call.1} parent=111 // pred_check_branch
          %1425 = sbr.rel (%p1423) target = $region116
        $region115: #{tpu_custom_call.1} parent=111 // pred_region
          %s1426 = sand.u32 %s347, 1
          %s1427 = scalar_lea.sflag [#allocation5], %s1426
          %s1428 = sand.u32 %s347, 1
          %s1429 = smul.addr %s1428, 8
          %s1430 = scalar_lea.vmem [#allocation15], %s1429
          %1431 = dma.done %s1427, 128
        $region116: #{tpu_custom_call.1} parent=111 // pred_fallthru
          _
      $region112: #{tpu_custom_call.1} parent=5 // pred_fallthru
        _
    $region6: #{tpu_custom_call.1} parent=1 // loop_footer
      %s33 = sadd.s32 1, %s29
    $region7: #{tpu_custom_call.1} parent=1 // loop_footer_branch
      %28 = sbr.rel target = $region3
    $region8: #{tpu_custom_call.1} parent=1 // loop_exit
      _
    %1432 = vsyncpa [#allocation4], 1
    %s1433 = scalar_lea.sflag [#allocation4], 1
    %1434 = vsyncpa %s1433, 1
    %1435 = vsyncpa [#allocation7], 1
    %1436 = vsyncpa [#allocation10], 1
    %1437 = vsyncpa [#allocation13], 1
    %1438 = vsyncpa [#allocation5], 1
    %s1439 = scalar_lea.sflag [#allocation5], 1
    %1440 = vsyncpa %s1439, 1

// kernel: tpu_custom_call.1
$region0: #{tpu_custom_call.1}
  #allocation0 [shape = 'u32[]', space=smem, size = 0x4, offset = 0x4, fixed_abs, tag = 'smem constant byte address 0x4 - core index']
  #allocation1 [shape = 'u32[144,128]{1,0:T(1,128)}', space=vmem, size = 0x12000, scoped, tag = 'internal scratch']
  #allocation2 [shape = 'f32[8,32]{1,0:T(8,128)}', space=vmem, size = 0x1000, scoped, tag = 'scratch operand']
  %s0 = inlined_call_operand.vmem [shape: f32[2,8,32], index: 0, kind: input, shape index: {}]
  %s1 = inlined_call_operand.hbm [shape: f32[2,1,8], index: 1, kind: input, shape index: {}]
  %s2 = inlined_call_operand.hbm [shape: f32[1,32], index: 2, kind: input, shape index: {}]
  %s3 = inlined_call_operand.hbm [shape: f32[1,32], index: 3, kind: input, shape index: {}]
  %s4 = inlined_call_operand.vmem [shape: bf16[32,96], index: 4, kind: input, shape index: {}]
  %s5 = inlined_call_operand.hbm [shape: f32[1,96], index: 5, kind: input, shape index: {}]
  %s6 = inlined_call_operand.vmem [shape: bf16[32,32], index: 6, kind: input, shape index: {}]
  %s7 = inlined_call_operand.hbm [shape: f32[1,32], index: 7, kind: input, shape index: {}]
  %s8 = inlined_call_operand.hbm [shape: f32[1,32], index: 8, kind: input, shape index: {}]
  %s9 = inlined_call_operand.hbm [shape: f32[1,32], index: 9, kind: input, shape index: {}]
  %s10 = inlined_call_operand.vmem [shape: bf16[32,64], index: 10, kind: input, shape index: {}]
  %s11 = inlined_call_operand.vmem [shape: f32[1,64], index: 11, kind: input, shape index: {}]
  %s12 = inlined_call_operand.vmem [shape: bf16[64,32], index: 12, kind: input, shape index: {}]
  %s13 = inlined_call_operand.vmem [shape: f32[1,32], index: 13, kind: input, shape index: {}]
  %s14 = inlined_call_operand.hbm [shape: f32[2,8,32], index: 14, kind: output, shape index: {}]
  %s15 = sld [smem:[#allocation0]]
  $region117: #{tpu_custom_call.1} parent=0
    _
  %s17 = ssub.s32 1, %s15
  %s18 = scalar_select 0, %s17, %s15
  $region1: #{tpu_custom_call.1} parent=0
    #allocation3 [shape = 'u8[1024]{0}', space=vmem, size = 0x400, scoped, tag = 'input window, operand 1']
    #allocation4 [shape = 's32[2]{0}', space=sflag, size = 0x8, scoped, tag = 'scoped memory for tpu_custom_call.1']
    #allocation5 [shape = 's32[2]{0}', space=sflag, size = 0x8, scoped, tag = 'scoped memory for tpu_custom_call.1']
    #allocation6 [shape = 'u8[512]{0}', space=vmem, size = 0x400, scoped, tag = 'input window, operand 2, single buffered']
    #allocation7 [shape = 's32[1]{0}', space=sflag, size = 0x4, scoped, tag = 'scoped memory for tpu_custom_call.1']
    #allocation8 [shape = 'u8[512]{0}', space=vmem, size = 0x400, scoped, tag = 'input window, operand 3, single buffered']
    #allocation9 [shape = 'u8[512]{0}', space=vmem, size = 0x400, scoped, tag = 'input window, operand 5, single buffered']
    #allocation10 [shape = 's32[1]{0}', space=sflag, size = 0x4, scoped, tag = 'scoped memory for tpu_custom_call.1']
    #allocation11 [shape = 'u8[512]{0}', space=vmem, size = 0x400, scoped, tag = 'input window, operand 7, single buffered']
    #allocation12 [shape = 'u8[512]{0}', space=vmem, size = 0x400, scoped, tag = 'input window, operand 8, single buffered']
    #allocation13 [shape = 's32[1]{0}', space=sflag, size = 0x4, scoped, tag = 'scoped memory for tpu_custom_call.1']
    #allocation14 [shape = 'u8[512]{0}', space=vmem, size = 0x400, scoped, tag = 'input window, operand 9, single buffered']
    #allocation15 [shape = 'u8[8192]{0}', space=vmem, size = 0x2000, scoped, tag = 'output window, operand 0']
    %19 = vsyncpa [#allocation4], 0
    %s20 = scalar_lea.sflag [#allocation4], 1
    %21 = vsyncpa %s20, 0
    %22 = vsyncpa [#allocation7], 0
    %23 = vsyncpa [#allocation10], 0
    %24 = vsyncpa [#allocation13], 0
    %25 = vsyncpa [#allocation5], 0
    %s26 = scalar_lea.sflag [#allocation5], 1
    %27 = vsyncpa %s26, 0
    loop: start=0, step=1, limit=4
    $region2: #{tpu_custom_call.1} parent=1 // loop_pre_header
      _
    $region3: #{tpu_custom_call.1} parent=1 // loop_header
      %s29 = sphi 0, %s33
      %p30 = scmp.ge.s32.totalorder %s29, 4
      %s39 = sphi 0, %s41
      %s42 = sphi 0, %s39
      %s43 = sphi 0, %s42
      %s59 = sphi 0, %s43
      %s65 = sphi 0, %s67
      %s68 = sphi 0, %s65
      %s69 = sphi 0, %s68
      %s85 = sphi 0, %s69
      %s89 = sphi 0, %s89
      %s91 = sphi 0, %s89
      %s92 = sphi 0, %s91
      %s106 = sphi 0, %s92
      %s110 = sphi 0, %s110
      %s112 = sphi 0, %s110
      %s113 = sphi 0, %s112
      %s127 = sphi 0, %s113
      %s131 = sphi 0, %s131
      %s133 = sphi 0, %s131
      %s134 = sphi 0, %s133
      %s148 = sphi 0, %s134
      %s152 = sphi 0, %s152
      %s154 = sphi 0, %s152
      %s155 = sphi 0, %s154
      %s169 = sphi 0, %s155
      %s173 = sphi 0, %s173
      %s175 = sphi 0, %s173
      %s176 = sphi 0, %s175
      %s190 = sphi 0, %s176
      %s194 = sphi 0, %s194
      %s196 = sphi 0, %s194
      %s197 = sphi 0, %s196
      %s211 = sphi 0, %s197
      %s215 = sphi 0, %s215
      %s217 = sphi 0, %s215
      %s218 = sphi 0, %s217
      %s232 = sphi 0, %s218
      %s236 = sphi 0, %s236
      %s238 = sphi 0, %s236
      %s239 = sphi 0, %s238
      %s253 = sphi 0, %s239
      %s257 = sphi 0, %s257
      %s259 = sphi 0, %s257
      %s260 = sphi 0, %s259
      %s274 = sphi 0, %s260
      %s278 = sphi 0, %s278
      %s280 = sphi 0, %s278
      %s281 = sphi 0, %s280
      %s295 = sphi 0, %s281
      %s299 = sphi 0, %s299
      %s301 = sphi 0, %s299
      %s302 = sphi 0, %s301
      %s316 = sphi 0, %s302
      %s320 = sphi 0, %s320
      %s322 = sphi 0, %s320
      %s323 = sphi 0, %s322
      %s337 = sphi 0, %s323
      %s343 = sphi 0, %s345
      %s346 = sphi 0, %s343
      %s347 = sphi 0, %s346
      %s363 = sphi 0, %s347
    $region4: #{tpu_custom_call.1} parent=1 // loop_header_branch
      %32 = sbr.rel (%p30) target = $region8
    $region5: #{tpu_custom_call.1} parent=1 // loop_body
      %s34 = ssub.s32 %s29, 1
      %s35 = ssub.s32 %s29, 2
      %s36 = sadd.s32 %s29, 1
      %s37 = ssub.s32 %s29, %s36
      %p38 = scmp.eq.s32.totalorder %s37, 0
      %s40 = sadd.s32 %s39, 1
      %s41 = scalar_select %p38, %s39, %s40
      %p44 = pneg %p38
      %p45 = scmp.eq.s32.totalorder %s29, 1
      %p46 = por %p44, %p45
      %p47 = scmp.ne.s32.totalorder %s39, %s42
      %p48 = scmp.eq.s32.totalorder %s29, 0
      %p49 = por %p47, %p48
      %p50 = scmp.ne.s32.totalorder %s39, %s42
      %p51 = scmp.eq.s32.totalorder %s34, 1
      %p52 = por %p50, %p51
      %p53 = scmp.ne.s32.totalorder %s42, %s43
      %p54 = scmp.eq.s32.totalorder %s34, 0
      %p55 = por %p53, %p54
      %p56 = scmp.ne.s32.totalorder %s42, %s43
      %p57 = scmp.eq.s32.totalorder %s35, 1
      %p58 = por %p56, %p57
      %p60 = scmp.ne.s32.totalorder %s43, %s59
      %p61 = scmp.eq.s32.totalorder %s35, 0
      %p62 = por %p60, %p61
      %s63 = ssub.s32 %s29, %s36
      %p64 = scmp.eq.s32.totalorder %s63, 0
      %s66 = sadd.s32 %s65, 1
      %s67 = scalar_select %p64, %s65, %s66
      %p70 = pneg %p64
      %p71 = scmp.eq.s32.totalorder %s29, 1
      %p72 = por %p70, %p71
      %p73 = scmp.ne.s32.totalorder %s65, %s68
      %p74 = scmp.eq.s32.totalorder %s29, 0
      %p75 = por %p73, %p74
      %p76 = scmp.ne.s32.totalorder %s65, %s68
      %p77 = scmp.eq.s32.totalorder %s34, 1
      %p78 = por %p76, %p77
      %p79 = scmp.ne.s32.totalorder %s68, %s69
      %p80 = scmp.eq.s32.totalorder %s34, 0
      %p81 = por %p79, %p80
      %p82 = scmp.ne.s32.totalorder %s68, %s69
      %p83 = scmp.eq.s32.totalorder %s35, 1
      %p84 = por %p82, %p83
      %p86 = scmp.ne.s32.totalorder %s69, %s85
      %p87 = scmp.eq.s32.totalorder %s35, 0
      %p88 = por %p86, %p87
      %s90 = sadd.s32 %s89, 1
      %p93 = scmp.eq.s32.totalorder %s29, 1
      %p94 = scmp.ne.s32.totalorder %s89, %s91
      %p95 = scmp.eq.s32.totalorder %s29, 0
      %p96 = por %p94, %p95
      %p97 = scmp.ne.s32.totalorder %s89, %s91
      %p98 = scmp.eq.s32.totalorder %s34, 1
      %p99 = por %p97, %p98
      %p100 = scmp.ne.s32.totalorder %s91, %s92
      %p101 = scmp.eq.s32.totalorder %s34, 0
      %p102 = por %p100, %p101
      %p103 = scmp.ne.s32.totalorder %s91, %s92
      %p104 = scmp.eq.s32.totalorder %s35, 1
      %p105 = por %p103, %p104
      %p107 = scmp.ne.s32.totalorder %s92, %s106
      %p108 = scmp.eq.s32.totalorder %s35, 0
      %p109 = por %p107, %p108
      %s111 = sadd.s32 %s110, 1
      %p114 = scmp.eq.s32.totalorder %s29, 1
      %p115 = scmp.ne.s32.totalorder %s110, %s112
      %p116 = scmp.eq.s32.totalorder %s29, 0
      %p117 = por %p115, %p116
      %p118 = scmp.ne.s32.totalorder %s110, %s112
      %p119 = scmp.eq.s32.totalorder %s34, 1
      %p120 = por %p118, %p119
      %p121 = scmp.ne.s32.totalorder %s112, %s113
      %p122 = scmp.eq.s32.totalorder %s34, 0
      %p123 = por %p121, %p122
      %p124 = scmp.ne.s32.totalorder %s112, %s113
      %p125 = scmp.eq.s32.totalorder %s35, 1
      %p126 = por %p124, %p125
      %p128 = scmp.ne.s32.totalorder %s113, %s127
      %p129 = scmp.eq.s32.totalorder %s35, 0
      %p130 = por %p128, %p129
      %s132 = sadd.s32 %s131, 1
      %p135 = scmp.eq.s32.totalorder %s29, 1
      %p136 = scmp.ne.s32.totalorder %s131, %s133
      %p137 = scmp.eq.s32.totalorder %s29, 0
      %p138 = por %p136, %p137
      %p139 = scmp.ne.s32.totalorder %s131, %s133
      %p140 = scmp.eq.s32.totalorder %s34, 1
      %p141 = por %p139, %p140
      %p142 = scmp.ne.s32.totalorder %s133, %s134
      %p143 = scmp.eq.s32.totalorder %s34, 0
      %p144 = por %p142, %p143
      %p145 = scmp.ne.s32.totalorder %s133, %s134
      %p146 = scmp.eq.s32.totalorder %s35, 1
      %p147 = por %p145, %p146
      %p149 = scmp.ne.s32.totalorder %s134, %s148
      %p150 = scmp.eq.s32.totalorder %s35, 0
      %p151 = por %p149, %p150
      %s153 = sadd.s32 %s152, 1
      %p156 = scmp.eq.s32.totalorder %s29, 1
      %p157 = scmp.ne.s32.totalorder %s152, %s154
      %p158 = scmp.eq.s32.totalorder %s29, 0
      %p159 = por %p157, %p158
      %p160 = scmp.ne.s32.totalorder %s152, %s154
      %p161 = scmp.eq.s32.totalorder %s34, 1
      %p162 = por %p160, %p161
      %p163 = scmp.ne.s32.totalorder %s154, %s155
      %p164 = scmp.eq.s32.totalorder %s34, 0
      %p165 = por %p163, %p164
      %p166 = scmp.ne.s32.totalorder %s154, %s155
      %p167 = scmp.eq.s32.totalorder %s35, 1
      %p168 = por %p166, %p167
      %p170 = scmp.ne.s32.totalorder %s155, %s169
      %p171 = scmp.eq.s32.totalorder %s35, 0
      %p172 = por %p170, %p171
      %s174 = sadd.s32 %s173, 1
      %p177 = scmp.eq.s32.totalorder %s29, 1
      %p178 = scmp.ne.s32.totalorder %s173, %s175
      %p179 = scmp.eq.s32.totalorder %s29, 0
      %p180 = por %p178, %p179
      %p181 = scmp.ne.s32.totalorder %s173, %s175
      %p182 = scmp.eq.s32.totalorder %s34, 1
      %p183 = por %p181, %p182
      %p184 = scmp.ne.s32.totalorder %s175, %s176
      %p185 = scmp.eq.s32.totalorder %s34, 0
      %p186 = por %p184, %p185
      %p187 = scmp.ne.s32.totalorder %s175, %s176
      %p188 = scmp.eq.s32.totalorder %s35, 1
      %p189 = por %p187, %p188
      %p191 = scmp.ne.s32.totalorder %s176, %s190
      %p192 = scmp.eq.s32.totalorder %s35, 0
      %p193 = por %p191, %p192
      %s195 = sadd.s32 %s194, 1
      %p198 = scmp.eq.s32.totalorder %s29, 1
      %p199 = scmp.ne.s32.totalorder %s194, %s196
      %p200 = scmp.eq.s32.totalorder %s29, 0
      %p201 = por %p199, %p200
      %p202 = scmp.ne.s32.totalorder %s194, %s196
      %p203 = scmp.eq.s32.totalorder %s34, 1
      %p204 = por %p202, %p203
      %p205 = scmp.ne.s32.totalorder %s196, %s197
      %p206 = scmp.eq.s32.totalorder %s34, 0
      %p207 = por %p205, %p206
      %p208 = scmp.ne.s32.totalorder %s196, %s197
      %p209 = scmp.eq.s32.totalorder %s35, 1
      %p210 = por %p208, %p209
      %p212 = scmp.ne.s32.totalorder %s197, %s211
      %p213 = scmp.eq.s32.totalorder %s35, 0
      %p214 = por %p212, %p213
      %s216 = sadd.s32 %s215, 1
      %p219 = scmp.eq.s32.totalorder %s29, 1
      %p220 = scmp.ne.s32.totalorder %s215, %s217
      %p221 = scmp.eq.s32.totalorder %s29, 0
      %p222 = por %p220, %p221
      %p223 = scmp.ne.s32.totalorder %s215, %s217
      %p224 = scmp.eq.s32.totalorder %s34, 1
      %p225 = por %p223, %p224
      %p226 = scmp.ne.s32.totalorder %s217, %s218
      %p227 = scmp.eq.s32.totalorder %s34, 0
      %p228 = por %p226, %p227
      %p229 = scmp.ne.s32.totalorder %s217, %s218
      %p230 = scmp.eq.s32.totalorder %s35, 1
      %p231 = por %p229, %p230
      %p233 = scmp.ne.s32.totalorder %s218, %s232
      %p234 = scmp.eq.s32.totalorder %s35, 0
      %p235 = por %p233, %p234
      %s237 = sadd.s32 %s236, 1
      %p240 = scmp.eq.s32.totalorder %s29, 1
      %p241 = scmp.ne.s32.totalorder %s236, %s238
      %p242 = scmp.eq.s32.totalorder %s29, 0
      %p243 = por %p241, %p242
      %p244 = scmp.ne.s32.totalorder %s236, %s238
      %p245 = scmp.eq.s32.totalorder %s34, 1
      %p246 = por %p244, %p245
      %p247 = scmp.ne.s32.totalorder %s238, %s239
      %p248 = scmp.eq.s32.totalorder %s34, 0
      %p249 = por %p247, %p248
      %p250 = scmp.ne.s32.totalorder %s238, %s239
      %p251 = scmp.eq.s32.totalorder %s35, 1
      %p252 = por %p250, %p251
      %p254 = scmp.ne.s32.totalorder %s239, %s253
      %p255 = scmp.eq.s32.totalorder %s35, 0
      %p256 = por %p254, %p255
      %s258 = sadd.s32 %s257, 1
      %p261 = scmp.eq.s32.totalorder %s29, 1
      %p262 = scmp.ne.s32.totalorder %s257, %s259
      %p263 = scmp.eq.s32.totalorder %s29, 0
      %p264 = por %p262, %p263
      %p265 = scmp.ne.s32.totalorder %s257, %s259
      %p266 = scmp.eq.s32.totalorder %s34, 1
      %p267 = por %p265, %p266
      %p268 = scmp.ne.s32.totalorder %s259, %s260
      %p269 = scmp.eq.s32.totalorder %s34, 0
      %p270 = por %p268, %p269
      %p271 = scmp.ne.s32.totalorder %s259, %s260
      %p272 = scmp.eq.s32.totalorder %s35, 1
      %p273 = por %p271, %p272
      %p275 = scmp.ne.s32.totalorder %s260, %s274
      %p276 = scmp.eq.s32.totalorder %s35, 0
      %p277 = por %p275, %p276
      %s279 = sadd.s32 %s278, 1
      %p282 = scmp.eq.s32.totalorder %s29, 1
      %p283 = scmp.ne.s32.totalorder %s278, %s280
      %p284 = scmp.eq.s32.totalorder %s29, 0
      %p285 = por %p283, %p284
      %p286 = scmp.ne.s32.totalorder %s278, %s280
      %p287 = scmp.eq.s32.totalorder %s34, 1
      %p288 = por %p286, %p287
      %p289 = scmp.ne.s32.totalorder %s280, %s281
      %p290 = scmp.eq.s32.totalorder %s34, 0
      %p291 = por %p289, %p290
      %p292 = scmp.ne.s32.totalorder %s280, %s281
      %p293 = scmp.eq.s32.totalorder %s35, 1
      %p294 = por %p292, %p293
      %p296 = scmp.ne.s32.totalorder %s281, %s295
      %p297 = scmp.eq.s32.totalorder %s35, 0
      %p298 = por %p296, %p297
      %s300 = sadd.s32 %s299, 1
      %p303 = scmp.eq.s32.totalorder %s29, 1
      %p304 = scmp.ne.s32.totalorder %s299, %s301
      %p305 = scmp.eq.s32.totalorder %s29, 0
      %p306 = por %p304, %p305
      %p307 = scmp.ne.s32.totalorder %s299, %s301
      %p308 = scmp.eq.s32.totalorder %s34, 1
      %p309 = por %p307, %p308
      %p310 = scmp.ne.s32.totalorder %s301, %s302
      %p311 = scmp.eq.s32.totalorder %s34, 0
      %p312 = por %p310, %p311
      %p313 = scmp.ne.s32.totalorder %s301, %s302
      %p314 = scmp.eq.s32.totalorder %s35, 1
      %p315 = por %p313, %p314
      %p317 = scmp.ne.s32.totalorder %s302, %s316
      %p318 = scmp.eq.s32.totalorder %s35, 0
      %p319 = por %p317, %p318
      %s321 = sadd.s32 %s320, 1
      %p324 = scmp.eq.s32.totalorder %s29, 1
      %p325 = scmp.ne.s32.totalorder %s320, %s322
      %p326 = scmp.eq.s32.totalorder %s29, 0
      %p327 = por %p325, %p326
      %p328 = scmp.ne.s32.totalorder %s320, %s322
      %p329 = scmp.eq.s32.totalorder %s34, 1
      %p330 = por %p328, %p329
      %p331 = scmp.ne.s32.totalorder %s322, %s323
      %p332 = scmp.eq.s32.totalorder %s34, 0
      %p333 = por %p331, %p332
      %p334 = scmp.ne.s32.totalorder %s322, %s323
      %p335 = scmp.eq.s32.totalorder %s35, 1
      %p336 = por %p334, %p335
      %p338 = scmp.ne.s32.totalorder %s323, %s337
      %p339 = scmp.eq.s32.totalorder %s35, 0
      %p340 = por %p338, %p339
      %s341 = ssub.s32 %s29, %s36
      %p342 = scmp.eq.s32.totalorder %s341, 0
      %s344 = sadd.s32 %s343, 1
      %s345 = scalar_select %p342, %s343, %s344
      %p348 = pneg %p342
      %p349 = scmp.eq.s32.totalorder %s29, 1
      %p350 = por %p348, %p349
      %p351 = scmp.ne.s32.totalorder %s343, %s346
      %p352 = scmp.eq.s32.totalorder %s29, 0
      %p353 = por %p351, %p352
      %p354 = scmp.ne.s32.totalorder %s343, %s346
      %p355 = scmp.eq.s32.totalorder %s34, 1
      %p356 = por %p354, %p355
      %p357 = scmp.ne.s32.totalorder %s346, %s347
      %p358 = scmp.eq.s32.totalorder %s34, 0
      %p359 = por %p357, %p358
      %p360 = scmp.ne.s32.totalorder %s346, %s347
      %p361 = scmp.eq.s32.totalorder %s35, 1
      %p362 = por %p360, %p361
      %p364 = scmp.ne.s32.totalorder %s347, %s363
      %p365 = scmp.eq.s32.totalorder %s35, 0
      %p366 = por %p364, %p365
      %p367 = scmp.le.s32.totalorder 1, %s29
      %p368 = scmp.lt.s32.totalorder %s29, 3
      %p369 = pnand %p367, %p368
      %p370 = pneg %p369
      // Predicated region
      $region9: #{tpu_custom_call.1} parent=5 // pred_check
        _
      $region10: #{tpu_custom_call.1} parent=5 // pred_check_branch
        %372 = sbr.rel (%p369) target = $region12
      $region11: #{tpu_custom_call.1} parent=5 // pred_region
        %s373 = ssub.s32 %s29, 1
        // Predicated region
        $region13: #{tpu_custom_call.1} parent=11 // pred_check
          %p374 = pneg %p102
        $region14: #{tpu_custom_call.1} parent=11 // pred_check_branch
          %376 = sbr.rel (%p374) target = $region16
        $region15: #{tpu_custom_call.1} parent=11 // pred_region
          %s378 = ssub.s32 16, 16
          %379 = vsyncadd [#allocation7], %s378
          %s381 = sshll.u32 [#allocation6], 4
          %s382 = int_to_ptr.vmem [resolvable:$true] %s381
          %384 = dma.hbm_to_vmem [thread:$0]  %s2, 16, %s382, [#allocation7]
        $region16: #{tpu_custom_call.1} parent=11 // pred_fallthru
          _
        // Predicated region
        $region17: #{tpu_custom_call.1} parent=11 // pred_check
          %p385 = pneg %p123
        $region18: #{tpu_custom_call.1} parent=11 // pred_check_branch
          %387 = sbr.rel (%p385) target = $region20
        $region19: #{tpu_custom_call.1} parent=11 // pred_region
          %s389 = ssub.s32 16, 16
          %390 = vsyncadd [#allocation7], %s389
          %s392 = sshll.u32 [#allocation8], 4
          %s393 = int_to_ptr.vmem [resolvable:$true] %s392
          %395 = dma.hbm_to_vmem [thread:$0]  %s3, 16, %s393, [#allocation7]
        $region20: #{tpu_custom_call.1} parent=11 // pred_fallthru
          _
        // Predicated region
        $region21: #{tpu_custom_call.1} parent=11 // pred_check
          %p396 = pneg %p144
        $region22: #{tpu_custom_call.1} parent=11 // pred_check_branch
          %398 = sbr.rel (%p396) target = $region24
        $region23: #{tpu_custom_call.1} parent=11 // pred_region
          _
        $region24: #{tpu_custom_call.1} parent=11 // pred_fallthru
          _
        // Predicated region
        $region25: #{tpu_custom_call.1} parent=11 // pred_check
          %p399 = pneg %p165
        $region26: #{tpu_custom_call.1} parent=11 // pred_check_branch
          %401 = sbr.rel (%p399) target = $region28
        $region27: #{tpu_custom_call.1} parent=11 // pred_region
          %s403 = ssub.s32 16, 16
          %404 = vsyncadd [#allocation10], %s403
          %s406 = sshll.u32 [#allocation9], 4
          %s407 = int_to_ptr.vmem [resolvable:$true] %s406
          %409 = dma.hbm_to_vmem [thread:$0]  %s5, 16, %s407, [#allocation10]
        $region28: #{tpu_custom_call.1} parent=11 // pred_fallthru
          _
        // Predicated region
        $region29: #{tpu_custom_call.1} parent=11 // pred_check
          %p410 = pneg %p186
        $region30: #{tpu_custom_call.1} parent=11 // pred_check_branch
          %412 = sbr.rel (%p410) target = $region32
        $region31: #{tpu_custom_call.1} parent=11 // pred_region
          _
        $region32: #{tpu_custom_call.1} parent=11 // pred_fallthru
          _
        // Predicated region
        $region33: #{tpu_custom_call.1} parent=11 // pred_check
          %p413 = pneg %p207
        $region34: #{tpu_custom_call.1} parent=11 // pred_check_branch
          %415 = sbr.rel (%p413) target = $region36
        $region35: #{tpu_custom_call.1} parent=11 // pred_region
          %s417 = ssub.s32 16, 16
          %418 = vsyncadd [#allocation10], %s417
          %s420 = sshll.u32 [#allocation11], 4
          %s421 = int_to_ptr.vmem [resolvable:$true] %s420
          %423 = dma.hbm_to_vmem [thread:$0]  %s7, 16, %s421, [#allocation10]
        $region36: #{tpu_custom_call.1} parent=11 // pred_fallthru
          _
        // Predicated region
        $region37: #{tpu_custom_call.1} parent=11 // pred_check
          %p424 = pneg %p228
        $region38: #{tpu_custom_call.1} parent=11 // pred_check_branch
          %426 = sbr.rel (%p424) target = $region40
        $region39: #{tpu_custom_call.1} parent=11 // pred_region
          %s428 = ssub.s32 16, 16
          %429 = vsyncadd [#allocation13], %s428
          %s431 = sshll.u32 [#allocation12], 4
          %s432 = int_to_ptr.vmem [resolvable:$true] %s431
          %434 = dma.hbm_to_vmem [thread:$0]  %s8, 16, %s432, [#allocation13]
        $region40: #{tpu_custom_call.1} parent=11 // pred_fallthru
          _
        // Predicated region
        $region41: #{tpu_custom_call.1} parent=11 // pred_check
          %p435 = pneg %p249
        $region42: #{tpu_custom_call.1} parent=11 // pred_check_branch
          %437 = sbr.rel (%p435) target = $region44
        $region43: #{tpu_custom_call.1} parent=11 // pred_region
          %s439 = ssub.s32 16, 16
          %440 = vsyncadd [#allocation13], %s439
          %s442 = sshll.u32 [#allocation14], 4
          %s443 = int_to_ptr.vmem [resolvable:$true] %s442
          %445 = dma.hbm_to_vmem [thread:$0]  %s9, 16, %s443, [#allocation13]
        $region44: #{tpu_custom_call.1} parent=11 // pred_fallthru
          _
        // Predicated region
        $region45: #{tpu_custom_call.1} parent=11 // pred_check
          %p446 = pneg %p270
        $region46: #{tpu_custom_call.1} parent=11 // pred_check_branch
          %448 = sbr.rel (%p446) target = $region48
        $region47: #{tpu_custom_call.1} parent=11 // pred_region
          _
        $region48: #{tpu_custom_call.1} parent=11 // pred_fallthru
          _
        // Predicated region
        $region49: #{tpu_custom_call.1} parent=11 // pred_check
          %p449 = pneg %p291
        $region50: #{tpu_custom_call.1} parent=11 // pred_check_branch
          %451 = sbr.rel (%p449) target = $region52
        $region51: #{tpu_custom_call.1} parent=11 // pred_region
          _
        $region52: #{tpu_custom_call.1} parent=11 // pred_fallthru
          _
        // Predicated region
        $region53: #{tpu_custom_call.1} parent=11 // pred_check
          %p452 = pneg %p312
        $region54: #{tpu_custom_call.1} parent=11 // pred_check_branch
          %454 = sbr.rel (%p452) target = $region56
        $region55: #{tpu_custom_call.1} parent=11 // pred_region
          _
        $region56: #{tpu_custom_call.1} parent=11 // pred_fallthru
          _
        // Predicated region
        $region57: #{tpu_custom_call.1} parent=11 // pred_check
          %p455 = pneg %p333
        $region58: #{tpu_custom_call.1} parent=11 // pred_check_branch
          %457 = sbr.rel (%p455) target = $region60
        $region59: #{tpu_custom_call.1} parent=11 // pred_region
          _
        $region60: #{tpu_custom_call.1} parent=11 // pred_fallthru
          _
      $region12: #{tpu_custom_call.1} parent=5 // pred_fallthru
        _
      %p458 = scmp.lt.s32.totalorder %s29, 2
      // Predicated region
      $region61: #{tpu_custom_call.1} parent=5 // pred_check
        %p459 = pneg %p458
      $region62: #{tpu_custom_call.1} parent=5 // pred_check_branch
        %461 = sbr.rel (%p459) target = $region64
      $region63: #{tpu_custom_call.1} parent=5 // pred_region
        // Predicated region
        $region65: #{tpu_custom_call.1} parent=63 // pred_check
          %p462 = pneg %p49
        $region66: #{tpu_custom_call.1} parent=63 // pred_check_branch
          %464 = sbr.rel (%p462) target = $region68
        $region67: #{tpu_custom_call.1} parent=63 // pred_region
          %p465 = scmp.lt.s32.totalorder %s29, 1
          %s466 = scalar_select %p465, %s29, 1
          %s467 = smul.addr %s466, 8
          %s468 = scalar_lea.vmem %s0, %s467
        $region68: #{tpu_custom_call.1} parent=63 // pred_fallthru
          _
        // Predicated region
        $region69: #{tpu_custom_call.1} parent=63 // pred_check
          %p469 = pneg %p75
        $region70: #{tpu_custom_call.1} parent=63 // pred_check_branch
          %471 = sbr.rel (%p469) target = $region72
        $region71: #{tpu_custom_call.1} parent=63 // pred_region
          %s472 = sand.u32 %s65, 1
          %s473 = scalar_lea.sflag [#allocation4], %s472
          %s474 = sand.u32 %s65, 1
          %s475 = scalar_lea.vmem [#allocation3], %s474
          %s477 = ssub.s32 16, 16
          %478 = vsyncadd %s473, %s477
          %s479 = smul.addr %s29, 16
          %s480 = scalar_lea.hbm %s1, %s479
          %s482 = sshll.u32 %s475, 4
          %s483 = int_to_ptr.vmem [resolvable:$true] %s482
          %485 = dma.hbm_to_vmem [thread:$0]  %s480, 16, %s483, %s473
        $region72: #{tpu_custom_call.1} parent=63 // pred_fallthru
          _
      $region64: #{tpu_custom_call.1} parent=5 // pred_fallthru
        _
      %p486 = scmp.le.s32.totalorder 1, %s29
      %p487 = scmp.lt.s32.totalorder %s29, 3
      %p488 = pnand %p486, %p487
      %p489 = pneg %p488
      // Predicated region
      $region73: #{tpu_custom_call.1} parent=5 // pred_check
        _
      $region74: #{tpu_custom_call.1} parent=5 // pred_check_branch
        %491 = sbr.rel (%p488) target = $region76
      $region75: #{tpu_custom_call.1} parent=5 // pred_region
        %s492 = ssub.s32 %s29, 1
        %s493 = sand.u32 %s68, 1
        %s494 = scalar_lea.sflag [#allocation4], %s493
        %s495 = sand.u32 %s68, 1
        %s496 = scalar_lea.vmem [#allocation3], %s495
        // Predicated region
        $region77: #{tpu_custom_call.1} parent=75 // pred_check
          %p497 = pneg %p81
        $region78: #{tpu_custom_call.1} parent=75 // pred_check_branch
          %499 = sbr.rel (%p497) target = $region80
        $region79: #{tpu_custom_call.1} parent=75 // pred_region
          %500 = dma.done %s494, 16
        $region80: #{tpu_custom_call.1} parent=75 // pred_fallthru
          _
        // Predicated region
        $region81: #{tpu_custom_call.1} parent=75 // pred_check
          %p501 = pneg %p102
        $region82: #{tpu_custom_call.1} parent=75 // pred_check_branch
          %503 = sbr.rel (%p501) target = $region84
        $region83: #{tpu_custom_call.1} parent=75 // pred_region
          %504 = dma.done [#allocation7], 16
        $region84: #{tpu_custom_call.1} parent=75 // pred_fallthru
          _
        // Predicated region
        $region85: #{tpu_custom_call.1} parent=75 // pred_check
          %p505 = pneg %p123
        $region86: #{tpu_custom_call.1} parent=75 // pred_check_branch
          %507 = sbr.rel (%p505) target = $region88
        $region87: #{tpu_custom_call.1} parent=75 // pred_region
          %508 = dma.done [#allocation7], 16
        $region88: #{tpu_custom_call.1} parent=75 // pred_fallthru
          _
        // Predicated region
        $region89: #{tpu_custom_call.1} parent=75 // pred_check
          %p509 = pneg %p165
        $region90: #{tpu_custom_call.1} parent=75 // pred_check_branch
          %511 = sbr.rel (%p509) target = $region92
        $region91: #{tpu_custom_call.1} parent=75 // pred_region
          %512 = dma.done [#allocation10], 16
        $region92: #{tpu_custom_call.1} parent=75 // pred_fallthru
          _
        // Predicated region
        $region93: #{tpu_custom_call.1} parent=75 // pred_check
          %p513 = pneg %p207
        $region94: #{tpu_custom_call.1} parent=75 // pred_check_branch
          %515 = sbr.rel (%p513) target = $region96
        $region95: #{tpu_custom_call.1} parent=75 // pred_region
          %516 = dma.done [#allocation10], 16
        $region96: #{tpu_custom_call.1} parent=75 // pred_fallthru
          _
        // Predicated region
        $region97: #{tpu_custom_call.1} parent=75 // pred_check
          %p517 = pneg %p228
        $region98: #{tpu_custom_call.1} parent=75 // pred_check_branch
          %519 = sbr.rel (%p517) target = $region100
        $region99: #{tpu_custom_call.1} parent=75 // pred_region
          %520 = dma.done [#allocation13], 16
        $region100: #{tpu_custom_call.1} parent=75 // pred_fallthru
          _
        // Predicated region
        $region101: #{tpu_custom_call.1} parent=75 // pred_check
          %p521 = pneg %p249
        $region102: #{tpu_custom_call.1} parent=75 // pred_check_branch
          %523 = sbr.rel (%p521) target = $region104
        $region103: #{tpu_custom_call.1} parent=75 // pred_region
          %524 = dma.done [#allocation13], 16
        $region104: #{tpu_custom_call.1} parent=75 // pred_fallthru
          _
        %p525 = scmp.lt.s32.totalorder %s34, 1
        %s526 = scalar_select %p525, %s34, 1
        %s527 = smul.addr %s526, 8
        %s528 = scalar_lea.vmem %s0, %s527
        %p529 = pneg %p55
        %p530 = pneg %p52
        %s531 = sand.u32 %s68, 1
        %s532 = scalar_lea.sflag [#allocation4], %s531
        %s533 = sand.u32 %s68, 1
        %s534 = scalar_lea.vmem [#allocation3], %s533
        %p535 = pneg %p81
        %p536 = pneg %p78
        %p537 = pneg %p102
        %p538 = pneg %p99
        %p539 = pneg %p123
        %p540 = pneg %p120
        %p541 = pneg %p144
        %p542 = pneg %p141
        %p543 = pneg %p165
        %p544 = pneg %p162
        %p545 = pneg %p186
        %p546 = pneg %p183
        %p547 = pneg %p207
        %p548 = pneg %p204
        %p549 = pneg %p228
        %p550 = pneg %p225
        %p551 = pneg %p249
        %p552 = pneg %p246
        %p553 = pneg %p270
        %p554 = pneg %p267
        %p555 = pneg %p291
        %p556 = pneg %p288
        %p557 = pneg %p312
        %p558 = pneg %p309
        %p559 = pneg %p333
        %p560 = pneg %p330
        %p561 = pneg %p359
        %p562 = pneg %p356
        %s563 = sand.u32 %s346, 1
        %s564 = scalar_lea.sflag [#allocation5], %s563
        %s565 = sand.u32 %s346, 1
        %s566 = smul.addr %s565, 8
        %s567 = scalar_lea.vmem [#allocation15], %s566
        %p568 = scmp.lt.s32.totalorder %s34, 1
        %s569 = scalar_select %p568, %s34, 1
        %s570 = smul.addr %s569, 8
        %s571 = scalar_lea.vmem %s0, %s570
        %v573 = vld [vmem:[%s571] sm:$0xff]
        %v574 = vld [vmem:[%s496] sm:$0x1]
        %vm575 = vcmask 261120
        %v576 = vsel %vm575, %v573, 0.0
        %577 = vadd.xlane.f32.xlu0 %v576
        %v578 = vpop.xlane.xlu0 %577
        %v579 = vrcp.pop 32.0
        %v580 = vmul.f32 %v578, %v579
        %v581 = vsub.f32 %v573, %v580
        %v582 = vmul.f32 %v581, %v581
        %v583 = vsel %vm575, %v582, 0.0
        %584 = vadd.xlane.f32.xlu0 %v583
        %v585 = vpop.xlane.xlu0 %584
        %v586 = vmul.f32 %v585, %v579
        %v587 = vadd.f32 %v586, 1e-06
        %v588 = vrsqrt.pop %v587
        %v589 = vmul.f32 %v581, %v588
        %v590 = vld [vmem:[#allocation6] sm:$0x1]
        %v592 = vlaneseq
        %v593 = vshrl.u32 %v592, 7
        %v594 = vsub.s32 0, %v593
        %v595 = vrot.slane %v590, %v594
        %v597 = vmul.f32 %v589, %v595
        %v598 = vld [vmem:[#allocation8] sm:$0x1]
        %v600 = vlaneseq
        %v601 = vshrl.u32 %v600, 7
        %v602 = vsub.s32 0, %v601
        %v603 = vrot.slane %v598, %v602
        %v605 = vadd.f32 %v597, %v603
        %v606 = vpack.c.bf16 %v605, %v605
        %v607 = vld [vmem:[%s4] sm:$0xf]
        %v608 = vld [vmem:[%s4 + $0x4] sm:$0xf]
        %v609 = vld [vmem:[%s4 + $0x8] sm:$0xf]
        %v610 = vld [vmem:[%s4 + $0xc] sm:$0xf]
        %v611 = vld [vmem:[#allocation9] sm:$0x1]
        %v613 = vlaneseq
        %v614 = vshrl.u32 %v613, 7
        %v615 = vsub.s32 0, %v614
        %v616 = vrot.slane %v611, %v615
        %v622 = vunpack.c.l.b16 %v607
        %v623 = vunpack.c.l.b16 %v608
        %v624 = vunpack.c.l.b16 %v609
        %v625 = vunpack.c.l.b16 %v610
        %v626 = vpack.c.b16 %v623, %v622
        %v627 = vpack.c.b16 %v625, %v624
        %v631 = vsel %vm575, %v606, 0
        %633 = vmatprep.subr.bf16.mxu0 0
        %634 = vmatpush1.bf16.msra.mxu0 0
        %635 = vmatprep.subr.bf16.mxu0 0
        %636 = vmatpush1.bf16.msra.mxu0 0
        %637 = vmatprep.subr.bf16.mxu0 0
        %638 = vmatpush1.bf16.msra.mxu0 0
        %639 = vmatprep.subr.bf16.mxu0 0
        %640 = vmatpush1.bf16.msra.mxu0 0
        %641 = vmatprep.subr.bf16.mxu0 0
        %642 = vmatpush1.bf16.msra.mxu0 0
        %643 = vmatprep.subr.bf16.mxu0 0
        %644 = vmatpush1.bf16.msra.mxu0 0
        %645 = vmatprep.subr.bf16.mxu0 0
        %646 = vmatpush1.bf16.msra.mxu0 %v627
        %647 = vmatprep.subr.bf16.mxu0 0
        %648 = vmatpush1.bf16.msra.mxu0 %v626
        %649 = vmatprep.subr.bf16.mxu0 0
        %650 = vmatpush2.bf16.msra.mxu0 0
        %651 = vmatprep.subr.bf16.mxu0 0
        %652 = vmatpush2.bf16.msra.mxu0 0
        %653 = vmatprep.subr.bf16.mxu0 0
        %654 = vmatpush2.bf16.msra.mxu0 0
        %655 = vmatprep.subr.bf16.mxu0 0
        %656 = vmatpush2.bf16.msra.mxu0 0
        %657 = vmatprep.subr.bf16.mxu0 0
        %658 = vmatpush2.bf16.msra.mxu0 0
        %659 = vmatprep.subr.bf16.mxu0 0
        %660 = vmatpush2.bf16.msra.mxu0 0
        %661 = vmatprep.subr.bf16.mxu0 0
        %662 = vmatpush2.bf16.msra.mxu0 0
        %663 = vmatprep.subr.bf16.mxu0 0
        %664 = vmatpush2.bf16.msra.mxu0 0
        %665 = vmatprep.mubr.bf16.mxu0 0
        %666 = vmatmul.mubr.bf16.gmra.mxu0 %v631
        %v667 = vpop.f32.mrf.mxu0
        %v668 = vadd.f32 %v616, %v667
        %v669 = vpop.f32.mrf.mxu0
        %v670 = vpop.f32.mrf.mxu0
        %v671 = vpop.f32.mrf.mxu0
        %672 = vdwg.mxu0
        %v673 = vmul.f32 %v668, 0.35355338
        %v674 = vpack.c.bf16 %v673, %v673
        %v675 = vpack.c.bf16 %v668, %v668
        %677 = vrot.lane.b32.xlu0 %v675, 96
        %v678 = vpop.permute.xlu0 %677
        %vm679 = vcmask 64512
        %v681 = vsel %vm679, %v674, 0
        %v684 = vsel %vm679, %v678, 0
        %686 = vmatprep.subr.bf16.mxu0 0
        %687 = vmatpush1.bf16.xpose.msra.mxu0 0
        %688 = vmatprep.subr.bf16.mxu0 0
        %689 = vmatpush1.bf16.xpose.msra.mxu0 0
        %690 = vmatprep.subr.bf16.mxu0 0
        %691 = vmatpush1.bf16.xpose.msra.mxu0 0
        %692 = vmatprep.subr.bf16.mxu0 0
        %693 = vmatpush1.bf16.xpose.msra.mxu0 0
        %694 = vmatprep.subr.bf16.mxu0 0
        %695 = vmatpush1.bf16.xpose.msra.mxu0 0
        %696 = vmatprep.subr.bf16.mxu0 0
        %697 = vmatpush1.bf16.xpose.msra.mxu0 0
        %698 = vmatprep.subr.bf16.mxu0 0
        %699 = vmatpush1.bf16.xpose.msra.mxu0 0
        %700 = vmatprep.subr.bf16.mxu0 0
        %701 = vmatpush1.bf16.xpose.msra.mxu0 %v684
        %702 = vmatprep.subr.bf16.mxu0 0
        %703 = vmatpush2.bf16.xpose.msra.mxu0 0
        %704 = vmatprep.subr.bf16.mxu0 0
        %705 = vmatpush2.bf16.xpose.msra.mxu0 0
        %706 = vmatprep.subr.bf16.mxu0 0
        %707 = vmatpush2.bf16.xpose.msra.mxu0 0
        %708 = vmatprep.subr.bf16.mxu0 0
        %709 = vmatpush2.bf16.xpose.msra.mxu0 0
        %710 = vmatprep.subr.bf16.mxu0 0
        %711 = vmatpush2.bf16.xpose.msra.mxu0 0
        %712 = vmatprep.subr.bf16.mxu0 0
        %713 = vmatpush2.bf16.xpose.msra.mxu0 0
        %714 = vmatprep.subr.bf16.mxu0 0
        %715 = vmatpush2.bf16.xpose.msra.mxu0 0
        %716 = vmatprep.subr.bf16.mxu0 0
        %717 = vmatpush2.bf16.xpose.msra.mxu0 0
        %718 = vmatprep.mubr.bf16.mxu0 0
        %719 = vmatmul.mubr.bf16.gmra.mxu0 %v681
        %v720 = vpop.f32.mrf.mxu0
        %v721 = vadd.f32 0.0, %v720
        %v722 = vpop.f32.mrf.mxu0
        %v723 = vpop.f32.mrf.mxu0
        %v724 = vpop.f32.mrf.mxu0
        %725 = vdwg.mxu0
        %vm726 = vcmp.gt.f32.partialorder %v574, 0.5
        %v727 = vsel %vm726, 1, 0
        %v728 = vlaneseq
        %v729 = vshrl.u32 %v728, 7
        %v730 = vsub.s32 0, %v729
        %v731 = vrot.slane %v727, %v730
        %vm732 = vcmp.eq.s32.totalorder %v731, 1
        %v733 = vsel %vm732, -1e+18, %v721
        %v734 = vsel %vm679, %v733, -inf
        %735 = vmax.xlane.f32.xlu0 %v734
        %v736 = vpop.xlane.xlu0 %735
        %v737 = vsub.f32 %v733, %v736
        %v738 = vmul.f32 %v737, 1.442695
        %v739 = vpow.pop %v738
        %v740 = vsel %vm679, %v739, 0.0
        %741 = vadd.xlane.f32.xlu0 %v740
        %v742 = vpop.xlane.xlu0 %741
        %v743 = vrcp.pop %v742
        %v744 = vmul.f32 %v739, %v743
        %v745 = vpack.c.bf16 %v744, %v744
        %746 = vrot.lane.b32.xlu0 %v675, 64
        %v747 = vpop.permute.xlu0 %746
        %v749 = vsel %vm679, %v745, 0
        %vm751 = vcmask 1043456
        %v753 = vsel %vm751, %v747, 0
        %755 = vmatprep.subr.bf16.mxu0 0
        %756 = vmatpush1.bf16.msra.mxu0 0
        %757 = vmatprep.subr.bf16.mxu0 0
        %758 = vmatpush1.bf16.msra.mxu0 0
        %759 = vmatprep.subr.bf16.mxu0 0
        %760 = vmatpush1.bf16.msra.mxu0 0
        %761 = vmatprep.subr.bf16.mxu0 0
        %762 = vmatpush1.bf16.msra.mxu0 0
        %763 = vmatprep.subr.bf16.mxu0 0
        %764 = vmatpush1.bf16.msra.mxu0 0
        %765 = vmatprep.subr.bf16.mxu0 0
        %766 = vmatpush1.bf16.msra.mxu0 0
        %767 = vmatprep.subr.bf16.mxu0 0
        %768 = vmatpush1.bf16.msra.mxu0 0
        %769 = vmatprep.subr.bf16.mxu0 0
        %770 = vmatpush1.bf16.msra.mxu0 %v753
        %771 = vmatprep.subr.bf16.mxu0 0
        %772 = vmatpush2.bf16.msra.mxu0 0
        %773 = vmatprep.subr.bf16.mxu0 0
        %774 = vmatpush2.bf16.msra.mxu0 0
        %775 = vmatprep.subr.bf16.mxu0 0
        %776 = vmatpush2.bf16.msra.mxu0 0
        %777 = vmatprep.subr.bf16.mxu0 0
        %778 = vmatpush2.bf16.msra.mxu0 0
        %779 = vmatprep.subr.bf16.mxu0 0
        %780 = vmatpush2.bf16.msra.mxu0 0
        %781 = vmatprep.subr.bf16.mxu0 0
        %782 = vmatpush2.bf16.msra.mxu0 0
        %783 = vmatprep.subr.bf16.mxu0 0
        %784 = vmatpush2.bf16.msra.mxu0 0
        %785 = vmatprep.subr.bf16.mxu0 0
        %786 = vmatpush2.bf16.msra.mxu0 0
        %787 = vmatprep.mubr.bf16.mxu0 0
        %788 = vmatmul.mubr.bf16.gmra.mxu0 %v749
        %v789 = vpop.f32.mrf.mxu0
        %v790 = vadd.f32 0.0, %v789
        %v791 = vpop.f32.mrf.mxu0
        %v792 = vpop.f32.mrf.mxu0
        %v793 = vpop.f32.mrf.mxu0
        %794 = vdwg.mxu0
        %795 = vst.msk [vmem:[#allocation2] sm:$0xff] %vm679, %v790
        %797 = vrot.lane.b32.xlu0 %v674, 120
        %v798 = vpop.permute.xlu0 %797
        %799 = vrot.lane.b32.xlu0 %v675, 88
        %v800 = vpop.permute.xlu0 %799
        %v802 = vsel %vm679, %v798, 0
        %v805 = vsel %vm679, %v800, 0
        %807 = vmatprep.subr.bf16.mxu0 0
        %808 = vmatpush1.bf16.xpose.msra.mxu0 0
        %809 = vmatprep.subr.bf16.mxu0 0
        %810 = vmatpush1.bf16.xpose.msra.mxu0 0
        %811 = vmatprep.subr.bf16.mxu0 0
        %812 = vmatpush1.bf16.xpose.msra.mxu0 0
        %813 = vmatprep.subr.bf16.mxu0 0
        %814 = vmatpush1.bf16.xpose.msra.mxu0 0
        %815 = vmatprep.subr.bf16.mxu0 0
        %816 = vmatpush1.bf16.xpose.msra.mxu0 0
        %817 = vmatprep.subr.bf16.mxu0 0
        %818 = vmatpush1.bf16.xpose.msra.mxu0 0
        %819 = vmatprep.subr.bf16.mxu0 0
        %820 = vmatpush1.bf16.xpose.msra.mxu0 0
        %821 = vmatprep.subr.bf16.mxu0 0
        %822 = vmatpush1.bf16.xpose.msra.mxu0 %v805
        %823 = vmatprep.subr.bf16.mxu0 0
        %824 = vmatpush2.bf16.xpose.msra.mxu0 0
        %825 = vmatprep.subr.bf16.mxu0 0
        %826 = vmatpush2.bf16.xpose.msra.mxu0 0
        %827 = vmatprep.subr.bf16.mxu0 0
        %828 = vmatpush2.bf16.xpose.msra.mxu0 0
        %829 = vmatprep.subr.bf16.mxu0 0
        %830 = vmatpush2.bf16.xpose.msra.mxu0 0
        %831 = vmatprep.subr.bf16.mxu0 0
        %832 = vmatpush2.bf16.xpose.msra.mxu0 0
        %833 = vmatprep.subr.bf16.mxu0 0
        %834 = vmatpush2.bf16.xpose.msra.mxu0 0
        %835 = vmatprep.subr.bf16.mxu0 0
        %836 = vmatpush2.bf16.xpose.msra.mxu0 0
        %837 = vmatprep.subr.bf16.mxu0 0
        %838 = vmatpush2.bf16.xpose.msra.mxu0 0
        %839 = vmatprep.mubr.bf16.mxu0 0
        %840 = vmatmul.mubr.bf16.gmra.mxu0 %v802
        %v841 = vpop.f32.mrf.mxu0
        %v842 = vadd.f32 0.0, %v841
        %v843 = vpop.f32.mrf.mxu0
        %v844 = vpop.f32.mrf.mxu0
        %v845 = vpop.f32.mrf.mxu0
        %846 = vdwg.mxu0
        %v847 = vsel %vm732, -1e+18, %v842
        %v848 = vsel %vm679, %v847, -inf
        %849 = vmax.xlane.f32.xlu0 %v848
        %v850 = vpop.xlane.xlu0 %849
        %v851 = vsub.f32 %v847, %v850
        %v852 = vmul.f32 %v851, 1.442695
        %v853 = vpow.pop %v852
        %v854 = vsel %vm679, %v853, 0.0
        %855 = vadd.xlane.f32.xlu0 %v854
        %v856 = vpop.xlane.xlu0 %855
        %v857 = vrcp.pop %v856
        %v858 = vmul.f32 %v853, %v857
        %v859 = vpack.c.bf16 %v858, %v858
        %860 = vrot.lane.b32.xlu0 %v675, 56
        %v861 = vpop.permute.xlu0 %860
        %v863 = vsel %vm679, %v859, 0
        %v866 = vsel %vm751, %v861, 0
        %868 = vmatprep.subr.bf16.mxu0 0
        %869 = vmatpush1.bf16.msra.mxu0 0
        %870 = vmatprep.subr.bf16.mxu0 0
        %871 = vmatpush1.bf16.msra.mxu0 0
        %872 = vmatprep.subr.bf16.mxu0 0
        %873 = vmatpush1.bf16.msra.mxu0 0
        %874 = vmatprep.subr.bf16.mxu0 0
        %875 = vmatpush1.bf16.msra.mxu0 0
        %876 = vmatprep.subr.bf16.mxu0 0
        %877 = vmatpush1.bf16.msra.mxu0 0
        %878 = vmatprep.subr.bf16.mxu0 0
        %879 = vmatpush1.bf16.msra.mxu0 0
        %880 = vmatprep.subr.bf16.mxu0 0
        %881 = vmatpush1.bf16.msra.mxu0 0
        %882 = vmatprep.subr.bf16.mxu0 0
        %883 = vmatpush1.bf16.msra.mxu0 %v866
        %884 = vmatprep.subr.bf16.mxu0 0
        %885 = vmatpush2.bf16.msra.mxu0 0
        %886 = vmatprep.subr.bf16.mxu0 0
        %887 = vmatpush2.bf16.msra.mxu0 0
        %888 = vmatprep.subr.bf16.mxu0 0
        %889 = vmatpush2.bf16.msra.mxu0 0
        %890 = vmatprep.subr.bf16.mxu0 0
        %891 = vmatpush2.bf16.msra.mxu0 0
        %892 = vmatprep.subr.bf16.mxu0 0
        %893 = vmatpush2.bf16.msra.mxu0 0
        %894 = vmatprep.subr.bf16.mxu0 0
        %895 = vmatpush2.bf16.msra.mxu0 0
        %896 = vmatprep.subr.bf16.mxu0 0
        %897 = vmatpush2.bf16.msra.mxu0 0
        %898 = vmatprep.subr.bf16.mxu0 0
        %899 = vmatpush2.bf16.msra.mxu0 0
        %900 = vmatprep.mubr.bf16.mxu0 0
        %901 = vmatmul.mubr.bf16.gmra.mxu0 %v863
        %v902 = vpop.f32.mrf.mxu0
        %v903 = vadd.f32 0.0, %v902
        %v904 = vpop.f32.mrf.mxu0
        %v905 = vpop.f32.mrf.mxu0
        %v906 = vpop.f32.mrf.mxu0
        %907 = vdwg.mxu0
        %909 = vrot.lane.b32.xlu0 %v903, 8
        %v910 = vpop.permute.xlu0 %909
        %vm912 = vcmask 130112
        %913 = vst.msk [vmem:[#allocation2] sm:$0xff] %vm912, %v910
        %914 = vrot.lane.b32.xlu0 %v674, 112
        %v915 = vpop.permute.xlu0 %914
        %916 = vrot.lane.b32.xlu0 %v675, 80
        %v917 = vpop.permute.xlu0 %916
        %v919 = vsel %vm679, %v915, 0
        %v922 = vsel %vm679, %v917, 0
        %924 = vmatprep.subr.bf16.mxu0 0
        %925 = vmatpush1.bf16.xpose.msra.mxu0 0
        %926 = vmatprep.subr.bf16.mxu0 0
        %927 = vmatpush1.bf16.xpose.msra.mxu0 0
        %928 = vmatprep.subr.bf16.mxu0 0
        %929 = vmatpush1.bf16.xpose.msra.mxu0 0
        %930 = vmatprep.subr.bf16.mxu0 0
        %931 = vmatpush1.bf16.xpose.msra.mxu0 0
        %932 = vmatprep.subr.bf16.mxu0 0
        %933 = vmatpush1.bf16.xpose.msra.mxu0 0
        %934 = vmatprep.subr.bf16.mxu0 0
        %935 = vmatpush1.bf16.xpose.msra.mxu0 0
        %936 = vmatprep.subr.bf16.mxu0 0
        %937 = vmatpush1.bf16.xpose.msra.mxu0 0
        %938 = vmatprep.subr.bf16.mxu0 0
        %939 = vmatpush1.bf16.xpose.msra.mxu0 %v922
        %940 = vmatprep.subr.bf16.mxu0 0
        %941 = vmatpush2.bf16.xpose.msra.mxu0 0
        %942 = vmatprep.subr.bf16.mxu0 0
        %943 = vmatpush2.bf16.xpose.msra.mxu0 0
        %944 = vmatprep.subr.bf16.mxu0 0
        %945 = vmatpush2.bf16.xpose.msra.mxu0 0
        %946 = vmatprep.subr.bf16.mxu0 0
        %947 = vmatpush2.bf16.xpose.msra.mxu0 0
        %948 = vmatprep.subr.bf16.mxu0 0
        %949 = vmatpush2.bf16.xpose.msra.mxu0 0
        %950 = vmatprep.subr.bf16.mxu0 0
        %951 = vmatpush2.bf16.xpose.msra.mxu0 0
        %952 = vmatprep.subr.bf16.mxu0 0
        %953 = vmatpush2.bf16.xpose.msra.mxu0 0
        %954 = vmatprep.subr.bf16.mxu0 0
        %955 = vmatpush2.bf16.xpose.msra.mxu0 0
        %956 = vmatprep.mubr.bf16.mxu0 0
        %957 = vmatmul.mubr.bf16.gmra.mxu0 %v919
        %v958 = vpop.f32.mrf.mxu0
        %v959 = vadd.f32 0.0, %v958
        %v960 = vpop.f32.mrf.mxu0
        %v961 = vpop.f32.mrf.mxu0
        %v962 = vpop.f32.mrf.mxu0
        %963 = vdwg.mxu0
        %v964 = vsel %vm732, -1e+18, %v959
        %v965 = vsel %vm679, %v964, -inf
        %966 = vmax.xlane.f32.xlu0 %v965
        %v967 = vpop.xlane.xlu0 %966
        %v968 = vsub.f32 %v964, %v967
        %v969 = vmul.f32 %v968, 1.442695
        %v970 = vpow.pop %v969
        %v971 = vsel %vm679, %v970, 0.0
        %972 = vadd.xlane.f32.xlu0 %v971
        %v973 = vpop.xlane.xlu0 %972
        %v974 = vrcp.pop %v973
        %v975 = vmul.f32 %v970, %v974
        %v976 = vpack.c.bf16 %v975, %v975
        %977 = vrot.lane.b32.xlu0 %v675, 48
        %v978 = vpop.permute.xlu0 %977
        %v980 = vsel %vm679, %v976, 0
        %v983 = vsel %vm751, %v978, 0
        %985 = vmatprep.subr.bf16.mxu0 0
        %986 = vmatpush1.bf16.msra.mxu0 0
        %987 = vmatprep.subr.bf16.mxu0 0
        %988 = vmatpush1.bf16.msra.mxu0 0
        %989 = vmatprep.subr.bf16.mxu0 0
        %990 = vmatpush1.bf16.msra.mxu0 0
        %991 = vmatprep.subr.bf16.mxu0 0
        %992 = vmatpush1.bf16.msra.mxu0 0
        %993 = vmatprep.subr.bf16.mxu0 0
        %994 = vmatpush1.bf16.msra.mxu0 0
        %995 = vmatprep.subr.bf16.mxu0 0
        %996 = vmatpush1.bf16.msra.mxu0 0
        %997 = vmatprep.subr.bf16.mxu0 0
        %998 = vmatpush1.bf16.msra.mxu0 0
        %999 = vmatprep.subr.bf16.mxu0 0
        %1000 = vmatpush1.bf16.msra.mxu0 %v983
        %1001 = vmatprep.subr.bf16.mxu0 0
        %1002 = vmatpush2.bf16.msra.mxu0 0
        %1003 = vmatprep.subr.bf16.mxu0 0
        %1004 = vmatpush2.bf16.msra.mxu0 0
        %1005 = vmatprep.subr.bf16.mxu0 0
        %1006 = vmatpush2.bf16.msra.mxu0 0
        %1007 = vmatprep.subr.bf16.mxu0 0
        %1008 = vmatpush2.bf16.msra.mxu0 0
        %1009 = vmatprep.subr.bf16.mxu0 0
        %1010 = vmatpush2.bf16.msra.mxu0 0
        %1011 = vmatprep.subr.bf16.mxu0 0
        %1012 = vmatpush2.bf16.msra.mxu0 0
        %1013 = vmatprep.subr.bf16.mxu0 0
        %1014 = vmatpush2.bf16.msra.mxu0 0
        %1015 = vmatprep.subr.bf16.mxu0 0
        %1016 = vmatpush2.bf16.msra.mxu0 0
        %1017 = vmatprep.mubr.bf16.mxu0 0
        %1018 = vmatmul.mubr.bf16.gmra.mxu0 %v980
        %v1019 = vpop.f32.mrf.mxu0
        %v1020 = vadd.f32 0.0, %v1019
        %v1021 = vpop.f32.mrf.mxu0
        %v1022 = vpop.f32.mrf.mxu0
        %v1023 = vpop.f32.mrf.mxu0
        %1024 = vdwg.mxu0
        %1026 = vrot.lane.b32.xlu0 %v1020, 16
        %v1027 = vpop.permute.xlu0 %1026
        %vm1029 = vcmask 195712
        %1030 = vst.msk [vmem:[#allocation2] sm:$0xff] %vm1029, %v1027
        %1031 = vrot.lane.b32.xlu0 %v674, 104
        %v1032 = vpop.permute.xlu0 %1031
        %1033 = vrot.lane.b32.xlu0 %v675, 72
        %v1034 = vpop.permute.xlu0 %1033
        %v1036 = vsel %vm679, %v1032, 0
        %v1039 = vsel %vm679, %v1034, 0
        %1041 = vmatprep.subr.bf16.mxu0 0
        %1042 = vmatpush1.bf16.xpose.msra.mxu0 0
        %1043 = vmatprep.subr.bf16.mxu0 0
        %1044 = vmatpush1.bf16.xpose.msra.mxu0 0
        %1045 = vmatprep.subr.bf16.mxu0 0
        %1046 = vmatpush1.bf16.xpose.msra.mxu0 0
        %1047 = vmatprep.subr.bf16.mxu0 0
        %1048 = vmatpush1.bf16.xpose.msra.mxu0 0
        %1049 = vmatprep.subr.bf16.mxu0 0
        %1050 = vmatpush1.bf16.xpose.msra.mxu0 0
        %1051 = vmatprep.subr.bf16.mxu0 0
        %1052 = vmatpush1.bf16.xpose.msra.mxu0 0
        %1053 = vmatprep.subr.bf16.mxu0 0
        %1054 = vmatpush1.bf16.xpose.msra.mxu0 0
        %1055 = vmatprep.subr.bf16.mxu0 0
        %1056 = vmatpush1.bf16.xpose.msra.mxu0 %v1039
        %1057 = vmatprep.subr.bf16.mxu0 0
        %1058 = vmatpush2.bf16.xpose.msra.mxu0 0
        %1059 = vmatprep.subr.bf16.mxu0 0
        %1060 = vmatpush2.bf16.xpose.msra.mxu0 0
        %1061 = vmatprep.subr.bf16.mxu0 0
        %1062 = vmatpush2.bf16.xpose.msra.mxu0 0
        %1063 = vmatprep.subr.bf16.mxu0 0
        %1064 = vmatpush2.bf16.xpose.msra.mxu0 0
        %1065 = vmatprep.subr.bf16.mxu0 0
        %1066 = vmatpush2.bf16.xpose.msra.mxu0 0
        %1067 = vmatprep.subr.bf16.mxu0 0
        %1068 = vmatpush2.bf16.xpose.msra.mxu0 0
        %1069 = vmatprep.subr.bf16.mxu0 0
        %1070 = vmatpush2.bf16.xpose.msra.mxu0 0
        %1071 = vmatprep.subr.bf16.mxu0 0
        %1072 = vmatpush2.bf16.xpose.msra.mxu0 0
        %1073 = vmatprep.mubr.bf16.mxu0 0
        %1074 = vmatmul.mubr.bf16.gmra.mxu0 %v1036
        %v1075 = vpop.f32.mrf.mxu0
        %v1076 = vadd.f32 0.0, %v1075
        %v1077 = vpop.f32.mrf.mxu0
        %v1078 = vpop.f32.mrf.mxu0
        %v1079 = vpop.f32.mrf.mxu0
        %1080 = vdwg.mxu0
        %v1081 = vsel %vm732, -1e+18, %v1076
        %v1082 = vsel %vm679, %v1081, -inf
        %1083 = vmax.xlane.f32.xlu0 %v1082
        %v1084 = vpop.xlane.xlu0 %1083
        %v1085 = vsub.f32 %v1081, %v1084
        %v1086 = vmul.f32 %v1085, 1.442695
        %v1087 = vpow.pop %v1086
        %v1088 = vsel %vm679, %v1087, 0.0
        %1089 = vadd.xlane.f32.xlu0 %v1088
        %v1090 = vpop.xlane.xlu0 %1089
        %v1091 = vrcp.pop %v1090
        %v1092 = vmul.f32 %v1087, %v1091
        %v1093 = vpack.c.bf16 %v1092, %v1092
        %1094 = vrot.lane.b32.xlu0 %v675, 40
        %v1095 = vpop.permute.xlu0 %1094
        %v1097 = vsel %vm679, %v1093, 0
        %v1100 = vsel %vm751, %v1095, 0
        %1102 = vmatprep.subr.bf16.mxu0 0
        %1103 = vmatpush1.bf16.msra.mxu0 0
        %1104 = vmatprep.subr.bf16.mxu0 0
        %1105 = vmatpush1.bf16.msra.mxu0 0
        %1106 = vmatprep.subr.bf16.mxu0 0
        %1107 = vmatpush1.bf16.msra.mxu0 0
        %1108 = vmatprep.subr.bf16.mxu0 0
        %1109 = vmatpush1.bf16.msra.mxu0 0
        %1110 = vmatprep.subr.bf16.mxu0 0
        %1111 = vmatpush1.bf16.msra.mxu0 0
        %1112 = vmatprep.subr.bf16.mxu0 0
        %1113 = vmatpush1.bf16.msra.mxu0 0
        %1114 = vmatprep.subr.bf16.mxu0 0
        %1115 = vmatpush1.bf16.msra.mxu0 0
        %1116 = vmatprep.subr.bf16.mxu0 0
        %1117 = vmatpush1.bf16.msra.mxu0 %v1100
        %1118 = vmatprep.subr.bf16.mxu0 0
        %1119 = vmatpush2.bf16.msra.mxu0 0
        %1120 = vmatprep.subr.bf16.mxu0 0
        %1121 = vmatpush2.bf16.msra.mxu0 0
        %1122 = vmatprep.subr.bf16.mxu0 0
        %1123 = vmatpush2.bf16.msra.mxu0 0
        %1124 = vmatprep.subr.bf16.mxu0 0
        %1125 = vmatpush2.bf16.msra.mxu0 0
        %1126 = vmatprep.subr.bf16.mxu0 0
        %1127 = vmatpush2.bf16.msra.mxu0 0
        %1128 = vmatprep.subr.bf16.mxu0 0
        %1129 = vmatpush2.bf16.msra.mxu0 0
        %1130 = vmatprep.subr.bf16.mxu0 0
        %1131 = vmatpush2.bf16.msra.mxu0 0
        %1132 = vmatprep.subr.bf16.mxu0 0
        %1133 = vmatpush2.bf16.msra.mxu0 0
        %1134 = vmatprep.mubr.bf16.mxu0 0
        %1135 = vmatmul.mubr.bf16.gmra.mxu0 %v1097
        %v1136 = vpop.f32.mrf.mxu0
        %v1137 = vadd.f32 0.0, %v1136
        %v1138 = vpop.f32.mrf.mxu0
        %v1139 = vpop.f32.mrf.mxu0
        %v1140 = vpop.f32.mrf.mxu0
        %1141 = vdwg.mxu0
        %1143 = vrot.lane.b32.xlu0 %v1137, 24
        %v1144 = vpop.permute.xlu0 %1143
        %vm1146 = vcmask 261312
        %1147 = vst.msk [vmem:[#allocation2] sm:$0xff] %vm1146, %v1144
        %v1148 = vld [vmem:[#allocation2] sm:$0xff]
        %v1149 = vpack.c.bf16 %v1148, %v1148
        %v1150 = vld [vmem:[%s6] sm:$0xf]
        %v1151 = vld [vmem:[%s6 + $0x4] sm:$0xf]
        %v1152 = vld [vmem:[%s6 + $0x8] sm:$0xf]
        %v1153 = vld [vmem:[%s6 + $0xc] sm:$0xf]
        %v1154 = vld [vmem:[#allocation11] sm:$0x1]
        %v1156 = vlaneseq
        %v1157 = vshrl.u32 %v1156, 7
        %v1158 = vsub.s32 0, %v1157
        %v1159 = vrot.slane %v1154, %v1158
        %v1165 = vunpack.c.l.b16 %v1150
        %v1166 = vunpack.c.l.b16 %v1151
        %v1167 = vunpack.c.l.b16 %v1152
        %v1168 = vunpack.c.l.b16 %v1153
        %v1169 = vpack.c.b16 %v1166, %v1165
        %v1170 = vpack.c.b16 %v1168, %v1167
        %v1174 = vsel %vm575, %v1149, 0
        %1176 = vmatprep.subr.bf16.mxu0 0
        %1177 = vmatpush1.bf16.msra.mxu0 0
        %1178 = vmatprep.subr.bf16.mxu0 0
        %1179 = vmatpush1.bf16.msra.mxu0 0
        %1180 = vmatprep.subr.bf16.mxu0 0
        %1181 = vmatpush1.bf16.msra.mxu0 0
        %1182 = vmatprep.subr.bf16.mxu0 0
        %1183 = vmatpush1.bf16.msra.mxu0 0
        %1184 = vmatprep.subr.bf16.mxu0 0
        %1185 = vmatpush1.bf16.msra.mxu0 0
        %1186 = vmatprep.subr.bf16.mxu0 0
        %1187 = vmatpush1.bf16.msra.mxu0 0
        %1188 = vmatprep.subr.bf16.mxu0 0
        %1189 = vmatpush1.bf16.msra.mxu0 %v1170
        %1190 = vmatprep.subr.bf16.mxu0 0
        %1191 = vmatpush1.bf16.msra.mxu0 %v1169
        %1192 = vmatprep.subr.bf16.mxu0 0
        %1193 = vmatpush2.bf16.msra.mxu0 0
        %1194 = vmatprep.subr.bf16.mxu0 0
        %1195 = vmatpush2.bf16.msra.mxu0 0
        %1196 = vmatprep.subr.bf16.mxu0 0
        %1197 = vmatpush2.bf16.msra.mxu0 0
        %1198 = vmatprep.subr.bf16.mxu0 0
        %1199 = vmatpush2.bf16.msra.mxu0 0
        %1200 = vmatprep.subr.bf16.mxu0 0
        %1201 = vmatpush2.bf16.msra.mxu0 0
        %1202 = vmatprep.subr.bf16.mxu0 0
        %1203 = vmatpush2.bf16.msra.mxu0 0
        %1204 = vmatprep.subr.bf16.mxu0 0
        %1205 = vmatpush2.bf16.msra.mxu0 0
        %1206 = vmatprep.subr.bf16.mxu0 0
        %1207 = vmatpush2.bf16.msra.mxu0 0
        %1208 = vmatprep.mubr.bf16.mxu0 0
        %1209 = vmatmul.mubr.bf16.gmra.mxu0 %v1174
        %v1210 = vpop.f32.mrf.mxu0
        %v1211 = vadd.f32 %v1159, %v1210
        %v1212 = vpop.f32.mrf.mxu0
        %v1213 = vpop.f32.mrf.mxu0
        %v1214 = vpop.f32.mrf.mxu0
        %1215 = vdwg.mxu0
        %v1216 = vadd.f32 %v1211, %v573
        %v1217 = vsel %vm575, %v1216, 0.0
        %1218 = vadd.xlane.f32.xlu0 %v1217
        %v1219 = vpop.xlane.xlu0 %1218
        %v1220 = vmul.f32 %v1219, %v579
        %v1221 = vsub.f32 %v1216, %v1220
        %v1222 = vmul.f32 %v1221, %v1221
        %v1223 = vsel %vm575, %v1222, 0.0
        %1224 = vadd.xlane.f32.xlu0 %v1223
        %v1225 = vpop.xlane.xlu0 %1224
        %v1226 = vmul.f32 %v1225, %v579
        %v1227 = vadd.f32 %v1226, 1e-06
        %v1228 = vrsqrt.pop %v1227
        %v1229 = vmul.f32 %v1221, %v1228
        %v1230 = vld [vmem:[#allocation12] sm:$0x1]
        %v1232 = vlaneseq
        %v1233 = vshrl.u32 %v1232, 7
        %v1234 = vsub.s32 0, %v1233
        %v1235 = vrot.slane %v1230, %v1234
        %v1237 = vmul.f32 %v1229, %v1235
        %v1238 = vld [vmem:[#allocation14] sm:$0x1]
        %v1240 = vlaneseq
        %v1241 = vshrl.u32 %v1240, 7
        %v1242 = vsub.s32 0, %v1241
        %v1243 = vrot.slane %v1238, %v1242
        %v1245 = vadd.f32 %v1237, %v1243
        %v1246 = vpack.c.bf16 %v1245, %v1245
        %v1247 = vld [vmem:[%s10] sm:$0xf]
        %v1248 = vld [vmem:[%s10 + $0x4] sm:$0xf]
        %v1249 = vld [vmem:[%s10 + $0x8] sm:$0xf]
        %v1250 = vld [vmem:[%s10 + $0xc] sm:$0xf]
        %v1251 = vld [vmem:[%s11] sm:$0x1]
        %v1253 = vlaneseq
        %v1254 = vshrl.u32 %v1253, 7
        %v1255 = vsub.s32 0, %v1254
        %v1256 = vrot.slane %v1251, %v1255
        %v1262 = vunpack.c.l.b16 %v1247
        %v1263 = vunpack.c.l.b16 %v1248
        %v1264 = vunpack.c.l.b16 %v1249
        %v1265 = vunpack.c.l.b16 %v1250
        %v1266 = vpack.c.b16 %v1263, %v1262
        %v1267 = vpack.c.b16 %v1265, %v1264
        %v1271 = vsel %vm575, %v1246, 0
        %1273 = vmatprep.subr.bf16.mxu0 0
        %1274 = vmatpush1.bf16.msra.mxu0 0
        %1275 = vmatprep.subr.bf16.mxu0 0
        %1276 = vmatpush1.bf16.msra.mxu0 0
        %1277 = vmatprep.subr.bf16.mxu0 0
        %1278 = vmatpush1.bf16.msra.mxu0 0
        %1279 = vmatprep.subr.bf16.mxu0 0
        %1280 = vmatpush1.bf16.msra.mxu0 0
        %1281 = vmatprep.subr.bf16.mxu0 0
        %1282 = vmatpush1.bf16.msra.mxu0 0
        %1283 = vmatprep.subr.bf16.mxu0 0
        %1284 = vmatpush1.bf16.msra.mxu0 0
        %1285 = vmatprep.subr.bf16.mxu0 0
        %1286 = vmatpush1.bf16.msra.mxu0 %v1267
        %1287 = vmatprep.subr.bf16.mxu0 0
        %1288 = vmatpush1.bf16.msra.mxu0 %v1266
        %1289 = vmatprep.subr.bf16.mxu0 0
        %1290 = vmatpush2.bf16.msra.mxu0 0
        %1291 = vmatprep.subr.bf16.mxu0 0
        %1292 = vmatpush2.bf16.msra.mxu0 0
        %1293 = vmatprep.subr.bf16.mxu0 0
        %1294 = vmatpush2.bf16.msra.mxu0 0
        %1295 = vmatprep.subr.bf16.mxu0 0
        %1296 = vmatpush2.bf16.msra.mxu0 0
        %1297 = vmatprep.subr.bf16.mxu0 0
        %1298 = vmatpush2.bf16.msra.mxu0 0
        %1299 = vmatprep.subr.bf16.mxu0 0
        %1300 = vmatpush2.bf16.msra.mxu0 0
        %1301 = vmatprep.subr.bf16.mxu0 0
        %1302 = vmatpush2.bf16.msra.mxu0 0
        %1303 = vmatprep.subr.bf16.mxu0 0
        %1304 = vmatpush2.bf16.msra.mxu0 0
        %1305 = vmatprep.mubr.bf16.mxu0 0
        %1306 = vmatmul.mubr.bf16.gmra.mxu0 %v1271
        %v1307 = vpop.f32.mrf.mxu0
        %v1308 = vadd.f32 %v1256, %v1307
        %v1309 = vpop.f32.mrf.mxu0
        %v1310 = vpop.f32.mrf.mxu0
        %v1311 = vpop.f32.mrf.mxu0
        %1312 = vdwg.mxu0
        %v1313 = vmax.f32 %v1308, 0.0
        %v1314 = vpack.c.bf16 %v1313, %v1313
        %v1315 = vld [vmem:[%s12] sm:$0xf]
        %v1316 = vld [vmem:[%s12 + $0x4] sm:$0xf]
        %v1317 = vld [vmem:[%s12 + $0x8] sm:$0xf]
        %v1318 = vld [vmem:[%s12 + $0xc] sm:$0xf]
        %v1319 = vld [vmem:[%s12 + $0x10] sm:$0xf]
        %v1320 = vld [vmem:[%s12 + $0x14] sm:$0xf]
        %v1321 = vld [vmem:[%s12 + $0x18] sm:$0xf]
        %v1322 = vld [vmem:[%s12 + $0x1c] sm:$0xf]
        %v1323 = vld [vmem:[%s13] sm:$0x1]
        %v1325 = vlaneseq
        %v1326 = vshrl.u32 %v1325, 7
        %v1327 = vsub.s32 0, %v1326
        %v1328 = vrot.slane %v1323, %v1327
        %v1338 = vunpack.c.l.b16 %v1315
        %v1339 = vunpack.c.l.b16 %v1316
        %v1340 = vunpack.c.l.b16 %v1317
        %v1341 = vunpack.c.l.b16 %v1318
        %v1342 = vunpack.c.l.b16 %v1319
        %v1343 = vunpack.c.l.b16 %v1320
        %v1344 = vunpack.c.l.b16 %v1321
        %v1345 = vunpack.c.l.b16 %v1322
        %v1346 = vpack.c.b16 %v1339, %v1338
        %v1347 = vpack.c.b16 %v1341, %v1340
        %v1348 = vpack.c.b16 %v1343, %v1342
        %v1349 = vpack.c.b16 %v1345, %v1344
        %vm1354 = vcmask 523264
        %v1356 = vsel %vm1354, %v1314, 0
        %1358 = vmatprep.subr.bf16.mxu0 0
        %1359 = vmatpush1.bf16.msra.mxu0 0
        %1360 = vmatprep.subr.bf16.mxu0 0
        %1361 = vmatpush1.bf16.msra.mxu0 0
        %1362 = vmatprep.subr.bf16.mxu0 0
        %1363 = vmatpush1.bf16.msra.mxu0 0
        %1364 = vmatprep.subr.bf16.mxu0 0
        %1365 = vmatpush1.bf16.msra.mxu0 0
        %1366 = vmatprep.subr.bf16.mxu0 0
        %1367 = vmatpush1.bf16.msra.mxu0 %v1349
        %1368 = vmatprep.subr.bf16.mxu0 0
        %1369 = vmatpush1.bf16.msra.mxu0 %v1348
        %1370 = vmatprep.subr.bf16.mxu0 0
        %1371 = vmatpush1.bf16.msra.mxu0 %v1347
        %1372 = vmatprep.subr.bf16.mxu0 0
        %1373 = vmatpush1.bf16.msra.mxu0 %v1346
        %1374 = vmatprep.subr.bf16.mxu0 0
        %1375 = vmatpush2.bf16.msra.mxu0 0
        %1376 = vmatprep.subr.bf16.mxu0 0
        %1377 = vmatpush2.bf16.msra.mxu0 0
        %1378 = vmatprep.subr.bf16.mxu0 0
        %1379 = vmatpush2.bf16.msra.mxu0 0
        %1380 = vmatprep.subr.bf16.mxu0 0
        %1381 = vmatpush2.bf16.msra.mxu0 0
        %1382 = vmatprep.subr.bf16.mxu0 0
        %1383 = vmatpush2.bf16.msra.mxu0 0
        %1384 = vmatprep.subr.bf16.mxu0 0
        %1385 = vmatpush2.bf16.msra.mxu0 0
        %1386 = vmatprep.subr.bf16.mxu0 0
        %1387 = vmatpush2.bf16.msra.mxu0 0
        %1388 = vmatprep.subr.bf16.mxu0 0
        %1389 = vmatpush2.bf16.msra.mxu0 0
        %1390 = vmatprep.mubr.bf16.mxu0 0
        %1391 = vmatmul.mubr.bf16.gmra.mxu0 %v1356
        %v1392 = vpop.f32.mrf.mxu0
        %v1393 = vadd.f32 %v1328, %v1392
        %v1394 = vpop.f32.mrf.mxu0
        %v1395 = vpop.f32.mrf.mxu0
        %v1396 = vpop.f32.mrf.mxu0
        %1397 = vdwg.mxu0
        %v1398 = vadd.f32 %v1393, %v1216
        %1399 = vst.msk [vmem:[%s567] sm:$0xff] %vm575, %v1398
        %s1400 = sand.u32 %s346, 1
        %s1401 = scalar_lea.sflag [#allocation5], %s1400
        %s1402 = sand.u32 %s346, 1
        %s1403 = smul.addr %s1402, 8
        %s1404 = scalar_lea.vmem [#allocation15], %s1403
        // Predicated region
        $region105: #{tpu_custom_call.1} parent=75 // pred_check
          %p1405 = pneg %p356
        $region106: #{tpu_custom_call.1} parent=75 // pred_check_branch
          %1407 = sbr.rel (%p1405) target = $region108
        $region107: #{tpu_custom_call.1} parent=75 // pred_region
          %s1409 = ssub.s32 128, 128
          %1410 = vsyncadd %s1401, %s1409
          %s1411 = smul.addr %s34, 128
          %s1412 = scalar_lea.hbm %s14, %s1411
          %s1414 = sshll.u32 %s1404, 4
          %s1415 = int_to_ptr.vmem [resolvable:$true] %s1414
          %1417 = dma.vmem_to_hbm [thread:$0]  %s1415, 128, %s1412, %s1401
        $region108: #{tpu_custom_call.1} parent=75 // pred_fallthru
          _
      $region76: #{tpu_custom_call.1} parent=5 // pred_fallthru
        _
      %p1418 = scmp.le.s32.totalorder 2, %s29
      // Predicated region
      $region109: #{tpu_custom_call.1} parent=5 // pred_check
        %p1419 = pneg %p1418
      $region110: #{tpu_custom_call.1} parent=5 // pred_check_branch
        %1421 = sbr.rel (%p1419) target = $region112
      $region111: #{tpu_custom_call.1} parent=5 // pred_region
        %s1422 = ssub.s32 %s29, 2
        // Predicated region
        $region113: #{tpu_custom_call.1} parent=111 // pred_check
          %p1423 = pneg %p362
        $region114: #{tpu_custom_call.1} parent=111 // pred_check_branch
          %1425 = sbr.rel (%p1423) target = $region116
        $region115: #{tpu_custom_call.1} parent=111 // pred_region
          %s1426 = sand.u32 %s347, 1
          %s1427 = scalar_lea.sflag [#allocation5], %s1426
          %s1428 = sand.u32 %s347, 1
          %s1429 = smul.addr %s1428, 8
          %s1430 = scalar_lea.vmem [#allocation15], %s1429
          %1431 = dma.done %s1427, 128
        $region116: #{tpu_custom_call.1} parent=111 // pred_fallthru
          _
      $region112: #{tpu_custom_call.1} parent=5 // pred_fallthru
        _
    $region6: #{tpu_custom_call.1} parent=1 // loop_footer
      %s33 = sadd.s32 1, %s29
    $region7: #{tpu_custom_call.1} parent=1 // loop_footer_branch
      %28 = sbr.rel target = $region3
    $region8: #{tpu_custom_call.1} parent=1 // loop_exit
      _
    %1432 = vsyncpa [#allocation4], 1
    %s1433 = scalar_lea.sflag [#allocation4], 1
    %1434 = vsyncpa %s1433, 1
    %1435 = vsyncpa [#allocation7], 1
    %1436 = vsyncpa [#allocation10], 1
    %1437 = vsyncpa [#allocation13], 1
    %1438 = vsyncpa [#allocation5], 1
    %s1439 = scalar_lea.sflag [#allocation5], 1
    %1440 = vsyncpa %s1439, 1

</llo_original>
